<compile_context>
chip_gen: v7x
topology: tpu7x:2x2x1
jax: 0.10.0
libtpu: 0.0.40
codegen_flags: <defaults>
</compile_context>

<pallas_src>
import functools

import jax
import jax.numpy as jnp
from jax.experimental import pallas as pl
from jax.experimental.pallas import tpu as pltpu


# ----------------------------------------------------------------------------
# Fused DBHead kernel (one row-tile of one image per grid step)
# ----------------------------------------------------------------------------
def make_dbhead_kernel(tile_h, W, Cin, k):
    M = tile_h * W
    taps = [(ky, kx) for ky in range(3) for kx in range(3)]

    def kernel(x_ref, w1_ref, b1_ref, w2_ref, b2_ref, w3_ref, b3_ref,
               o_ref, acc_ref):
        # ---- conv1 (3x3, pad=1, both heads): 9 shifted-slice matmuls ------
        # x_ref: (tile_h+2, W+2, Cin) bf16 (halo'd tile); w1_ref: (9, Cin, C1)
        # Accumulate on an f32 VMEM scratch to bound live ranges.
        # (For Cin < 128 one could group taps along K into a single matmul;
        #  at production Cin~256 the per-tap K already saturates the MXU.)
        for t, (ky, kx) in enumerate(taps):
            patch = x_ref[ky:ky + tile_h, kx:kx + W, :].reshape(M, Cin)
            part = jnp.dot(patch, w1_ref[t],
                           preferred_element_type=jnp.float32)
            if t == 0:
                acc_ref[...] = part
            else:
                acc_ref[...] += part
        h1 = jnp.maximum(acc_ref[...] + b1_ref[...], 0.0)       # (M, C1) f32
        h1 = h1.astype(jnp.bfloat16)

        # ---- conv2: 2x2 stride-2 deconv -> 4 packed sub-pixel groups ------
        h2 = jnp.dot(h1, w2_ref[...], preferred_element_type=jnp.float32)
        h2 = jnp.maximum(h2 + b2_ref[...], 0.0).astype(jnp.bfloat16)  # (M, C2)

        # ---- conv3: 2x2 stride-2 deconv -> 1 ch/head, 16 sub-pixels/head --
        z = jnp.dot(h2, w3_ref[...],
                    preferred_element_type=jnp.float32) + b3_ref[...]  # (M, 32)

        # Lane-dense epilogue: put the spatial dim in lanes, sub-pixel
        # channels in sublanes, then store straight into o_ref row slices.
        zt = z.T                                                   # (32, M)
        shrink = jax.nn.sigmoid(zt[0:16, :])
        thresh = jax.nn.sigmoid(zt[16:32, :])
        binary = jax.nn.sigmoid(k * (shrink - thresh))   # fused step_function
        o_ref[0:16, :] = shrink
        o_ref[16:32, :] = thresh
        o_ref[32:48, :] = binary

    return kernel


def dbhead_pallas(x_tiles, params, tile_h, W, k):
    N, nT, _, _, Cin = x_tiles.shape
    C1 = params["w1"].shape[-1]          # 2 * c4
    C2 = params["w2"].shape[-1]          # 8 * c4
    C3 = params["w3"].shape[-1]          # 32
    M = tile_h * W

    kernel = make_dbhead_kernel(tile_h, W, Cin, k)
    return pl.pallas_call(
        kernel,
        out_shape=jax.ShapeDtypeStruct((N, nT, 48, M), jnp.float32),
        grid=(N, nT),
        in_specs=[
            pl.BlockSpec((None, None, tile_h + 2, W + 2, Cin),
                         lambda n, r: (n, r, 0, 0, 0)),
            pl.BlockSpec((9, Cin, C1), lambda n, r: (0, 0, 0)),
            pl.BlockSpec((1, C1), lambda n, r: (0, 0)),
            pl.BlockSpec((C1, C2), lambda n, r: (0, 0)),
            pl.BlockSpec((1, C2), lambda n, r: (0, 0)),
            pl.BlockSpec((C2, C3), lambda n, r: (0, 0)),
            pl.BlockSpec((1, C3), lambda n, r: (0, 0)),
        ],
        out_specs=pl.BlockSpec((None, None, 48, M), lambda n, r: (n, r, 0, 0)),
        scratch_shapes=[pltpu.VMEM((M, C1), jnp.float32)],
        compiler_params=pltpu.CompilerParams(
            dimension_semantics=("parallel", "parallel"),
            vmem_limit_bytes=48 * 1024 * 1024,
        ),
    )(x_tiles, params["w1"], params["b1"], params["w2"], params["b2"],
      params["w3"], params["b3"])


# ----------------------------------------------------------------------------
# Glue: final pixel shuffle (depth-to-space of the packed 4x4 sub-blocks)
# ----------------------------------------------------------------------------
def packed_to_nchw(m, N, nT, tile_h, W):
    """(N, nT, 16, tile_h*W) with sub-channel order (dy, dx, dy2, dx2)
    -> (N, 1, 4H, 4W)."""
    H = nT * tile_h
    y = m.reshape(N, nT, 2, 2, 2, 2, tile_h, W)       # (N,nT,dy,dx,dy2,dx2,yl,x)
    y = jnp.transpose(y, (0, 1, 6, 2, 4, 7, 3, 5))    # (N,nT,yl,dy,dy2,x,dx,dx2)
    return y.reshape(N, 1, 4 * H, 4 * W)


# ----------------------------------------------------------------------------
# Parameter construction (deterministic, synthetic). BN (eval mode) folded.
# ----------------------------------------------------------------------------
def init_head_params(key, cin):
    c4 = cin // 4
    eps = 1e-5
    ks = jax.random.split(key, 12)

    # conv1: 3x3, cin -> c4, no bias. Weight (ky, kx, ci, co).
    w1 = 0.05 * jax.random.normal(ks[0], (3, 3, cin, c4), jnp.float32)
    g1 = 1.0 + 0.1 * jax.random.normal(ks[1], (c4,), jnp.float32)
    b1 = 0.1 * jax.random.normal(ks[2], (c4,), jnp.float32)
    m1 = 0.1 * jax.random.normal(ks[3], (c4,), jnp.float32)
    v1 = 1.0 + 0.1 * jax.random.uniform(ks[4], (c4,), jnp.float32)

    # conv2: ConvTranspose2d 2x2 stride 2, c4 -> c4, bias. Weight (ci, co, dy, dx).
    w2 = 0.1 * jax.random.normal(ks[5], (c4, c4, 2, 2), jnp.float32)
    cb2 = 0.05 * jax.random.normal(ks[6], (c4,), jnp.float32)
    g2 = 1.0 + 0.1 * jax.random.normal(ks[7], (c4,), jnp.float32)
    b2 = 0.1 * jax.random.normal(ks[8], (c4,), jnp.float32)
    m2 = 0.1 * jax.random.normal(ks[9], (c4,), jnp.float32)
    v2 = 1.0 + 0.1 * jax.random.uniform(ks[10], (c4,), jnp.float32)

    # conv3: ConvTranspose2d 2x2 stride 2, c4 -> 1, bias. Weight (ci, dy2, dx2).
    w3 = 0.1 * jax.random.normal(ks[11], (c4, 2, 2), jnp.float32)
    cb3 = jnp.float32(0.02)

    # Fold BN (eval mode) scale into weights; keep only the bias.
    s1 = g1 / jnp.sqrt(v1 + eps)
    w1f = w1 * s1[None, None, None, :]
    bias1 = b1 - m1 * s1
    s2 = g2 / jnp.sqrt(v2 + eps)
    w2f = w2 * s2[None, :, None, None]
    bias2 = b2 + (cb2 - m2) * s2
    return dict(w1=w1f, b1=bias1, w2=w2f, b2=bias2, w3=w3, b3=cb3)


def build_fused_params(p_bin, p_thr, cin):
    """Concatenate/block-diagonalise both heads into one set of matrices."""
    c4 = cin // 4
    C1, C2, C3 = 2 * c4, 8 * c4, 32
    heads = (p_bin, p_thr)

    # conv1: concat output channels of both heads -> (9, cin, C1).
    w1 = jnp.concatenate([p["w1"].reshape(9, cin, c4) for p in heads], axis=-1)
    b1 = jnp.concatenate([p["b1"] for p in heads])[None, :]

    # conv2: (C1, C2), column index = g*C1 + head*c4 + co, g = dy*2 + dx.
    w2 = jnp.zeros((C1, C2), jnp.float32)
    b2 = jnp.zeros((C2,), jnp.float32)
    for g, (dy, dx) in enumerate([(0, 0), (0, 1), (1, 0), (1, 1)]):
        for h, p in enumerate(heads):
            r0, c0 = h * c4, g * C1 + h * c4
            w2 = w2.at[r0:r0 + c4, c0:c0 + c4].set(p["w2"][:, :, dy, dx])
            b2 = b2.at[c0:c0 + c4].set(p["b2"])

    # conv3: (C2, C3); row = g*C1 + head*c4 + ci, col = head*16 + g*4 + s,
    # s = dy2*2 + dx2. Block-diagonal over (head, g).
    w3 = jnp.zeros((C2, C3), jnp.float32)
    b3 = jnp.zeros((C3,), jnp.float32)
    for g in range(4):
        for h, p in enumerate(heads):
            for s, (dy2, dx2) in enumerate([(0, 0), (0, 1), (1, 0), (1, 1)]):
                col = h * 16 + g * 4 + s
                r0 = g * C1 + h * c4
                w3 = w3.at[r0:r0 + c4, col].set(p["w3"][:, dy2, dx2])
                b3 = b3.at[col].set(p["b3"])

    return dict(w1=w1.astype(jnp.bfloat16), b1=b1.astype(jnp.float32),
                w2=w2.astype(jnp.bfloat16), b2=b2[None, :].astype(jnp.float32),
                w3=w3.astype(jnp.bfloat16), b3=b3[None, :].astype(jnp.float32))


# ----------------------------------------------------------------------------
# DBHead forward
# ----------------------------------------------------------------------------
@functools.partial(jax.jit, static_argnames=("k", "tile_h"))
def dbhead_forward(x_nchw, params, k=50.0, tile_h=8):
    N, _, H, W = x_nchw.shape
    assert H % tile_h == 0, "tile_h must divide H"
    nT = H // tile_h

    # NHWC, bf16, conv pad=1, halo'd row tiles (each tile carries its 1-row
    # halo so BlockSpec blocks never overlap).
    x = jnp.transpose(x_nchw, (0, 2, 3, 1)).astype(jnp.bfloat16)
    x_pad = jnp.pad(x, ((0, 0), (1, 1), (1, 1), (0, 0)))
    x_tiles = jnp.stack(
        [x_pad[:, r * tile_h: r * tile_h + tile_h + 2] for r in range(nT)],
        axis=1)                                  # (N, nT, tile_h+2, W+2, Cin)

    out = dbhead_pallas(x_tiles, params, tile_h, W, k)   # (N, nT, 48, tile_h*W)

    shrink = packed_to_nchw(out[:, :, 0:16, :], N, nT, tile_h, W)
    thresh = packed_to_nchw(out[:, :, 16:32, :], N, nT, tile_h, W)
    binary = packed_to_nchw(out[:, :, 32:48, :], N, nT, tile_h, W)
    return shrink, thresh, binary


# ----------------------------------------------------------------------------
if __name__ == "__main__":
    N, C, H, W = 2, 16, 16, 16   # in_channels must be divisible by 4
    key = jax.random.PRNGKey(0)
    kx_, kb, kt = jax.random.split(key, 3)

    # Input in PyTorch's NCHW convention.
    x = jax.random.normal(kx_, (N, C, H, W), jnp.float32)

    params = build_fused_params(init_head_params(kb, C),
                                init_head_params(kt, C), C)

    shrink, thresh, binary = dbhead_forward(x, params, k=50.0, tile_h=8)
    jax.block_until_ready((shrink, thresh, binary))

    assert shrink.shape == (N, 1, 4 * H, 4 * W)
    assert thresh.shape == (N, 1, 4 * H, 4 * W)
    assert binary.shape == (N, 1, 4 * H, 4 * W)
    assert bool(jnp.all(jnp.isfinite(shrink)))
    assert bool(jnp.all(jnp.isfinite(thresh)))
    assert bool(jnp.all(jnp.isfinite(binary)))
    assert bool(jnp.all((shrink >= 0.0) & (shrink <= 1.0)))
    assert bool(jnp.all((thresh >= 0.0) & (thresh <= 1.0)))
    assert bool(jnp.all((binary >= 0.0) & (binary <= 1.0)))

    print("KERNEL_OK")
</pallas_src>

<mosaic_0001>
module attributes {stable_mosaic.version = 11 : i64} {
  func.func @kernel(%arg0: i32, %arg1: i32, %arg2: memref<1x1x10x18x16xbf16, #tpu.memory_space<vmem>>, %arg3: memref<9x16x8xbf16, #tpu.memory_space<vmem>>, %arg4: memref<1x8xf32, #tpu.memory_space<vmem>>, %arg5: memref<8x32xbf16, #tpu.memory_space<vmem>>, %arg6: memref<1x32xf32, #tpu.memory_space<vmem>>, %arg7: memref<32x32xbf16, #tpu.memory_space<vmem>>, %arg8: memref<1x32xf32, #tpu.memory_space<vmem>>, %arg9: memref<1x1x48x128xf32, #tpu.memory_space<vmem>>, %arg10: memref<128x8xf32, #tpu.memory_space<vmem>>) attributes {dimension_semantics = [#tpu.dimension_semantics<parallel>, #tpu.dimension_semantics<parallel>], iteration_bounds = array<i64: 2, 2>, scalar_prefetch = 0 : i64, scratch_operands = 1 : i64, tpu.core_type = #tpu.core_type<tc>, window_params = [{transform_indices = @transform_0, window_bounds = array<i64: 1, 1, 10, 18, 16>}, {pipeline_mode = #tpu.pipeline_mode<synchronous>, transform_indices = @transform_1, window_bounds = array<i64: 9, 16, 8>}, {pipeline_mode = #tpu.pipeline_mode<synchronous>, transform_indices = @transform_2, window_bounds = array<i64: 1, 8>}, {pipeline_mode = #tpu.pipeline_mode<synchronous>, transform_indices = @transform_3, window_bounds = array<i64: 8, 32>}, {pipeline_mode = #tpu.pipeline_mode<synchronous>, transform_indices = @transform_4, window_bounds = array<i64: 1, 32>}, {pipeline_mode = #tpu.pipeline_mode<synchronous>, transform_indices = @transform_5, window_bounds = array<i64: 32, 32>}, {pipeline_mode = #tpu.pipeline_mode<synchronous>, transform_indices = @transform_6, window_bounds = array<i64: 1, 32>}, {transform_indices = @transform_7, window_bounds = array<i64: 1, 1, 48, 128>}]} {
    %c0 = arith.constant 0 : index
    %c0_0 = arith.constant 0 : index
    %c0_1 = arith.constant 0 : index
    %c0_2 = arith.constant 0 : index
    %c0_3 = arith.constant 0 : index
    %0 = vector.load %arg2[%c0, %c0_0, %c0_1, %c0_2, %c0_3] : memref<1x1x10x18x16xbf16, #tpu.memory_space<vmem>>, vector<1x1x8x16x16xbf16>
    %1 = vector.shape_cast %0 : vector<1x1x8x16x16xbf16> to vector<8x16x16xbf16>
    %2 = vector.shape_cast %1 : vector<8x16x16xbf16> to vector<128x16xbf16>
    %c0_4 = arith.constant 0 : index
    %c0_5 = arith.constant 0 : index
    %c0_6 = arith.constant 0 : index
    %3 = vector.load %arg3[%c0_4, %c0_5, %c0_6] : memref<9x16x8xbf16, #tpu.memory_space<vmem>>, vector<1x16x8xbf16>
    %4 = vector.shape_cast %3 : vector<1x16x8xbf16> to vector<16x8xbf16>
    %cst = arith.constant dense<0.000000e+00> : vector<128x8xf32>
    %5 = tpu.matmul %2, %4, %cst {dimension_numbers = #tpu.dot_dimension_numbers<[1], [0], [0], [1], [0, 0, 1, 1], [], []>} : vector<128x16xbf16>, vector<16x8xbf16>, vector<128x8xf32> -> vector<128x8xf32>
    %c0_7 = arith.constant 0 : index
    %c0_8 = arith.constant 0 : index
    %6 = vector.load %arg10[%c0_7, %c0_8] : memref<128x8xf32, #tpu.memory_space<vmem>>, vector<128x8xf32>
    tpu.vector_store %arg10[%c0_7, %c0_8], %5 {strides = array<i32>} : memref<128x8xf32, #tpu.memory_space<vmem>>, vector<128x8xf32>,
    %c0_9 = arith.constant 0 : index
    %c0_10 = arith.constant 0 : index
    %c0_11 = arith.constant 0 : index
    %c1 = arith.constant 1 : index
    %c0_12 = arith.constant 0 : index
    %7 = vector.load %arg2[%c0_9, %c0_10, %c0_11, %c1, %c0_12] : memref<1x1x10x18x16xbf16, #tpu.memory_space<vmem>>, vector<1x1x8x16x16xbf16>
    %8 = vector.shape_cast %7 : vector<1x1x8x16x16xbf16> to vector<8x16x16xbf16>
    %9 = vector.shape_cast %8 : vector<8x16x16xbf16> to vector<128x16xbf16>
    %c1_13 = arith.constant 1 : index
    %c0_14 = arith.constant 0 : index
    %c0_15 = arith.constant 0 : index
    %10 = vector.load %arg3[%c1_13, %c0_14, %c0_15] : memref<9x16x8xbf16, #tpu.memory_space<vmem>>, vector<1x16x8xbf16>
    %11 = vector.shape_cast %10 : vector<1x16x8xbf16> to vector<16x8xbf16>
    %cst_16 = arith.constant dense<0.000000e+00> : vector<128x8xf32>
    %12 = tpu.matmul %9, %11, %cst_16 {dimension_numbers = #tpu.dot_dimension_numbers<[1], [0], [0], [1], [0, 0, 1, 1], [], []>} : vector<128x16xbf16>, vector<16x8xbf16>, vector<128x8xf32> -> vector<128x8xf32>
    %c0_17 = arith.constant 0 : index
    %c0_18 = arith.constant 0 : index
    %13 = vector.load %arg10[%c0_17, %c0_18] : memref<128x8xf32, #tpu.memory_space<vmem>>, vector<128x8xf32>
    %14 = arith.addf %13, %12 : vector<128x8xf32>
    %c0_19 = arith.constant 0 : index
    %c0_20 = arith.constant 0 : index
    %15 = vector.load %arg10[%c0_19, %c0_20] : memref<128x8xf32, #tpu.memory_space<vmem>>, vector<128x8xf32>
    tpu.vector_store %arg10[%c0_19, %c0_20], %14 {strides = array<i32>} : memref<128x8xf32, #tpu.memory_space<vmem>>, vector<128x8xf32>,
    %c0_21 = arith.constant 0 : index
    %c0_22 = arith.constant 0 : index
    %c0_23 = arith.constant 0 : index
    %c2 = arith.constant 2 : index
    %c0_24 = arith.constant 0 : index
    %16 = vector.load %arg2[%c0_21, %c0_22, %c0_23, %c2, %c0_24] : memref<1x1x10x18x16xbf16, #tpu.memory_space<vmem>>, vector<1x1x8x16x16xbf16>
    %17 = vector.shape_cast %16 : vector<1x1x8x16x16xbf16> to vector<8x16x16xbf16>
    %18 = vector.shape_cast %17 : vector<8x16x16xbf16> to vector<128x16xbf16>
    %c2_25 = arith.constant 2 : index
    %c0_26 = arith.constant 0 : index
    %c0_27 = arith.constant 0 : index
    %19 = vector.load %arg3[%c2_25, %c0_26, %c0_27] : memref<9x16x8xbf16, #tpu.memory_space<vmem>>, vector<1x16x8xbf16>
    %20 = vector.shape_cast %19 : vector<1x16x8xbf16> to vector<16x8xbf16>
    %cst_28 = arith.constant dense<0.000000e+00> : vector<128x8xf32>
    %21 = tpu.matmul %18, %20, %cst_28 {dimension_numbers = #tpu.dot_dimension_numbers<[1], [0], [0], [1], [0, 0, 1, 1], [], []>} : vector<128x16xbf16>, vector<16x8xbf16>, vector<128x8xf32> -> vector<128x8xf32>
    %c0_29 = arith.constant 0 : index
    %c0_30 = arith.constant 0 : index
    %22 = vector.load %arg10[%c0_29, %c0_30] : memref<128x8xf32, #tpu.memory_space<vmem>>, vector<128x8xf32>
    %23 = arith.addf %22, %21 : vector<128x8xf32>
    %c0_31 = arith.constant 0 : index
    %c0_32 = arith.constant 0 : index
    %24 = vector.load %arg10[%c0_31, %c0_32] : memref<128x8xf32, #tpu.memory_space<vmem>>, vector<128x8xf32>
    tpu.vector_store %arg10[%c0_31, %c0_32], %23 {strides = array<i32>} : memref<128x8xf32, #tpu.memory_space<vmem>>, vector<128x8xf32>,
    %c0_33 = arith.constant 0 : index
    %c0_34 = arith.constant 0 : index
    %c1_35 = arith.constant 1 : index
    %c0_36 = arith.constant 0 : index
    %c0_37 = arith.constant 0 : index
    %25 = vector.load %arg2[%c0_33, %c0_34, %c1_35, %c0_36, %c0_37] : memref<1x1x10x18x16xbf16, #tpu.memory_space<vmem>>, vector<1x1x8x16x16xbf16>
    %26 = vector.shape_cast %25 : vector<1x1x8x16x16xbf16> to vector<8x16x16xbf16>
    %27 = vector.shape_cast %26 : vector<8x16x16xbf16> to vector<128x16xbf16>
    %c3 = arith.constant 3 : index
    %c0_38 = arith.constant 0 : index
    %c0_39 = arith.constant 0 : index
    %28 = vector.load %arg3[%c3, %c0_38, %c0_39] : memref<9x16x8xbf16, #tpu.memory_space<vmem>>, vector<1x16x8xbf16>
    %29 = vector.shape_cast %28 : vector<1x16x8xbf16> to vector<16x8xbf16>
    %cst_40 = arith.constant dense<0.000000e+00> : vector<128x8xf32>
    %30 = tpu.matmul %27, %29, %cst_40 {dimension_numbers = #tpu.dot_dimension_numbers<[1], [0], [0], [1], [0, 0, 1, 1], [], []>} : vector<128x16xbf16>, vector<16x8xbf16>, vector<128x8xf32> -> vector<128x8xf32>
    %c0_41 = arith.constant 0 : index
    %c0_42 = arith.constant 0 : index
    %31 = vector.load %arg10[%c0_41, %c0_42] : memref<128x8xf32, #tpu.memory_space<vmem>>, vector<128x8xf32>
    %32 = arith.addf %31, %30 : vector<128x8xf32>
    %c0_43 = arith.constant 0 : index
    %c0_44 = arith.constant 0 : index
    %33 = vector.load %arg10[%c0_43, %c0_44] : memref<128x8xf32, #tpu.memory_space<vmem>>, vector<128x8xf32>
    tpu.vector_store %arg10[%c0_43, %c0_44], %32 {strides = array<i32>} : memref<128x8xf32, #tpu.memory_space<vmem>>, vector<128x8xf32>,
    %c0_45 = arith.constant 0 : index
    %c0_46 = arith.constant 0 : index
    %c1_47 = arith.constant 1 : index
    %c1_48 = arith.constant 1 : index
    %c0_49 = arith.constant 0 : index
    %34 = vector.load %arg2[%c0_45, %c0_46, %c1_47, %c1_48, %c0_49] : memref<1x1x10x18x16xbf16, #tpu.memory_space<vmem>>, vector<1x1x8x16x16xbf16>
    %35 = vector.shape_cast %34 : vector<1x1x8x16x16xbf16> to vector<8x16x16xbf16>
    %36 = vector.shape_cast %35 : vector<8x16x16xbf16> to vector<128x16xbf16>
    %c4 = arith.constant 4 : index
    %c0_50 = arith.constant 0 : index
    %c0_51 = arith.constant 0 : index
    %37 = vector.load %arg3[%c4, %c0_50, %c0_51] : memref<9x16x8xbf16, #tpu.memory_space<vmem>>, vector<1x16x8xbf16>
    %38 = vector.shape_cast %37 : vector<1x16x8xbf16> to vector<16x8xbf16>
    %cst_52 = arith.constant dense<0.000000e+00> : vector<128x8xf32>
    %39 = tpu.matmul %36, %38, %cst_52 {dimension_numbers = #tpu.dot_dimension_numbers<[1], [0], [0], [1], [0, 0, 1, 1], [], []>} : vector<128x16xbf16>, vector<16x8xbf16>, vector<128x8xf32> -> vector<128x8xf32>
    %c0_53 = arith.constant 0 : index
    %c0_54 = arith.constant 0 : index
    %40 = vector.load %arg10[%c0_53, %c0_54] : memref<128x8xf32, #tpu.memory_space<vmem>>, vector<128x8xf32>
    %41 = arith.addf %40, %39 : vector<128x8xf32>
    %c0_55 = arith.constant 0 : index
    %c0_56 = arith.constant 0 : index
    %42 = vector.load %arg10[%c0_55, %c0_56] : memref<128x8xf32, #tpu.memory_space<vmem>>, vector<128x8xf32>
    tpu.vector_store %arg10[%c0_55, %c0_56], %41 {strides = array<i32>} : memref<128x8xf32, #tpu.memory_space<vmem>>, vector<128x8xf32>,
    %c0_57 = arith.constant 0 : index
    %c0_58 = arith.constant 0 : index
    %c1_59 = arith.constant 1 : index
    %c2_60 = arith.constant 2 : index
    %c0_61 = arith.constant 0 : index
    %43 = vector.load %arg2[%c0_57, %c0_58, %c1_59, %c2_60, %c0_61] : memref<1x1x10x18x16xbf16, #tpu.memory_space<vmem>>, vector<1x1x8x16x16xbf16>
    %44 = vector.shape_cast %43 : vector<1x1x8x16x16xbf16> to vector<8x16x16xbf16>
    %45 = vector.shape_cast %44 : vector<8x16x16xbf16> to vector<128x16xbf16>
    %c5 = arith.constant 5 : index
    %c0_62 = arith.constant 0 : index
    %c0_63 = arith.constant 0 : index
    %46 = vector.load %arg3[%c5, %c0_62, %c0_63] : memref<9x16x8xbf16, #tpu.memory_space<vmem>>, vector<1x16x8xbf16>
    %47 = vector.shape_cast %46 : vector<1x16x8xbf16> to vector<16x8xbf16>
    %cst_64 = arith.constant dense<0.000000e+00> : vector<128x8xf32>
    %48 = tpu.matmul %45, %47, %cst_64 {dimension_numbers = #tpu.dot_dimension_numbers<[1], [0], [0], [1], [0, 0, 1, 1], [], []>} : vector<128x16xbf16>, vector<16x8xbf16>, vector<128x8xf32> -> vector<128x8xf32>
    %c0_65 = arith.constant 0 : index
    %c0_66 = arith.constant 0 : index
    %49 = vector.load %arg10[%c0_65, %c0_66] : memref<128x8xf32, #tpu.memory_space<vmem>>, vector<128x8xf32>
    %50 = arith.addf %49, %48 : vector<128x8xf32>
    %c0_67 = arith.constant 0 : index
    %c0_68 = arith.constant 0 : index
    %51 = vector.load %arg10[%c0_67, %c0_68] : memref<128x8xf32, #tpu.memory_space<vmem>>, vector<128x8xf32>
    tpu.vector_store %arg10[%c0_67, %c0_68], %50 {strides = array<i32>} : memref<128x8xf32, #tpu.memory_space<vmem>>, vector<128x8xf32>,
    %c0_69 = arith.constant 0 : index
    %c0_70 = arith.constant 0 : index
    %c2_71 = arith.constant 2 : index
    %c0_72 = arith.constant 0 : index
    %c0_73 = arith.constant 0 : index
    %52 = vector.load %arg2[%c0_69, %c0_70, %c2_71, %c0_72, %c0_73] : memref<1x1x10x18x16xbf16, #tpu.memory_space<vmem>>, vector<1x1x8x16x16xbf16>
    %53 = vector.shape_cast %52 : vector<1x1x8x16x16xbf16> to vector<8x16x16xbf16>
    %54 = vector.shape_cast %53 : vector<8x16x16xbf16> to vector<128x16xbf16>
    %c6 = arith.constant 6 : index
    %c0_74 = arith.constant 0 : index
    %c0_75 = arith.constant 0 : index
    %55 = vector.load %arg3[%c6, %c0_74, %c0_75] : memref<9x16x8xbf16, #tpu.memory_space<vmem>>, vector<1x16x8xbf16>
    %56 = vector.shape_cast %55 : vector<1x16x8xbf16> to vector<16x8xbf16>
    %cst_76 = arith.constant dense<0.000000e+00> : vector<128x8xf32>
    %57 = tpu.matmul %54, %56, %cst_76 {dimension_numbers = #tpu.dot_dimension_numbers<[1], [0], [0], [1], [0, 0, 1, 1], [], []>} : vector<128x16xbf16>, vector<16x8xbf16>, vector<128x8xf32> -> vector<128x8xf32>
    %c0_77 = arith.constant 0 : index
    %c0_78 = arith.constant 0 : index
    %58 = vector.load %arg10[%c0_77, %c0_78] : memref<128x8xf32, #tpu.memory_space<vmem>>, vector<128x8xf32>
    %59 = arith.addf %58, %57 : vector<128x8xf32>
    %c0_79 = arith.constant 0 : index
    %c0_80 = arith.constant 0 : index
    %60 = vector.load %arg10[%c0_79, %c0_80] : memref<128x8xf32, #tpu.memory_space<vmem>>, vector<128x8xf32>
    tpu.vector_store %arg10[%c0_79, %c0_80], %59 {strides = array<i32>} : memref<128x8xf32, #tpu.memory_space<vmem>>, vector<128x8xf32>,
    %c0_81 = arith.constant 0 : index
    %c0_82 = arith.constant 0 : index
    %c2_83 = arith.constant 2 : index
    %c1_84 = arith.constant 1 : index
    %c0_85 = arith.constant 0 : index
    %61 = vector.load %arg2[%c0_81, %c0_82, %c2_83, %c1_84, %c0_85] : memref<1x1x10x18x16xbf16, #tpu.memory_space<vmem>>, vector<1x1x8x16x16xbf16>
    %62 = vector.shape_cast %61 : vector<1x1x8x16x16xbf16> to vector<8x16x16xbf16>
    %63 = vector.shape_cast %62 : vector<8x16x16xbf16> to vector<128x16xbf16>
    %c7 = arith.constant 7 : index
    %c0_86 = arith.constant 0 : index
    %c0_87 = arith.constant 0 : index
    %64 = vector.load %arg3[%c7, %c0_86, %c0_87] : memref<9x16x8xbf16, #tpu.memory_space<vmem>>, vector<1x16x8xbf16>
    %65 = vector.shape_cast %64 : vector<1x16x8xbf16> to vector<16x8xbf16>
    %cst_88 = arith.constant dense<0.000000e+00> : vector<128x8xf32>
    %66 = tpu.matmul %63, %65, %cst_88 {dimension_numbers = #tpu.dot_dimension_numbers<[1], [0], [0], [1], [0, 0, 1, 1], [], []>} : vector<128x16xbf16>, vector<16x8xbf16>, vector<128x8xf32> -> vector<128x8xf32>
    %c0_89 = arith.constant 0 : index
    %c0_90 = arith.constant 0 : index
    %67 = vector.load %arg10[%c0_89, %c0_90] : memref<128x8xf32, #tpu.memory_space<vmem>>, vector<128x8xf32>
    %68 = arith.addf %67, %66 : vector<128x8xf32>
    %c0_91 = arith.constant 0 : index
    %c0_92 = arith.constant 0 : index
    %69 = vector.load %arg10[%c0_91, %c0_92] : memref<128x8xf32, #tpu.memory_space<vmem>>, vector<128x8xf32>
    tpu.vector_store %arg10[%c0_91, %c0_92], %68 {strides = array<i32>} : memref<128x8xf32, #tpu.memory_space<vmem>>, vector<128x8xf32>,
    %c0_93 = arith.constant 0 : index
    %c0_94 = arith.constant 0 : index
    %c2_95 = arith.constant 2 : index
    %c2_96 = arith.constant 2 : index
    %c0_97 = arith.constant 0 : index
    %70 = vector.load %arg2[%c0_93, %c0_94, %c2_95, %c2_96, %c0_97] : memref<1x1x10x18x16xbf16, #tpu.memory_space<vmem>>, vector<1x1x8x16x16xbf16>
    %71 = vector.shape_cast %70 : vector<1x1x8x16x16xbf16> to vector<8x16x16xbf16>
    %72 = vector.shape_cast %71 : vector<8x16x16xbf16> to vector<128x16xbf16>
    %c8 = arith.constant 8 : index
    %c0_98 = arith.constant 0 : index
    %c0_99 = arith.constant 0 : index
    %73 = vector.load %arg3[%c8, %c0_98, %c0_99] : memref<9x16x8xbf16, #tpu.memory_space<vmem>>, vector<1x16x8xbf16>
    %74 = vector.shape_cast %73 : vector<1x16x8xbf16> to vector<16x8xbf16>
    %cst_100 = arith.constant dense<0.000000e+00> : vector<128x8xf32>
    %75 = tpu.matmul %72, %74, %cst_100 {dimension_numbers = #tpu.dot_dimension_numbers<[1], [0], [0], [1], [0, 0, 1, 1], [], []>} : vector<128x16xbf16>, vector<16x8xbf16>, vector<128x8xf32> -> vector<128x8xf32>
    %c0_101 = arith.constant 0 : index
    %c0_102 = arith.constant 0 : index
    %76 = vector.load %arg10[%c0_101, %c0_102] : memref<128x8xf32, #tpu.memory_space<vmem>>, vector<128x8xf32>
    %77 = arith.addf %76, %75 : vector<128x8xf32>
    %c0_103 = arith.constant 0 : index
    %c0_104 = arith.constant 0 : index
    %78 = vector.load %arg10[%c0_103, %c0_104] : memref<128x8xf32, #tpu.memory_space<vmem>>, vector<128x8xf32>
    tpu.vector_store %arg10[%c0_103, %c0_104], %77 {strides = array<i32>} : memref<128x8xf32, #tpu.memory_space<vmem>>, vector<128x8xf32>,
    %c0_105 = arith.constant 0 : index
    %c0_106 = arith.constant 0 : index
    %79 = vector.load %arg10[%c0_105, %c0_106] : memref<128x8xf32, #tpu.memory_space<vmem>>, vector<128x8xf32>
    %c0_107 = arith.constant 0 : index
    %c0_108 = arith.constant 0 : index
    %80 = vector.load %arg4[%c0_107, %c0_108] : memref<1x8xf32, #tpu.memory_space<vmem>>, vector<1x8xf32>
    %81 = vector.broadcast %80 : vector<1x8xf32> to vector<128x8xf32>
    %82 = arith.addf %79, %81 : vector<128x8xf32>
    %cst_109 = arith.constant 0.000000e+00 : f32
    %83 = vector.broadcast %cst_109 : f32 to vector<128x8xf32>
    %84 = arith.maximumf %82, %83 : vector<128x8xf32>
    %85 = arith.truncf %84 : vector<128x8xf32> to vector<128x8xbf16>
    %c0_110 = arith.constant 0 : index
    %c0_111 = arith.constant 0 : index
    %86 = vector.load %arg5[%c0_110, %c0_111] : memref<8x32xbf16, #tpu.memory_space<vmem>>, vector<8x32xbf16>
    %cst_112 = arith.constant dense<0.000000e+00> : vector<128x32xf32>
    %87 = tpu.matmul %85, %86, %cst_112 {dimension_numbers = #tpu.dot_dimension_numbers<[1], [0], [0], [1], [0, 0, 1, 1], [], []>} : vector<128x8xbf16>, vector<8x32xbf16>, vector<128x32xf32> -> vector<128x32xf32>
    %c0_113 = arith.constant 0 : index
    %c0_114 = arith.constant 0 : index
    %88 = vector.load %arg6[%c0_113, %c0_114] : memref<1x32xf32, #tpu.memory_space<vmem>>, vector<1x32xf32>
    %89 = vector.broadcast %88 : vector<1x32xf32> to vector<128x32xf32>
    %90 = arith.addf %87, %89 : vector<128x32xf32>
    %cst_115 = arith.constant 0.000000e+00 : f32
    %91 = vector.broadcast %cst_115 : f32 to vector<128x32xf32>
    %92 = arith.maximumf %90, %91 : vector<128x32xf32>
    %93 = arith.truncf %92 : vector<128x32xf32> to vector<128x32xbf16>
    %c0_116 = arith.constant 0 : index
    %c0_117 = arith.constant 0 : index
    %94 = vector.load %arg7[%c0_116, %c0_117] : memref<32x32xbf16, #tpu.memory_space<vmem>>, vector<32x32xbf16>
    %cst_118 = arith.constant dense<0.000000e+00> : vector<128x32xf32>
    %95 = tpu.matmul %93, %94, %cst_118 {dimension_numbers = #tpu.dot_dimension_numbers<[1], [0], [0], [1], [0, 0, 1, 1], [], []>} : vector<128x32xbf16>, vector<32x32xbf16>, vector<128x32xf32> -> vector<128x32xf32>
    %c0_119 = arith.constant 0 : index
    %c0_120 = arith.constant 0 : index
    %96 = vector.load %arg8[%c0_119, %c0_120] : memref<1x32xf32, #tpu.memory_space<vmem>>, vector<1x32xf32>
    %97 = vector.broadcast %96 : vector<1x32xf32> to vector<128x32xf32>
    %98 = arith.addf %95, %97 : vector<128x32xf32>
    %99 = tpu.transpose %98, [1, 0] : vector<128x32xf32> -> vector<32x128xf32>
    %100 = vector.extract_strided_slice %99 {offsets = [0, 0], sizes = [16, 128], strides = [1, 1]} : vector<32x128xf32> to vector<16x128xf32>
    %101 = arith.negf %100 : vector<16x128xf32>
    %102 = math.exp %101 : vector<16x128xf32>
    %cst_121 = arith.constant 1.000000e+00 : f32
    %103 = vector.broadcast %cst_121 : f32 to vector<16x128xf32>
    %104 = arith.addf %103, %102 : vector<16x128xf32>
    %105 = arith.divf %103, %104 : vector<16x128xf32>
    %106 = vector.extract_strided_slice %99 {offsets = [16, 0], sizes = [16, 128], strides = [1, 1]} : vector<32x128xf32> to vector<16x128xf32>
    %107 = arith.negf %106 : vector<16x128xf32>
    %108 = math.exp %107 : vector<16x128xf32>
    %cst_122 = arith.constant 1.000000e+00 : f32
    %109 = vector.broadcast %cst_122 : f32 to vector<16x128xf32>
    %110 = arith.addf %109, %108 : vector<16x128xf32>
    %111 = arith.divf %109, %110 : vector<16x128xf32>
    %112 = arith.subf %105, %111 : vector<16x128xf32>
    %cst_123 = arith.constant 5.000000e+01 : f32
    %113 = vector.broadcast %cst_123 : f32 to vector<16x128xf32>
    %114 = arith.mulf %113, %112 : vector<16x128xf32>
    %115 = arith.negf %114 : vector<16x128xf32>
    %116 = math.exp %115 : vector<16x128xf32>
    %cst_124 = arith.constant 1.000000e+00 : f32
    %117 = vector.broadcast %cst_124 : f32 to vector<16x128xf32>
    %118 = arith.addf %117, %116 : vector<16x128xf32>
    %119 = arith.divf %117, %118 : vector<16x128xf32>
    %c0_125 = arith.constant 0 : index
    %c0_126 = arith.constant 0 : index
    %c0_127 = arith.constant 0 : index
    %c0_128 = arith.constant 0 : index
    %120 = vector.load %arg9[%c0_125, %c0_126, %c0_127, %c0_128] : memref<1x1x48x128xf32, #tpu.memory_space<vmem>>, vector<1x1x16x128xf32>
    %121 = vector.shape_cast %120 : vector<1x1x16x128xf32> to vector<16x128xf32>
    %122 = vector.shape_cast %105 : vector<16x128xf32> to vector<1x1x16x128xf32>
    tpu.vector_store %arg9[%c0_125, %c0_126, %c0_127, %c0_128], %122 {strides = array<i32>} : memref<1x1x48x128xf32, #tpu.memory_space<vmem>>, vector<1x1x16x128xf32>,
    %c0_129 = arith.constant 0 : index
    %c0_130 = arith.constant 0 : index
    %c16 = arith.constant 16 : index
    %c0_131 = arith.constant 0 : index
    %123 = vector.load %arg9[%c0_129, %c0_130, %c16, %c0_131] : memref<1x1x48x128xf32, #tpu.memory_space<vmem>>, vector<1x1x16x128xf32>
    %124 = vector.shape_cast %123 : vector<1x1x16x128xf32> to vector<16x128xf32>
    %125 = vector.shape_cast %111 : vector<16x128xf32> to vector<1x1x16x128xf32>
    tpu.vector_store %arg9[%c0_129, %c0_130, %c16, %c0_131], %125 {strides = array<i32>} : memref<1x1x48x128xf32, #tpu.memory_space<vmem>>, vector<1x1x16x128xf32>,
    %c0_132 = arith.constant 0 : index
    %c0_133 = arith.constant 0 : index
    %c32 = arith.constant 32 : index
    %c0_134 = arith.constant 0 : index
    %126 = vector.load %arg9[%c0_132, %c0_133, %c32, %c0_134] : memref<1x1x48x128xf32, #tpu.memory_space<vmem>>, vector<1x1x16x128xf32>
    %127 = vector.shape_cast %126 : vector<1x1x16x128xf32> to vector<16x128xf32>
    %128 = vector.shape_cast %119 : vector<16x128xf32> to vector<1x1x16x128xf32>
    tpu.vector_store %arg9[%c0_132, %c0_133, %c32, %c0_134], %128 {strides = array<i32>} : memref<1x1x48x128xf32, #tpu.memory_space<vmem>>, vector<1x1x16x128xf32>,
    return
  }
  func.func @transform_0(%arg0: i32, %arg1: i32) -> (i32, i32, i32, i32, i32) {
    %c0_i32 = arith.constant 0 : i32
    %c0_i32_0 = arith.constant 0 : i32
    %c0_i32_1 = arith.constant 0 : i32
    %c0_i32_2 = arith.constant 0 : i32
    return %arg0, %arg1, %c0_i32, %c0_i32_0, %c0_i32_1 : i32, i32, i32, i32, i32
  }
  func.func @transform_1(%arg0: i32, %arg1: i32) -> (i32, i32, i32) {
    %c0_i32 = arith.constant 0 : i32
    %c0_i32_0 = arith.constant 0 : i32
    %c0_i32_1 = arith.constant 0 : i32
    %c0_i32_2 = arith.constant 0 : i32
    return %c0_i32, %c0_i32_0, %c0_i32_1 : i32, i32, i32
  }
  func.func @transform_2(%arg0: i32, %arg1: i32) -> (i32, i32) {
    %c0_i32 = arith.constant 0 : i32
    %c0_i32_0 = arith.constant 0 : i32
    %c0_i32_1 = arith.constant 0 : i32
    return %c0_i32, %c0_i32_0 : i32, i32
  }
  func.func @transform_3(%arg0: i32, %arg1: i32) -> (i32, i32) {
    %c0_i32 = arith.constant 0 : i32
    %c0_i32_0 = arith.constant 0 : i32
    %c0_i32_1 = arith.constant 0 : i32
    return %c0_i32, %c0_i32_0 : i32, i32
  }
  func.func @transform_4(%arg0: i32, %arg1: i32) -> (i32, i32) {
    %c0_i32 = arith.constant 0 : i32
    %c0_i32_0 = arith.constant 0 : i32
    %c0_i32_1 = arith.constant 0 : i32
    return %c0_i32, %c0_i32_0 : i32, i32
  }
  func.func @transform_5(%arg0: i32, %arg1: i32) -> (i32, i32) {
    %c0_i32 = arith.constant 0 : i32
    %c0_i32_0 = arith.constant 0 : i32
    %c0_i32_1 = arith.constant 0 : i32
    return %c0_i32, %c0_i32_0 : i32, i32
  }
  func.func @transform_6(%arg0: i32, %arg1: i32) -> (i32, i32) {
    %c0_i32 = arith.constant 0 : i32
    %c0_i32_0 = arith.constant 0 : i32
    %c0_i32_1 = arith.constant 0 : i32
    return %c0_i32, %c0_i32_0 : i32, i32
  }
  func.func @transform_7(%arg0: i32, %arg1: i32) -> (i32, i32, i32, i32) {
    %c0_i32 = arith.constant 0 : i32
    %c0_i32_0 = arith.constant 0 : i32
    %c0_i32_1 = arith.constant 0 : i32
    return %arg0, %arg1, %c0_i32, %c0_i32_0 : i32, i32, i32, i32
  }
}

</mosaic_0001>

<llo_original>
// kernel: dbhead_forward.1
$region0: #{dbhead_forward.1}
  #allocation0 [shape = 'u32[]', space=smem, size = 0x4, offset = 0x4, fixed_abs, tag = 'smem constant byte address 0x4 - core index']
  #allocation1 [shape = 'u32[144,128]{1,0:T(1,128)}', space=vmem, size = 0x12000, scoped, tag = 'internal scratch']
  #allocation2 [shape = 'f32[128,8]{1,0:T(8,128)}', space=vmem, size = 0x10000, scoped, tag = 'scratch operand']
  %s0 = inlined_call_operand.vmem [shape: bf16[2,2,10,18,16], index: 0, kind: input, shape index: {}]
  %s1 = inlined_call_operand.vmem [shape: bf16[9,16,8], index: 1, kind: input, shape index: {}]
  %s2 = inlined_call_operand.hbm [shape: f32[1,8], index: 2, kind: input, shape index: {}]
  %s3 = inlined_call_operand.hbm [shape: bf16[8,32], index: 3, kind: input, shape index: {}]
  %s4 = inlined_call_operand.hbm [shape: f32[1,32], index: 4, kind: input, shape index: {}]
  %s5 = inlined_call_operand.hbm [shape: bf16[32,32], index: 5, kind: input, shape index: {}]
  %s6 = inlined_call_operand.hbm [shape: f32[1,32], index: 6, kind: input, shape index: {}]
  %s7 = inlined_call_operand.vmem [shape: f32[2,2,48,128], index: 7, kind: output, shape index: {}]
  %s8 = sld [smem:[#allocation0]]
  $region81: #{dbhead_forward.1} parent=0
    _
  %s10 = ssub.s32 1, %s8
  %s11 = scalar_select 0, %s10, %s8
  $region1: #{dbhead_forward.1} parent=0
    #allocation3 [shape = 'u8[512]{0}', space=vmem, size = 0x400, scoped, tag = 'input window, operand 2, single buffered']
    #allocation4 [shape = 's32[2]{0}', space=sflag, size = 0x8, scoped, tag = 'scoped memory for dbhead_forward.1']
    #allocation5 [shape = 'u8[2048]{0}', space=vmem, size = 0x800, scoped, tag = 'input window, operand 3, single buffered']
    #allocation6 [shape = 's32[1]{0}', space=sflag, size = 0x4, scoped, tag = 'scoped memory for dbhead_forward.1']
    #allocation7 [shape = 'u8[512]{0}', space=vmem, size = 0x400, scoped, tag = 'input window, operand 4, single buffered']
    #allocation8 [shape = 'u8[8192]{0}', space=vmem, size = 0x2000, scoped, tag = 'input window, operand 5, single buffered']
    #allocation9 [shape = 's32[1]{0}', space=sflag, size = 0x4, scoped, tag = 'scoped memory for dbhead_forward.1']
    #allocation10 [shape = 'u8[512]{0}', space=vmem, size = 0x400, scoped, tag = 'input window, operand 6, single buffered']
    %12 = vsyncpa [#allocation4], 0
    %13 = vsyncpa [#allocation6], 0
    %14 = vsyncpa [#allocation9], 0
    loop: start=0, step=1, limit=6
    $region2: #{dbhead_forward.1} parent=1 // loop_pre_header
      _
    $region3: #{dbhead_forward.1} parent=1 // loop_header
      %s16 = sphi 0, %s20
      %p17 = scmp.ge.s32.totalorder %s16, 6
      %s23 = sphi 0, %s35
      %s24 = sphi 0, %s31
      %s25 = sphi 0, %s23
      %s26 = sphi 0, %s24
      %s27 = sphi 0, %s25
      %s28 = sphi 0, %s26
      %s40 = sphi 0, %s42
      %s43 = sphi 0, %s40
      %s44 = sphi 0, %s43
      %s60 = sphi 0, %s44
      %s64 = sphi 0, %s64
      %s66 = sphi 0, %s64
      %s67 = sphi 0, %s66
      %s81 = sphi 0, %s67
      %s85 = sphi 0, %s85
      %s87 = sphi 0, %s85
      %s88 = sphi 0, %s87
      %s102 = sphi 0, %s88
      %s106 = sphi 0, %s106
      %s108 = sphi 0, %s106
      %s109 = sphi 0, %s108
      %s123 = sphi 0, %s109
      %s127 = sphi 0, %s127
      %s129 = sphi 0, %s127
      %s130 = sphi 0, %s129
      %s144 = sphi 0, %s130
      %s148 = sphi 0, %s148
      %s150 = sphi 0, %s148
      %s151 = sphi 0, %s150
      %s165 = sphi 0, %s151
      %s169 = sphi 0, %s169
      %s171 = sphi 0, %s169
      %s172 = sphi 0, %s171
      %s186 = sphi 0, %s172
      %s194 = sphi 0, %s196
      %s197 = sphi 0, %s194
      %s198 = sphi 0, %s197
      %s214 = sphi 0, %s198
    $region4: #{dbhead_forward.1} parent=1 // loop_header_branch
      %19 = sbr.rel (%p17) target = $region8
    $region5: #{dbhead_forward.1} parent=1 // loop_body
      %s21 = ssub.s32 %s16, 1
      %s22 = ssub.s32 %s16, 2
      %s29 = sadd.s32 1, %s24
      %p30 = scmp.ge.s32.totalorder %s29, 2
      %s31 = scalar_select %p30, 0, %s29
      %s32 = sadd.s32 1, %s23
      %s33 = scalar_select %p30, %s32, %s23
      %p34 = scmp.ge.s32.totalorder %s33, 2
      %s35 = scalar_select %p34, 0, %s33
      %s36 = ssub.s32 %s23, %s35
      %s37 = ssub.s32 %s24, %s31
      %s38 = sor.u32 %s36, %s37
      %p39 = scmp.eq.s32.totalorder %s38, 0
      %s41 = sadd.s32 %s40, 1
      %s42 = scalar_select %p39, %s40, %s41
      %p45 = pneg %p39
      %p46 = scmp.eq.s32.totalorder %s16, 3
      %p47 = por %p45, %p46
      %p48 = scmp.ne.s32.totalorder %s40, %s43
      %p49 = scmp.eq.s32.totalorder %s16, 0
      %p50 = por %p48, %p49
      %p51 = scmp.ne.s32.totalorder %s40, %s43
      %p52 = scmp.eq.s32.totalorder %s21, 3
      %p53 = por %p51, %p52
      %p54 = scmp.ne.s32.totalorder %s43, %s44
      %p55 = scmp.eq.s32.totalorder %s21, 0
      %p56 = por %p54, %p55
      %p57 = scmp.ne.s32.totalorder %s43, %s44
      %p58 = scmp.eq.s32.totalorder %s22, 3
      %p59 = por %p57, %p58
      %p61 = scmp.ne.s32.totalorder %s44, %s60
      %p62 = scmp.eq.s32.totalorder %s22, 0
      %p63 = por %p61, %p62
      %s65 = sadd.s32 %s64, 1
      %p68 = scmp.eq.s32.totalorder %s16, 3
      %p69 = scmp.ne.s32.totalorder %s64, %s66
      %p70 = scmp.eq.s32.totalorder %s16, 0
      %p71 = por %p69, %p70
      %p72 = scmp.ne.s32.totalorder %s64, %s66
      %p73 = scmp.eq.s32.totalorder %s21, 3
      %p74 = por %p72, %p73
      %p75 = scmp.ne.s32.totalorder %s66, %s67
      %p76 = scmp.eq.s32.totalorder %s21, 0
      %p77 = por %p75, %p76
      %p78 = scmp.ne.s32.totalorder %s66, %s67
      %p79 = scmp.eq.s32.totalorder %s22, 3
      %p80 = por %p78, %p79
      %p82 = scmp.ne.s32.totalorder %s67, %s81
      %p83 = scmp.eq.s32.totalorder %s22, 0
      %p84 = por %p82, %p83
      %s86 = sadd.s32 %s85, 1
      %p89 = scmp.eq.s32.totalorder %s16, 3
      %p90 = scmp.ne.s32.totalorder %s85, %s87
      %p91 = scmp.eq.s32.totalorder %s16, 0
      %p92 = por %p90, %p91
      %p93 = scmp.ne.s32.totalorder %s85, %s87
      %p94 = scmp.eq.s32.totalorder %s21, 3
      %p95 = por %p93, %p94
      %p96 = scmp.ne.s32.totalorder %s87, %s88
      %p97 = scmp.eq.s32.totalorder %s21, 0
      %p98 = por %p96, %p97
      %p99 = scmp.ne.s32.totalorder %s87, %s88
      %p100 = scmp.eq.s32.totalorder %s22, 3
      %p101 = por %p99, %p100
      %p103 = scmp.ne.s32.totalorder %s88, %s102
      %p104 = scmp.eq.s32.totalorder %s22, 0
      %p105 = por %p103, %p104
      %s107 = sadd.s32 %s106, 1
      %p110 = scmp.eq.s32.totalorder %s16, 3
      %p111 = scmp.ne.s32.totalorder %s106, %s108
      %p112 = scmp.eq.s32.totalorder %s16, 0
      %p113 = por %p111, %p112
      %p114 = scmp.ne.s32.totalorder %s106, %s108
      %p115 = scmp.eq.s32.totalorder %s21, 3
      %p116 = por %p114, %p115
      %p117 = scmp.ne.s32.totalorder %s108, %s109
      %p118 = scmp.eq.s32.totalorder %s21, 0
      %p119 = por %p117, %p118
      %p120 = scmp.ne.s32.totalorder %s108, %s109
      %p121 = scmp.eq.s32.totalorder %s22, 3
      %p122 = por %p120, %p121
      %p124 = scmp.ne.s32.totalorder %s109, %s123
      %p125 = scmp.eq.s32.totalorder %s22, 0
      %p126 = por %p124, %p125
      %s128 = sadd.s32 %s127, 1
      %p131 = scmp.eq.s32.totalorder %s16, 3
      %p132 = scmp.ne.s32.totalorder %s127, %s129
      %p133 = scmp.eq.s32.totalorder %s16, 0
      %p134 = por %p132, %p133
      %p135 = scmp.ne.s32.totalorder %s127, %s129
      %p136 = scmp.eq.s32.totalorder %s21, 3
      %p137 = por %p135, %p136
      %p138 = scmp.ne.s32.totalorder %s129, %s130
      %p139 = scmp.eq.s32.totalorder %s21, 0
      %p140 = por %p138, %p139
      %p141 = scmp.ne.s32.totalorder %s129, %s130
      %p142 = scmp.eq.s32.totalorder %s22, 3
      %p143 = por %p141, %p142
      %p145 = scmp.ne.s32.totalorder %s130, %s144
      %p146 = scmp.eq.s32.totalorder %s22, 0
      %p147 = por %p145, %p146
      %s149 = sadd.s32 %s148, 1
      %p152 = scmp.eq.s32.totalorder %s16, 3
      %p153 = scmp.ne.s32.totalorder %s148, %s150
      %p154 = scmp.eq.s32.totalorder %s16, 0
      %p155 = por %p153, %p154
      %p156 = scmp.ne.s32.totalorder %s148, %s150
      %p157 = scmp.eq.s32.totalorder %s21, 3
      %p158 = por %p156, %p157
      %p159 = scmp.ne.s32.totalorder %s150, %s151
      %p160 = scmp.eq.s32.totalorder %s21, 0
      %p161 = por %p159, %p160
      %p162 = scmp.ne.s32.totalorder %s150, %s151
      %p163 = scmp.eq.s32.totalorder %s22, 3
      %p164 = por %p162, %p163
      %p166 = scmp.ne.s32.totalorder %s151, %s165
      %p167 = scmp.eq.s32.totalorder %s22, 0
      %p168 = por %p166, %p167
      %s170 = sadd.s32 %s169, 1
      %p173 = scmp.eq.s32.totalorder %s16, 3
      %p174 = scmp.ne.s32.totalorder %s169, %s171
      %p175 = scmp.eq.s32.totalorder %s16, 0
      %p176 = por %p174, %p175
      %p177 = scmp.ne.s32.totalorder %s169, %s171
      %p178 = scmp.eq.s32.totalorder %s21, 3
      %p179 = por %p177, %p178
      %p180 = scmp.ne.s32.totalorder %s171, %s172
      %p181 = scmp.eq.s32.totalorder %s21, 0
      %p182 = por %p180, %p181
      %p183 = scmp.ne.s32.totalorder %s171, %s172
      %p184 = scmp.eq.s32.totalorder %s22, 3
      %p185 = por %p183, %p184
      %p187 = scmp.ne.s32.totalorder %s172, %s186
      %p188 = scmp.eq.s32.totalorder %s22, 0
      %p189 = por %p187, %p188
      %s190 = ssub.s32 %s23, %s35
      %s191 = ssub.s32 %s24, %s31
      %s192 = sor.u32 %s190, %s191
      %p193 = scmp.eq.s32.totalorder %s192, 0
      %s195 = sadd.s32 %s194, 1
      %s196 = scalar_select %p193, %s194, %s195
      %p199 = pneg %p193
      %p200 = scmp.eq.s32.totalorder %s16, 3
      %p201 = por %p199, %p200
      %p202 = scmp.ne.s32.totalorder %s194, %s197
      %p203 = scmp.eq.s32.totalorder %s16, 0
      %p204 = por %p202, %p203
      %p205 = scmp.ne.s32.totalorder %s194, %s197
      %p206 = scmp.eq.s32.totalorder %s21, 3
      %p207 = por %p205, %p206
      %p208 = scmp.ne.s32.totalorder %s197, %s198
      %p209 = scmp.eq.s32.totalorder %s21, 0
      %p210 = por %p208, %p209
      %p211 = scmp.ne.s32.totalorder %s197, %s198
      %p212 = scmp.eq.s32.totalorder %s22, 3
      %p213 = por %p211, %p212
      %p215 = scmp.ne.s32.totalorder %s198, %s214
      %p216 = scmp.eq.s32.totalorder %s22, 0
      %p217 = por %p215, %p216
      %p218 = scmp.le.s32.totalorder 1, %s16
      %p219 = scmp.lt.s32.totalorder %s16, 5
      %p220 = pnand %p218, %p219
      %p221 = pneg %p220
      // Predicated region
      $region9: #{dbhead_forward.1} parent=5 // pred_check
        _
      $region10: #{dbhead_forward.1} parent=5 // pred_check_branch
        %223 = sbr.rel (%p220) target = $region12
      $region11: #{dbhead_forward.1} parent=5 // pred_region
        %s224 = ssub.s32 %s16, 1
        // Predicated region
        $region13: #{dbhead_forward.1} parent=11 // pred_check
          %p225 = pneg %p77
        $region14: #{dbhead_forward.1} parent=11 // pred_check_branch
          %227 = sbr.rel (%p225) target = $region16
        $region15: #{dbhead_forward.1} parent=11 // pred_region
          _
        $region16: #{dbhead_forward.1} parent=11 // pred_fallthru
          _
        // Predicated region
        $region17: #{dbhead_forward.1} parent=11 // pred_check
          %p228 = pneg %p98
        $region18: #{dbhead_forward.1} parent=11 // pred_check_branch
          %230 = sbr.rel (%p228) target = $region20
        $region19: #{dbhead_forward.1} parent=11 // pred_region
          %s232 = ssub.s32 16, 16
          %233 = vsyncadd [#allocation4], %s232
          %s235 = sshll.u32 [#allocation3], 4
          %s236 = int_to_ptr.vmem [resolvable:$true] %s235
          %238 = dma.hbm_to_vmem [thread:$0]  %s2, 16, %s236, [#allocation4]
        $region20: #{dbhead_forward.1} parent=11 // pred_fallthru
          _
        // Predicated region
        $region21: #{dbhead_forward.1} parent=11 // pred_check
          %p239 = pneg %p119
        $region22: #{dbhead_forward.1} parent=11 // pred_check_branch
          %241 = sbr.rel (%p239) target = $region24
        $region23: #{dbhead_forward.1} parent=11 // pred_region
          %s243 = ssub.s32 64, 64
          %244 = vsyncadd [#allocation6], %s243
          %s246 = sshll.u32 [#allocation5], 4
          %s247 = int_to_ptr.vmem [resolvable:$true] %s246
          %249 = dma.hbm_to_vmem [thread:$0]  %s3, 64, %s247, [#allocation6]
        $region24: #{dbhead_forward.1} parent=11 // pred_fallthru
          _
        // Predicated region
        $region25: #{dbhead_forward.1} parent=11 // pred_check
          %p250 = pneg %p140
        $region26: #{dbhead_forward.1} parent=11 // pred_check_branch
          %252 = sbr.rel (%p250) target = $region28
        $region27: #{dbhead_forward.1} parent=11 // pred_region
          %s254 = ssub.s32 16, 16
          %255 = vsyncadd [#allocation6], %s254
          %s257 = sshll.u32 [#allocation7], 4
          %s258 = int_to_ptr.vmem [resolvable:$true] %s257
          %260 = dma.hbm_to_vmem [thread:$0]  %s4, 16, %s258, [#allocation6]
        $region28: #{dbhead_forward.1} parent=11 // pred_fallthru
          _
        // Predicated region
        $region29: #{dbhead_forward.1} parent=11 // pred_check
          %p261 = pneg %p161
        $region30: #{dbhead_forward.1} parent=11 // pred_check_branch
          %263 = sbr.rel (%p261) target = $region32
        $region31: #{dbhead_forward.1} parent=11 // pred_region
          %s265 = ssub.s32 256, 256
          %266 = vsyncadd [#allocation9], %s265
          %s267 = sshll.u32 [#allocation8], 4
          %s268 = int_to_ptr.vmem [resolvable:$true] %s267
          %273 = dma.hbm_to_vmem [thread:$0]  %s5, 256, %s268, [#allocation9], 64, 64, 4
        $region32: #{dbhead_forward.1} parent=11 // pred_fallthru
          _
        // Predicated region
        $region33: #{dbhead_forward.1} parent=11 // pred_check
          %p274 = pneg %p182
        $region34: #{dbhead_forward.1} parent=11 // pred_check_branch
          %276 = sbr.rel (%p274) target = $region36
        $region35: #{dbhead_forward.1} parent=11 // pred_region
          %s278 = ssub.s32 16, 16
          %279 = vsyncadd [#allocation9], %s278
          %s281 = sshll.u32 [#allocation10], 4
          %s282 = int_to_ptr.vmem [resolvable:$true] %s281
          %284 = dma.hbm_to_vmem [thread:$0]  %s6, 16, %s282, [#allocation9]
        $region36: #{dbhead_forward.1} parent=11 // pred_fallthru
          _
      $region12: #{dbhead_forward.1} parent=5 // pred_fallthru
        _
      %p285 = scmp.lt.s32.totalorder %s16, 4
      // Predicated region
      $region37: #{dbhead_forward.1} parent=5 // pred_check
        %p286 = pneg %p285
      $region38: #{dbhead_forward.1} parent=5 // pred_check_branch
        %288 = sbr.rel (%p286) target = $region40
      $region39: #{dbhead_forward.1} parent=5 // pred_region
        // Predicated region
        $region41: #{dbhead_forward.1} parent=39 // pred_check
          %p289 = pneg %p50
        $region42: #{dbhead_forward.1} parent=39 // pred_check_branch
          %291 = sbr.rel (%p289) target = $region44
        $region43: #{dbhead_forward.1} parent=39 // pred_region
          %p292 = scmp.lt.s32.totalorder %s23, 1
          %s293 = scalar_select %p292, %s23, 1
          %p294 = scmp.lt.s32.totalorder %s24, 1
          %s295 = scalar_select %p294, %s24, 1
          %s296 = smul.addr %s295, 30
          %s297 = smul.addr %s293, 60
          %s298 = sadd.s32 %s296, %s297
          %s299 = smul.addr %s298, 4
          %s300 = scalar_lea.vmem %s0, %s299
        $region44: #{dbhead_forward.1} parent=39 // pred_fallthru
          _
      $region40: #{dbhead_forward.1} parent=5 // pred_fallthru
        _
      %p301 = scmp.le.s32.totalorder 1, %s16
      %p302 = scmp.lt.s32.totalorder %s16, 5
      %p303 = pnand %p301, %p302
      %p304 = pneg %p303
      // Predicated region
      $region45: #{dbhead_forward.1} parent=5 // pred_check
        _
      $region46: #{dbhead_forward.1} parent=5 // pred_check_branch
        %306 = sbr.rel (%p303) target = $region48
      $region47: #{dbhead_forward.1} parent=5 // pred_region
        %s307 = ssub.s32 %s16, 1
        // Predicated region
        $region49: #{dbhead_forward.1} parent=47 // pred_check
          %p308 = pneg %p98
        $region50: #{dbhead_forward.1} parent=47 // pred_check_branch
          %310 = sbr.rel (%p308) target = $region52
        $region51: #{dbhead_forward.1} parent=47 // pred_region
          %311 = dma.done [#allocation4], 16
        $region52: #{dbhead_forward.1} parent=47 // pred_fallthru
          _
        // Predicated region
        $region53: #{dbhead_forward.1} parent=47 // pred_check
          %p312 = pneg %p119
        $region54: #{dbhead_forward.1} parent=47 // pred_check_branch
          %314 = sbr.rel (%p312) target = $region56
        $region55: #{dbhead_forward.1} parent=47 // pred_region
          %315 = dma.done [#allocation6], 64
        $region56: #{dbhead_forward.1} parent=47 // pred_fallthru
          _
        // Predicated region
        $region57: #{dbhead_forward.1} parent=47 // pred_check
          %p316 = pneg %p140
        $region58: #{dbhead_forward.1} parent=47 // pred_check_branch
          %318 = sbr.rel (%p316) target = $region60
        $region59: #{dbhead_forward.1} parent=47 // pred_region
          %319 = dma.done [#allocation6], 16
        $region60: #{dbhead_forward.1} parent=47 // pred_fallthru
          _
        // Predicated region
        $region61: #{dbhead_forward.1} parent=47 // pred_check
          %p320 = pneg %p161
        $region62: #{dbhead_forward.1} parent=47 // pred_check_branch
          %322 = sbr.rel (%p320) target = $region64
        $region63: #{dbhead_forward.1} parent=47 // pred_region
          %323 = dma.done [#allocation9], 256
        $region64: #{dbhead_forward.1} parent=47 // pred_fallthru
          _
        // Predicated region
        $region65: #{dbhead_forward.1} parent=47 // pred_check
          %p324 = pneg %p182
        $region66: #{dbhead_forward.1} parent=47 // pred_check_branch
          %326 = sbr.rel (%p324) target = $region68
        $region67: #{dbhead_forward.1} parent=47 // pred_region
          %327 = dma.done [#allocation9], 16
        $region68: #{dbhead_forward.1} parent=47 // pred_fallthru
          _
        %p328 = scmp.lt.s32.totalorder %s25, 1
        %s329 = scalar_select %p328, %s25, 1
        %p330 = scmp.lt.s32.totalorder %s26, 1
        %s331 = scalar_select %p330, %s26, 1
        %s332 = smul.addr %s331, 30
        %s333 = smul.addr %s329, 60
        %s334 = sadd.s32 %s332, %s333
        %s335 = smul.addr %s334, 4
        %s336 = scalar_lea.vmem %s0, %s335
        %p337 = pneg %p56
        %p338 = pneg %p53
        %p339 = pneg %p77
        %p340 = pneg %p74
        %p341 = pneg %p98
        %p342 = pneg %p95
        %p343 = pneg %p119
        %p344 = pneg %p116
        %p345 = pneg %p140
        %p346 = pneg %p137
        %p347 = pneg %p161
        %p348 = pneg %p158
        %p349 = pneg %p182
        %p350 = pneg %p179
        %p351 = pneg %p210
        %p352 = pneg %p207
        %p353 = scmp.lt.s32.totalorder %s25, 1
        %s354 = scalar_select %p353, %s25, 1
        %p355 = scmp.lt.s32.totalorder %s26, 1
        %s356 = scalar_select %p355, %s26, 1
        %s357 = smul.addr %s356, 6
        %s358 = smul.addr %s354, 12
        %s359 = sadd.s32 %s357, %s358
        %s360 = smul.addr %s359, 8
        %s361 = scalar_lea.vmem %s7, %s360
        %p362 = scmp.lt.s32.totalorder %s25, 1
        %s363 = scalar_select %p362, %s25, 1
        %p364 = scmp.lt.s32.totalorder %s26, 1
        %s365 = scalar_select %p364, %s26, 1
        %s366 = smul.addr %s365, 30
        %s367 = smul.addr %s363, 60
        %s368 = sadd.s32 %s366, %s367
        %s369 = smul.addr %s368, 4
        %s370 = scalar_lea.vmem %s0, %s369
        %p371 = scmp.lt.s32.totalorder %s25, 1
        %s372 = scalar_select %p371, %s25, 1
        %p373 = scmp.lt.s32.totalorder %s26, 1
        %s374 = scalar_select %p373, %s26, 1
        %s375 = smul.addr %s374, 6
        %s376 = smul.addr %s372, 12
        %s377 = sadd.s32 %s375, %s376
        %s378 = smul.addr %s377, 8
        %s379 = scalar_lea.vmem %s7, %s378
        %v381 = vld [vmem:[%s370] sm:$0xf]
        %v382 = vld [vmem:[%s370 + $0x4] sm:$0xf]
        %v383 = vld [vmem:[%s370 + $0xc] sm:$0xf]
        %v384 = vld [vmem:[%s370 + $0x10] sm:$0xf]
        %v385 = vld [vmem:[%s370 + $0x18] sm:$0xf]
        %v386 = vld [vmem:[%s370 + $0x1c] sm:$0xf]
        %v387 = vld [vmem:[%s370 + $0x24] sm:$0xf]
        %v388 = vld [vmem:[%s370 + $0x28] sm:$0xf]
        %v389 = vld [vmem:[%s370 + $0x30] sm:$0xf]
        %v390 = vld [vmem:[%s370 + $0x34] sm:$0xf]
        %v391 = vld [vmem:[%s370 + $0x3c] sm:$0xf]
        %v392 = vld [vmem:[%s370 + $0x40] sm:$0xf]
        %v393 = vld [vmem:[%s370 + $0x48] sm:$0xf]
        %v394 = vld [vmem:[%s370 + $0x4c] sm:$0xf]
        %v395 = vld [vmem:[%s370 + $0x54] sm:$0xf]
        %v396 = vld [vmem:[%s370 + $0x58] sm:$0xf]
        %v397 = vld [vmem:[%s1] sm:$0xf]
        %v398 = vld [vmem:[%s1 + $0x4] sm:$0xf]
        %v415 = vunpack.c.l.b16 %v381
        %v416 = vunpack.c.l.b16 %v382
        %v417 = vunpack.c.l.b16 %v383
        %v418 = vunpack.c.l.b16 %v384
        %v419 = vunpack.c.l.b16 %v385
        %v420 = vunpack.c.l.b16 %v386
        %v421 = vunpack.c.l.b16 %v387
        %v422 = vunpack.c.l.b16 %v388
        %v423 = vunpack.c.l.b16 %v389
        %v424 = vunpack.c.l.b16 %v390
        %v425 = vunpack.c.l.b16 %v391
        %v426 = vunpack.c.l.b16 %v392
        %v427 = vunpack.c.l.b16 %v393
        %v428 = vunpack.c.l.b16 %v394
        %v429 = vunpack.c.l.b16 %v395
        %v430 = vunpack.c.l.b16 %v396
        %v431 = vpack.c.b16 %v416, %v415
        %v432 = vpack.c.b16 %v418, %v417
        %v433 = vpack.c.b16 %v420, %v419
        %v434 = vpack.c.b16 %v422, %v421
        %v435 = vpack.c.b16 %v424, %v423
        %v436 = vpack.c.b16 %v426, %v425
        %v437 = vpack.c.b16 %v428, %v427
        %v438 = vpack.c.b16 %v430, %v429
        %v441 = vunpack.c.l.b16 %v397
        %v442 = vunpack.c.l.b16 %v398
        %v443 = vpack.c.b16 %v442, %v441
        %vm445 = vcmask 130048
        %v447 = vsel %vm445, %v431, 0
        %v450 = vsel %vm445, %v432, 0
        %v453 = vsel %vm445, %v433, 0
        %v456 = vsel %vm445, %v434, 0
        %v459 = vsel %vm445, %v435, 0
        %v462 = vsel %vm445, %v436, 0
        %v465 = vsel %vm445, %v437, 0
        %v468 = vsel %vm445, %v438, 0
        %470 = vmatprep.subr.bf16.mxu0 0
        %471 = vmatpush1.bf16.msra.mxu0 %v443
        %472 = vmatprep.subr.bf16.mxu0 0
        %473 = vmatpush1.bf16.msra.mxu0 0
        %474 = vmatprep.subr.bf16.mxu0 0
        %475 = vmatpush1.bf16.msra.mxu0 0
        %476 = vmatprep.subr.bf16.mxu0 0
        %477 = vmatpush1.bf16.msra.mxu0 0
        %478 = vmatprep.subr.bf16.mxu0 0
        %479 = vmatpush1.bf16.msra.mxu0 0
        %480 = vmatprep.subr.bf16.mxu0 0
        %481 = vmatpush1.bf16.msra.mxu0 0
        %482 = vmatprep.subr.bf16.mxu0 0
        %483 = vmatpush1.bf16.msra.mxu0 0
        %484 = vmatprep.subr.bf16.mxu0 0
        %485 = vmatpush1.bf16.msra.mxu0 0
        %486 = vmatprep.subr.bf16.mxu0 0
        %487 = vmatpush1.bf16.msra.mxu0 0
        %488 = vmatprep.subr.bf16.mxu0 0
        %489 = vmatpush1.bf16.msra.mxu0 0
        %490 = vmatprep.subr.bf16.mxu0 0
        %491 = vmatpush1.bf16.msra.mxu0 0
        %492 = vmatprep.subr.bf16.mxu0 0
        %493 = vmatpush1.bf16.msra.mxu0 0
        %494 = vmatprep.subr.bf16.mxu0 0
        %495 = vmatpush1.bf16.msra.mxu0 0
        %496 = vmatprep.subr.bf16.mxu0 0
        %497 = vmatpush1.bf16.msra.mxu0 0
        %498 = vmatprep.subr.bf16.mxu0 0
        %499 = vmatpush1.bf16.msra.mxu0 0
        %500 = vmatprep.subr.bf16.mxu0 0
        %501 = vmatpush1.bf16.msra.mxu0 0
        %502 = vmatprep.mubr.bf16.mxu0 0
        %503 = vmatmul.mubr.bf16.gmra.mrb[0].mxu0 %v447
        %v504 = vpop.f32.mrb[0].mxu0
        %v505 = vadd.f32 0.0, %v504
        %v506 = vpop.f32.mrb[0].mxu0
        %v507 = vpop.f32.mrb[0].mxu0
        %v508 = vadd.f32 0.0, %v507
        %v509 = vpop.f32.mrb[0].mxu0
        %510 = vmatprep.mubr.bf16.mxu0 0
        %511 = vmatmul.mubr.bf16.gmra.mrb[0].mxu0 %v450
        %v512 = vpop.f32.mrb[0].mxu0
        %v513 = vadd.f32 0.0, %v512
        %v514 = vpop.f32.mrb[0].mxu0
        %v515 = vpop.f32.mrb[0].mxu0
        %v516 = vadd.f32 0.0, %v515
        %v517 = vpop.f32.mrb[0].mxu0
        %518 = vmatprep.mubr.bf16.mxu0 0
        %519 = vmatmul.mubr.bf16.gmra.mrb[0].mxu0 %v453
        %v520 = vpop.f32.mrb[0].mxu0
        %v521 = vadd.f32 0.0, %v520
        %v522 = vpop.f32.mrb[0].mxu0
        %v523 = vpop.f32.mrb[0].mxu0
        %v524 = vadd.f32 0.0, %v523
        %v525 = vpop.f32.mrb[0].mxu0
        %526 = vmatprep.mubr.bf16.mxu0 0
        %527 = vmatmul.mubr.bf16.gmra.mrb[0].mxu0 %v456
        %v528 = vpop.f32.mrb[0].mxu0
        %v529 = vadd.f32 0.0, %v528
        %v530 = vpop.f32.mrb[0].mxu0
        %v531 = vpop.f32.mrb[0].mxu0
        %v532 = vadd.f32 0.0, %v531
        %v533 = vpop.f32.mrb[0].mxu0
        %534 = vmatprep.mubr.bf16.mxu0 0
        %535 = vmatmul.mubr.bf16.gmra.mrb[0].mxu0 %v459
        %v536 = vpop.f32.mrb[0].mxu0
        %v537 = vadd.f32 0.0, %v536
        %v538 = vpop.f32.mrb[0].mxu0
        %v539 = vpop.f32.mrb[0].mxu0
        %v540 = vadd.f32 0.0, %v539
        %v541 = vpop.f32.mrb[0].mxu0
        %542 = vmatprep.mubr.bf16.mxu0 0
        %543 = vmatmul.mubr.bf16.gmra.mrb[0].mxu0 %v462
        %v544 = vpop.f32.mrb[0].mxu0
        %v545 = vadd.f32 0.0, %v544
        %v546 = vpop.f32.mrb[0].mxu0
        %v547 = vpop.f32.mrb[0].mxu0
        %v548 = vadd.f32 0.0, %v547
        %v549 = vpop.f32.mrb[0].mxu0
        %550 = vmatprep.mubr.bf16.mxu0 0
        %551 = vmatmul.mubr.bf16.gmra.mrb[0].mxu0 %v465
        %v552 = vpop.f32.mrb[0].mxu0
        %v553 = vadd.f32 0.0, %v552
        %v554 = vpop.f32.mrb[0].mxu0
        %v555 = vpop.f32.mrb[0].mxu0
        %v556 = vadd.f32 0.0, %v555
        %v557 = vpop.f32.mrb[0].mxu0
        %558 = vmatprep.mubr.bf16.mxu0 0
        %559 = vmatmul.mubr.bf16.gmra.mrb[0].mxu0 %v468
        %v560 = vpop.f32.mrb[0].mxu0
        %v561 = vadd.f32 0.0, %v560
        %v562 = vpop.f32.mrb[0].mxu0
        %v563 = vpop.f32.mrb[0].mxu0
        %v564 = vadd.f32 0.0, %v563
        %v565 = vpop.f32.mrb[0].mxu0
        %566 = vdwg.mxu0
        %vm567 = vcmask 64512
        %568 = vst.msk [vmem:[#allocation2] sm:$0xff] %vm567, %v505
        %569 = vst.msk [vmem:[#allocation2 + $0x8] sm:$0xff] %vm567, %v508
        %570 = vst.msk [vmem:[#allocation2 + $0x10] sm:$0xff] %vm567, %v513
        %571 = vst.msk [vmem:[#allocation2 + $0x18] sm:$0xff] %vm567, %v516
        %572 = vst.msk [vmem:[#allocation2 + $0x20] sm:$0xff] %vm567, %v521
        %573 = vst.msk [vmem:[#allocation2 + $0x28] sm:$0xff] %vm567, %v524
        %574 = vst.msk [vmem:[#allocation2 + $0x30] sm:$0xff] %vm567, %v529
        %575 = vst.msk [vmem:[#allocation2 + $0x38] sm:$0xff] %vm567, %v532
        %576 = vst.msk [vmem:[#allocation2 + $0x40] sm:$0xff] %vm567, %v537
        %577 = vst.msk [vmem:[#allocation2 + $0x48] sm:$0xff] %vm567, %v540
        %578 = vst.msk [vmem:[#allocation2 + $0x50] sm:$0xff] %vm567, %v545
        %579 = vst.msk [vmem:[#allocation2 + $0x58] sm:$0xff] %vm567, %v548
        %580 = vst.msk [vmem:[#allocation2 + $0x60] sm:$0xff] %vm567, %v553
        %581 = vst.msk [vmem:[#allocation2 + $0x68] sm:$0xff] %vm567, %v556
        %582 = vst.msk [vmem:[#allocation2 + $0x70] sm:$0xff] %vm567, %v561
        %583 = vst.msk [vmem:[#allocation2 + $0x78] sm:$0xff] %vm567, %v564
        %v584 = vld [vmem:[%s370] sm:$0xf]
        %v585 = vld [vmem:[%s370 + $0x4] sm:$0xf]
        %v586 = vld [vmem:[%s370 + $0x8] sm:$0x1]
        %v587 = vld [vmem:[%s370 + $0xc] sm:$0xf]
        %v588 = vld [vmem:[%s370 + $0x10] sm:$0xf]
        %v589 = vld [vmem:[%s370 + $0x14] sm:$0x1]
        %v590 = vld [vmem:[%s370 + $0x18] sm:$0xf]
        %v591 = vld [vmem:[%s370 + $0x1c] sm:$0xf]
        %v592 = vld [vmem:[%s370 + $0x20] sm:$0x1]
        %v593 = vld [vmem:[%s370 + $0x24] sm:$0xf]
        %v594 = vld [vmem:[%s370 + $0x28] sm:$0xf]
        %v595 = vld [vmem:[%s370 + $0x2c] sm:$0x1]
        %v596 = vld [vmem:[%s370 + $0x30] sm:$0xf]
        %v597 = vld [vmem:[%s370 + $0x34] sm:$0xf]
        %v598 = vld [vmem:[%s370 + $0x38] sm:$0x1]
        %v599 = vld [vmem:[%s370 + $0x3c] sm:$0xf]
        %v600 = vld [vmem:[%s370 + $0x40] sm:$0xf]
        %v601 = vld [vmem:[%s370 + $0x44] sm:$0x1]
        %v602 = vld [vmem:[%s370 + $0x48] sm:$0xf]
        %v603 = vld [vmem:[%s370 + $0x4c] sm:$0xf]
        %v604 = vld [vmem:[%s370 + $0x50] sm:$0x1]
        %v605 = vld [vmem:[%s370 + $0x54] sm:$0xf]
        %v606 = vld [vmem:[%s370 + $0x58] sm:$0xf]
        %v607 = vld [vmem:[%s370 + $0x5c] sm:$0x1]
        %vm608 = vsmask.f32 3328
        %vm609 = vsmask.f32 7440
        %vm610 = vmor %vm608, %vm609
        %v612 = vshrl.u32 %v584, 16
        %v614 = vrot.slane %v612, 4
        %v615 = vshll.u32 %v584, 16
        %v617 = vrot.slane %v615, 5
        %v618 = vor.u32 %v614, %v617
        %v619 = vrot.slane %v618, 4
        %v621 = vshll.u32 %v585, 16
        %v623 = vrot.slane %v621, 5
        %v624 = vsel %vm610, %v619, %v623
        %v625 = vshrl.u32 %v585, 16
        %v627 = vrot.slane %v625, 4
        %v628 = vor.u32 %v627, %v623
        %v629 = vrot.slane %v628, 4
        %v631 = vshll.u32 %v586, 16
        %v633 = vrot.slane %v631, 5
        %v634 = vsel %vm610, %v629, %v633
        %v636 = vshrl.u32 %v587, 16
        %v638 = vrot.slane %v636, 4
        %v639 = vshll.u32 %v587, 16
        %v641 = vrot.slane %v639, 5
        %v642 = vor.u32 %v638, %v641
        %v643 = vrot.slane %v642, 4
        %v645 = vshll.u32 %v588, 16
        %v647 = vrot.slane %v645, 5
        %v648 = vsel %vm610, %v643, %v647
        %v649 = vshrl.u32 %v588, 16
        %v651 = vrot.slane %v649, 4
        %v652 = vor.u32 %v651, %v647
        %v653 = vrot.slane %v652, 4
        %v655 = vshll.u32 %v589, 16
        %v657 = vrot.slane %v655, 5
        %v658 = vsel %vm610, %v653, %v657
        %v660 = vshrl.u32 %v590, 16
        %v662 = vrot.slane %v660, 4
        %v663 = vshll.u32 %v590, 16
        %v665 = vrot.slane %v663, 5
        %v666 = vor.u32 %v662, %v665
        %v667 = vrot.slane %v666, 4
        %v669 = vshll.u32 %v591, 16
        %v671 = vrot.slane %v669, 5
        %v672 = vsel %vm610, %v667, %v671
        %v673 = vshrl.u32 %v591, 16
        %v675 = vrot.slane %v673, 4
        %v676 = vor.u32 %v675, %v671
        %v677 = vrot.slane %v676, 4
        %v679 = vshll.u32 %v592, 16
        %v681 = vrot.slane %v679, 5
        %v682 = vsel %vm610, %v677, %v681
        %v684 = vshrl.u32 %v593, 16
        %v686 = vrot.slane %v684, 4
        %v687 = vshll.u32 %v593, 16
        %v689 = vrot.slane %v687, 5
        %v690 = vor.u32 %v686, %v689
        %v691 = vrot.slane %v690, 4
        %v693 = vshll.u32 %v594, 16
        %v695 = vrot.slane %v693, 5
        %v696 = vsel %vm610, %v691, %v695
        %v697 = vshrl.u32 %v594, 16
        %v699 = vrot.slane %v697, 4
        %v700 = vor.u32 %v699, %v695
        %v701 = vrot.slane %v700, 4
        %v703 = vshll.u32 %v595, 16
        %v705 = vrot.slane %v703, 5
        %v706 = vsel %vm610, %v701, %v705
        %v708 = vshrl.u32 %v596, 16
        %v710 = vrot.slane %v708, 4
        %v711 = vshll.u32 %v596, 16
        %v713 = vrot.slane %v711, 5
        %v714 = vor.u32 %v710, %v713
        %v715 = vrot.slane %v714, 4
        %v717 = vshll.u32 %v597, 16
        %v719 = vrot.slane %v717, 5
        %v720 = vsel %vm610, %v715, %v719
        %v721 = vshrl.u32 %v597, 16
        %v723 = vrot.slane %v721, 4
        %v724 = vor.u32 %v723, %v719
        %v725 = vrot.slane %v724, 4
        %v727 = vshll.u32 %v598, 16
        %v729 = vrot.slane %v727, 5
        %v730 = vsel %vm610, %v725, %v729
        %v732 = vshrl.u32 %v599, 16
        %v734 = vrot.slane %v732, 4
        %v735 = vshll.u32 %v599, 16
        %v737 = vrot.slane %v735, 5
        %v738 = vor.u32 %v734, %v737
        %v739 = vrot.slane %v738, 4
        %v741 = vshll.u32 %v600, 16
        %v743 = vrot.slane %v741, 5
        %v744 = vsel %vm610, %v739, %v743
        %v745 = vshrl.u32 %v600, 16
        %v747 = vrot.slane %v745, 4
        %v748 = vor.u32 %v747, %v743
        %v749 = vrot.slane %v748, 4
        %v751 = vshll.u32 %v601, 16
        %v753 = vrot.slane %v751, 5
        %v754 = vsel %vm610, %v749, %v753
        %v756 = vshrl.u32 %v602, 16
        %v758 = vrot.slane %v756, 4
        %v759 = vshll.u32 %v602, 16
        %v761 = vrot.slane %v759, 5
        %v762 = vor.u32 %v758, %v761
        %v763 = vrot.slane %v762, 4
        %v765 = vshll.u32 %v603, 16
        %v767 = vrot.slane %v765, 5
        %v768 = vsel %vm610, %v763, %v767
        %v769 = vshrl.u32 %v603, 16
        %v771 = vrot.slane %v769, 4
        %v772 = vor.u32 %v771, %v767
        %v773 = vrot.slane %v772, 4
        %v775 = vshll.u32 %v604, 16
        %v777 = vrot.slane %v775, 5
        %v778 = vsel %vm610, %v773, %v777
        %v780 = vshrl.u32 %v605, 16
        %v782 = vrot.slane %v780, 4
        %v783 = vshll.u32 %v605, 16
        %v785 = vrot.slane %v783, 5
        %v786 = vor.u32 %v782, %v785
        %v787 = vrot.slane %v786, 4
        %v789 = vshll.u32 %v606, 16
        %v791 = vrot.slane %v789, 5
        %v792 = vsel %vm610, %v787, %v791
        %v793 = vshrl.u32 %v606, 16
        %v795 = vrot.slane %v793, 4
        %v796 = vor.u32 %v795, %v791
        %v797 = vrot.slane %v796, 4
        %v799 = vshll.u32 %v607, 16
        %v801 = vrot.slane %v799, 5
        %v802 = vsel %vm610, %v797, %v801
        %s803 = scalar_lea.vmem %s1, 8
        %v804 = vld [vmem:[%s803] sm:$0xf]
        %v805 = vld [vmem:[%s803 + $0x4] sm:$0xf]
        %v806 = vunpack.c.l.b16 %v624
        %v807 = vunpack.c.l.b16 %v634
        %v808 = vunpack.c.l.b16 %v648
        %v809 = vunpack.c.l.b16 %v658
        %v810 = vunpack.c.l.b16 %v672
        %v811 = vunpack.c.l.b16 %v682
        %v812 = vunpack.c.l.b16 %v696
        %v813 = vunpack.c.l.b16 %v706
        %v814 = vunpack.c.l.b16 %v720
        %v815 = vunpack.c.l.b16 %v730
        %v816 = vunpack.c.l.b16 %v744
        %v817 = vunpack.c.l.b16 %v754
        %v818 = vunpack.c.l.b16 %v768
        %v819 = vunpack.c.l.b16 %v778
        %v820 = vunpack.c.l.b16 %v792
        %v821 = vunpack.c.l.b16 %v802
        %v822 = vpack.c.b16 %v807, %v806
        %v823 = vpack.c.b16 %v809, %v808
        %v824 = vpack.c.b16 %v811, %v810
        %v825 = vpack.c.b16 %v813, %v812
        %v826 = vpack.c.b16 %v815, %v814
        %v827 = vpack.c.b16 %v817, %v816
        %v828 = vpack.c.b16 %v819, %v818
        %v829 = vpack.c.b16 %v821, %v820
        %v832 = vunpack.c.l.b16 %v804
        %v833 = vunpack.c.l.b16 %v805
        %v834 = vpack.c.b16 %v833, %v832
        %v837 = vsel %vm445, %v822, 0
        %v840 = vsel %vm445, %v823, 0
        %v843 = vsel %vm445, %v824, 0
        %v846 = vsel %vm445, %v825, 0
        %v849 = vsel %vm445, %v826, 0
        %v852 = vsel %vm445, %v827, 0
        %v855 = vsel %vm445, %v828, 0
        %v858 = vsel %vm445, %v829, 0
        %860 = vmatprep.subr.bf16.mxu0 0
        %861 = vmatpush1.bf16.msra.mxu0 %v834
        %862 = vmatprep.subr.bf16.mxu0 0
        %863 = vmatpush1.bf16.msra.mxu0 0
        %864 = vmatprep.subr.bf16.mxu0 0
        %865 = vmatpush1.bf16.msra.mxu0 0
        %866 = vmatprep.subr.bf16.mxu0 0
        %867 = vmatpush1.bf16.msra.mxu0 0
        %868 = vmatprep.subr.bf16.mxu0 0
        %869 = vmatpush1.bf16.msra.mxu0 0
        %870 = vmatprep.subr.bf16.mxu0 0
        %871 = vmatpush1.bf16.msra.mxu0 0
        %872 = vmatprep.subr.bf16.mxu0 0
        %873 = vmatpush1.bf16.msra.mxu0 0
        %874 = vmatprep.subr.bf16.mxu0 0
        %875 = vmatpush1.bf16.msra.mxu0 0
        %876 = vmatprep.subr.bf16.mxu0 0
        %877 = vmatpush1.bf16.msra.mxu0 0
        %878 = vmatprep.subr.bf16.mxu0 0
        %879 = vmatpush1.bf16.msra.mxu0 0
        %880 = vmatprep.subr.bf16.mxu0 0
        %881 = vmatpush1.bf16.msra.mxu0 0
        %882 = vmatprep.subr.bf16.mxu0 0
        %883 = vmatpush1.bf16.msra.mxu0 0
        %884 = vmatprep.subr.bf16.mxu0 0
        %885 = vmatpush1.bf16.msra.mxu0 0
        %886 = vmatprep.subr.bf16.mxu0 0
        %887 = vmatpush1.bf16.msra.mxu0 0
        %888 = vmatprep.subr.bf16.mxu0 0
        %889 = vmatpush1.bf16.msra.mxu0 0
        %890 = vmatprep.subr.bf16.mxu0 0
        %891 = vmatpush1.bf16.msra.mxu0 0
        %892 = vmatprep.mubr.bf16.mxu0 0
        %893 = vmatmul.mubr.bf16.gmra.mrb[0].mxu0 %v837
        %v894 = vpop.f32.mrb[0].mxu0
        %v895 = vadd.f32 0.0, %v894
        %v896 = vpop.f32.mrb[0].mxu0
        %v897 = vpop.f32.mrb[0].mxu0
        %v898 = vadd.f32 0.0, %v897
        %v899 = vpop.f32.mrb[0].mxu0
        %900 = vmatprep.mubr.bf16.mxu0 0
        %901 = vmatmul.mubr.bf16.gmra.mrb[0].mxu0 %v840
        %v902 = vpop.f32.mrb[0].mxu0
        %v903 = vadd.f32 0.0, %v902
        %v904 = vpop.f32.mrb[0].mxu0
        %v905 = vpop.f32.mrb[0].mxu0
        %v906 = vadd.f32 0.0, %v905
        %v907 = vpop.f32.mrb[0].mxu0
        %908 = vmatprep.mubr.bf16.mxu0 0
        %909 = vmatmul.mubr.bf16.gmra.mrb[0].mxu0 %v843
        %v910 = vpop.f32.mrb[0].mxu0
        %v911 = vadd.f32 0.0, %v910
        %v912 = vpop.f32.mrb[0].mxu0
        %v913 = vpop.f32.mrb[0].mxu0
        %v914 = vadd.f32 0.0, %v913
        %v915 = vpop.f32.mrb[0].mxu0
        %916 = vmatprep.mubr.bf16.mxu0 0
        %917 = vmatmul.mubr.bf16.gmra.mrb[0].mxu0 %v846
        %v918 = vpop.f32.mrb[0].mxu0
        %v919 = vadd.f32 0.0, %v918
        %v920 = vpop.f32.mrb[0].mxu0
        %v921 = vpop.f32.mrb[0].mxu0
        %v922 = vadd.f32 0.0, %v921
        %v923 = vpop.f32.mrb[0].mxu0
        %924 = vmatprep.mubr.bf16.mxu0 0
        %925 = vmatmul.mubr.bf16.gmra.mrb[0].mxu0 %v849
        %v926 = vpop.f32.mrb[0].mxu0
        %v927 = vadd.f32 0.0, %v926
        %v928 = vpop.f32.mrb[0].mxu0
        %v929 = vpop.f32.mrb[0].mxu0
        %v930 = vadd.f32 0.0, %v929
        %v931 = vpop.f32.mrb[0].mxu0
        %932 = vmatprep.mubr.bf16.mxu0 0
        %933 = vmatmul.mubr.bf16.gmra.mrb[0].mxu0 %v852
        %v934 = vpop.f32.mrb[0].mxu0
        %v935 = vadd.f32 0.0, %v934
        %v936 = vpop.f32.mrb[0].mxu0
        %v937 = vpop.f32.mrb[0].mxu0
        %v938 = vadd.f32 0.0, %v937
        %v939 = vpop.f32.mrb[0].mxu0
        %940 = vmatprep.mubr.bf16.mxu0 0
        %941 = vmatmul.mubr.bf16.gmra.mrb[0].mxu0 %v855
        %v942 = vpop.f32.mrb[0].mxu0
        %v943 = vadd.f32 0.0, %v942
        %v944 = vpop.f32.mrb[0].mxu0
        %v945 = vpop.f32.mrb[0].mxu0
        %v946 = vadd.f32 0.0, %v945
        %v947 = vpop.f32.mrb[0].mxu0
        %948 = vmatprep.mubr.bf16.mxu0 0
        %949 = vmatmul.mubr.bf16.gmra.mrb[0].mxu0 %v858
        %v950 = vpop.f32.mrb[0].mxu0
        %v951 = vadd.f32 0.0, %v950
        %v952 = vpop.f32.mrb[0].mxu0
        %v953 = vpop.f32.mrb[0].mxu0
        %v954 = vadd.f32 0.0, %v953
        %v955 = vpop.f32.mrb[0].mxu0
        %956 = vdwg.mxu0
        %v957 = vld [vmem:[#allocation2] sm:$0xff]
        %v958 = vld [vmem:[#allocation2 + $0x8] sm:$0xff]
        %v959 = vld [vmem:[#allocation2 + $0x10] sm:$0xff]
        %v960 = vld [vmem:[#allocation2 + $0x18] sm:$0xff]
        %v961 = vld [vmem:[#allocation2 + $0x20] sm:$0xff]
        %v962 = vld [vmem:[#allocation2 + $0x28] sm:$0xff]
        %v963 = vld [vmem:[#allocation2 + $0x30] sm:$0xff]
        %v964 = vld [vmem:[#allocation2 + $0x38] sm:$0xff]
        %v965 = vld [vmem:[#allocation2 + $0x40] sm:$0xff]
        %v966 = vld [vmem:[#allocation2 + $0x48] sm:$0xff]
        %v967 = vld [vmem:[#allocation2 + $0x50] sm:$0xff]
        %v968 = vld [vmem:[#allocation2 + $0x58] sm:$0xff]
        %v969 = vld [vmem:[#allocation2 + $0x60] sm:$0xff]
        %v970 = vld [vmem:[#allocation2 + $0x68] sm:$0xff]
        %v971 = vld [vmem:[#allocation2 + $0x70] sm:$0xff]
        %v972 = vld [vmem:[#allocation2 + $0x78] sm:$0xff]
        %v973 = vadd.f32 %v957, %v895
        %v974 = vadd.f32 %v958, %v898
        %v975 = vadd.f32 %v959, %v903
        %v976 = vadd.f32 %v960, %v906
        %v977 = vadd.f32 %v961, %v911
        %v978 = vadd.f32 %v962, %v914
        %v979 = vadd.f32 %v963, %v919
        %v980 = vadd.f32 %v964, %v922
        %v981 = vadd.f32 %v965, %v927
        %v982 = vadd.f32 %v966, %v930
        %v983 = vadd.f32 %v967, %v935
        %v984 = vadd.f32 %v968, %v938
        %v985 = vadd.f32 %v969, %v943
        %v986 = vadd.f32 %v970, %v946
        %v987 = vadd.f32 %v971, %v951
        %v988 = vadd.f32 %v972, %v954
        %989 = vst.msk [vmem:[#allocation2] sm:$0xff] %vm567, %v973
        %990 = vst.msk [vmem:[#allocation2 + $0x8] sm:$0xff] %vm567, %v974
        %991 = vst.msk [vmem:[#allocation2 + $0x10] sm:$0xff] %vm567, %v975
        %992 = vst.msk [vmem:[#allocation2 + $0x18] sm:$0xff] %vm567, %v976
        %993 = vst.msk [vmem:[#allocation2 + $0x20] sm:$0xff] %vm567, %v977
        %994 = vst.msk [vmem:[#allocation2 + $0x28] sm:$0xff] %vm567, %v978
        %995 = vst.msk [vmem:[#allocation2 + $0x30] sm:$0xff] %vm567, %v979
        %996 = vst.msk [vmem:[#allocation2 + $0x38] sm:$0xff] %vm567, %v980
        %997 = vst.msk [vmem:[#allocation2 + $0x40] sm:$0xff] %vm567, %v981
        %998 = vst.msk [vmem:[#allocation2 + $0x48] sm:$0xff] %vm567, %v982
        %999 = vst.msk [vmem:[#allocation2 + $0x50] sm:$0xff] %vm567, %v983
        %1000 = vst.msk [vmem:[#allocation2 + $0x58] sm:$0xff] %vm567, %v984
        %1001 = vst.msk [vmem:[#allocation2 + $0x60] sm:$0xff] %vm567, %v985
        %1002 = vst.msk [vmem:[#allocation2 + $0x68] sm:$0xff] %vm567, %v986
        %1003 = vst.msk [vmem:[#allocation2 + $0x70] sm:$0xff] %vm567, %v987
        %1004 = vst.msk [vmem:[#allocation2 + $0x78] sm:$0xff] %vm567, %v988
        %v1005 = vld [vmem:[%s370] sm:$0xe]
        %v1006 = vld [vmem:[%s370 + $0x4] sm:$0xf]
        %v1007 = vld [vmem:[%s370 + $0x8] sm:$0x1]
        %v1008 = vld [vmem:[%s370 + $0xc] sm:$0xe]
        %v1009 = vld [vmem:[%s370 + $0x10] sm:$0xf]
        %v1010 = vld [vmem:[%s370 + $0x14] sm:$0x1]
        %v1011 = vld [vmem:[%s370 + $0x18] sm:$0xe]
        %v1012 = vld [vmem:[%s370 + $0x1c] sm:$0xf]
        %v1013 = vld [vmem:[%s370 + $0x20] sm:$0x1]
        %v1014 = vld [vmem:[%s370 + $0x24] sm:$0xe]
        %v1015 = vld [vmem:[%s370 + $0x28] sm:$0xf]
        %v1016 = vld [vmem:[%s370 + $0x2c] sm:$0x1]
        %v1017 = vld [vmem:[%s370 + $0x30] sm:$0xe]
        %v1018 = vld [vmem:[%s370 + $0x34] sm:$0xf]
        %v1019 = vld [vmem:[%s370 + $0x38] sm:$0x1]
        %v1020 = vld [vmem:[%s370 + $0x3c] sm:$0xe]
        %v1021 = vld [vmem:[%s370 + $0x40] sm:$0xf]
        %v1022 = vld [vmem:[%s370 + $0x44] sm:$0x1]
        %v1023 = vld [vmem:[%s370 + $0x48] sm:$0xe]
        %v1024 = vld [vmem:[%s370 + $0x4c] sm:$0xf]
        %v1025 = vld [vmem:[%s370 + $0x50] sm:$0x1]
        %v1026 = vld [vmem:[%s370 + $0x54] sm:$0xe]
        %v1027 = vld [vmem:[%s370 + $0x58] sm:$0xf]
        %v1028 = vld [vmem:[%s370 + $0x5c] sm:$0x1]
        %vm1053 = vcmask 1042432
        %vm1054 = vcmask 1046532
        %vm1055 = vmor %vm1053, %vm1054
        %v1056 = vrot.slane %v1005, 5
        %v1057 = vrot.slane %v1056, 4
        %v1058 = vrot.slane %v1006, 5
        %v1059 = vsel %vm1055, %v1057, %v1058
        %v1060 = vrot.slane %v1058, 4
        %v1061 = vrot.slane %v1007, 5
        %v1062 = vsel %vm1055, %v1060, %v1061
        %v1063 = vrot.slane %v1008, 5
        %v1064 = vrot.slane %v1063, 4
        %v1065 = vrot.slane %v1009, 5
        %v1066 = vsel %vm1055, %v1064, %v1065
        %v1067 = vrot.slane %v1065, 4
        %v1068 = vrot.slane %v1010, 5
        %v1069 = vsel %vm1055, %v1067, %v1068
        %v1070 = vrot.slane %v1011, 5
        %v1071 = vrot.slane %v1070, 4
        %v1072 = vrot.slane %v1012, 5
        %v1073 = vsel %vm1055, %v1071, %v1072
        %v1074 = vrot.slane %v1072, 4
        %v1075 = vrot.slane %v1013, 5
        %v1076 = vsel %vm1055, %v1074, %v1075
        %v1077 = vrot.slane %v1014, 5
        %v1078 = vrot.slane %v1077, 4
        %v1079 = vrot.slane %v1015, 5
        %v1080 = vsel %vm1055, %v1078, %v1079
        %v1081 = vrot.slane %v1079, 4
        %v1082 = vrot.slane %v1016, 5
        %v1083 = vsel %vm1055, %v1081, %v1082
        %v1084 = vrot.slane %v1017, 5
        %v1085 = vrot.slane %v1084, 4
        %v1086 = vrot.slane %v1018, 5
        %v1087 = vsel %vm1055, %v1085, %v1086
        %v1088 = vrot.slane %v1086, 4
        %v1089 = vrot.slane %v1019, 5
        %v1090 = vsel %vm1055, %v1088, %v1089
        %v1091 = vrot.slane %v1020, 5
        %v1092 = vrot.slane %v1091, 4
        %v1093 = vrot.slane %v1021, 5
        %v1094 = vsel %vm1055, %v1092, %v1093
        %v1095 = vrot.slane %v1093, 4
        %v1096 = vrot.slane %v1022, 5
        %v1097 = vsel %vm1055, %v1095, %v1096
        %v1098 = vrot.slane %v1023, 5
        %v1099 = vrot.slane %v1098, 4
        %v1100 = vrot.slane %v1024, 5
        %v1101 = vsel %vm1055, %v1099, %v1100
        %v1102 = vrot.slane %v1100, 4
        %v1103 = vrot.slane %v1025, 5
        %v1104 = vsel %vm1055, %v1102, %v1103
        %v1105 = vrot.slane %v1026, 5
        %v1106 = vrot.slane %v1105, 4
        %v1107 = vrot.slane %v1027, 5
        %v1108 = vsel %vm1055, %v1106, %v1107
        %v1109 = vrot.slane %v1107, 4
        %v1110 = vrot.slane %v1028, 5
        %v1111 = vsel %vm1055, %v1109, %v1110
        %s1112 = scalar_lea.vmem %s1, 16
        %v1113 = vld [vmem:[%s1112] sm:$0xf]
        %v1114 = vld [vmem:[%s1112 + $0x4] sm:$0xf]
        %v1115 = vunpack.c.l.b16 %v1059
        %v1116 = vunpack.c.l.b16 %v1062
        %v1117 = vunpack.c.l.b16 %v1066
        %v1118 = vunpack.c.l.b16 %v1069
        %v1119 = vunpack.c.l.b16 %v1073
        %v1120 = vunpack.c.l.b16 %v1076
        %v1121 = vunpack.c.l.b16 %v1080
        %v1122 = vunpack.c.l.b16 %v1083
        %v1123 = vunpack.c.l.b16 %v1087
        %v1124 = vunpack.c.l.b16 %v1090
        %v1125 = vunpack.c.l.b16 %v1094
        %v1126 = vunpack.c.l.b16 %v1097
        %v1127 = vunpack.c.l.b16 %v1101
        %v1128 = vunpack.c.l.b16 %v1104
        %v1129 = vunpack.c.l.b16 %v1108
        %v1130 = vunpack.c.l.b16 %v1111
        %v1131 = vpack.c.b16 %v1116, %v1115
        %v1132 = vpack.c.b16 %v1118, %v1117
        %v1133 = vpack.c.b16 %v1120, %v1119
        %v1134 = vpack.c.b16 %v1122, %v1121
        %v1135 = vpack.c.b16 %v1124, %v1123
        %v1136 = vpack.c.b16 %v1126, %v1125
        %v1137 = vpack.c.b16 %v1128, %v1127
        %v1138 = vpack.c.b16 %v1130, %v1129
        %v1141 = vunpack.c.l.b16 %v1113
        %v1142 = vunpack.c.l.b16 %v1114
        %v1143 = vpack.c.b16 %v1142, %v1141
        %v1146 = vsel %vm445, %v1131, 0
        %v1149 = vsel %vm445, %v1132, 0
        %v1152 = vsel %vm445, %v1133, 0
        %v1155 = vsel %vm445, %v1134, 0
        %v1158 = vsel %vm445, %v1135, 0
        %v1161 = vsel %vm445, %v1136, 0
        %v1164 = vsel %vm445, %v1137, 0
        %v1167 = vsel %vm445, %v1138, 0
        %1169 = vmatprep.subr.bf16.mxu0 0
        %1170 = vmatpush1.bf16.msra.mxu0 %v1143
        %1171 = vmatprep.subr.bf16.mxu0 0
        %1172 = vmatpush1.bf16.msra.mxu0 0
        %1173 = vmatprep.subr.bf16.mxu0 0
        %1174 = vmatpush1.bf16.msra.mxu0 0
        %1175 = vmatprep.subr.bf16.mxu0 0
        %1176 = vmatpush1.bf16.msra.mxu0 0
        %1177 = vmatprep.subr.bf16.mxu0 0
        %1178 = vmatpush1.bf16.msra.mxu0 0
        %1179 = vmatprep.subr.bf16.mxu0 0
        %1180 = vmatpush1.bf16.msra.mxu0 0
        %1181 = vmatprep.subr.bf16.mxu0 0
        %1182 = vmatpush1.bf16.msra.mxu0 0
        %1183 = vmatprep.subr.bf16.mxu0 0
        %1184 = vmatpush1.bf16.msra.mxu0 0
        %1185 = vmatprep.subr.bf16.mxu0 0
        %1186 = vmatpush1.bf16.msra.mxu0 0
        %1187 = vmatprep.subr.bf16.mxu0 0
        %1188 = vmatpush1.bf16.msra.mxu0 0
        %1189 = vmatprep.subr.bf16.mxu0 0
        %1190 = vmatpush1.bf16.msra.mxu0 0
        %1191 = vmatprep.subr.bf16.mxu0 0
        %1192 = vmatpush1.bf16.msra.mxu0 0
        %1193 = vmatprep.subr.bf16.mxu0 0
        %1194 = vmatpush1.bf16.msra.mxu0 0
        %1195 = vmatprep.subr.bf16.mxu0 0
        %1196 = vmatpush1.bf16.msra.mxu0 0
        %1197 = vmatprep.subr.bf16.mxu0 0
        %1198 = vmatpush1.bf16.msra.mxu0 0
        %1199 = vmatprep.subr.bf16.mxu0 0
        %1200 = vmatpush1.bf16.msra.mxu0 0
        %1201 = vmatprep.mubr.bf16.mxu0 0
        %1202 = vmatmul.mubr.bf16.gmra.mrb[0].mxu0 %v1146
        %v1203 = vpop.f32.mrb[0].mxu0
        %v1204 = vadd.f32 0.0, %v1203
        %v1205 = vpop.f32.mrb[0].mxu0
        %v1206 = vpop.f32.mrb[0].mxu0
        %v1207 = vadd.f32 0.0, %v1206
        %v1208 = vpop.f32.mrb[0].mxu0
        %1209 = vmatprep.mubr.bf16.mxu0 0
        %1210 = vmatmul.mubr.bf16.gmra.mrb[0].mxu0 %v1149
        %v1211 = vpop.f32.mrb[0].mxu0
        %v1212 = vadd.f32 0.0, %v1211
        %v1213 = vpop.f32.mrb[0].mxu0
        %v1214 = vpop.f32.mrb[0].mxu0
        %v1215 = vadd.f32 0.0, %v1214
        %v1216 = vpop.f32.mrb[0].mxu0
        %1217 = vmatprep.mubr.bf16.mxu0 0
        %1218 = vmatmul.mubr.bf16.gmra.mrb[0].mxu0 %v1152
        %v1219 = vpop.f32.mrb[0].mxu0
        %v1220 = vadd.f32 0.0, %v1219
        %v1221 = vpop.f32.mrb[0].mxu0
        %v1222 = vpop.f32.mrb[0].mxu0
        %v1223 = vadd.f32 0.0, %v1222
        %v1224 = vpop.f32.mrb[0].mxu0
        %1225 = vmatprep.mubr.bf16.mxu0 0
        %1226 = vmatmul.mubr.bf16.gmra.mrb[0].mxu0 %v1155
        %v1227 = vpop.f32.mrb[0].mxu0
        %v1228 = vadd.f32 0.0, %v1227
        %v1229 = vpop.f32.mrb[0].mxu0
        %v1230 = vpop.f32.mrb[0].mxu0
        %v1231 = vadd.f32 0.0, %v1230
        %v1232 = vpop.f32.mrb[0].mxu0
        %1233 = vmatprep.mubr.bf16.mxu0 0
        %1234 = vmatmul.mubr.bf16.gmra.mrb[0].mxu0 %v1158
        %v1235 = vpop.f32.mrb[0].mxu0
        %v1236 = vadd.f32 0.0, %v1235
        %v1237 = vpop.f32.mrb[0].mxu0
        %v1238 = vpop.f32.mrb[0].mxu0
        %v1239 = vadd.f32 0.0, %v1238
        %v1240 = vpop.f32.mrb[0].mxu0
        %1241 = vmatprep.mubr.bf16.mxu0 0
        %1242 = vmatmul.mubr.bf16.gmra.mrb[0].mxu0 %v1161
        %v1243 = vpop.f32.mrb[0].mxu0
        %v1244 = vadd.f32 0.0, %v1243
        %v1245 = vpop.f32.mrb[0].mxu0
        %v1246 = vpop.f32.mrb[0].mxu0
        %v1247 = vadd.f32 0.0, %v1246
        %v1248 = vpop.f32.mrb[0].mxu0
        %1249 = vmatprep.mubr.bf16.mxu0 0
        %1250 = vmatmul.mubr.bf16.gmra.mrb[0].mxu0 %v1164
        %v1251 = vpop.f32.mrb[0].mxu0
        %v1252 = vadd.f32 0.0, %v1251
        %v1253 = vpop.f32.mrb[0].mxu0
        %v1254 = vpop.f32.mrb[0].mxu0
        %v1255 = vadd.f32 0.0, %v1254
        %v1256 = vpop.f32.mrb[0].mxu0
        %1257 = vmatprep.mubr.bf16.mxu0 0
        %1258 = vmatmul.mubr.bf16.gmra.mrb[0].mxu0 %v1167
        %v1259 = vpop.f32.mrb[0].mxu0
        %v1260 = vadd.f32 0.0, %v1259
        %v1261 = vpop.f32.mrb[0].mxu0
        %v1262 = vpop.f32.mrb[0].mxu0
        %v1263 = vadd.f32 0.0, %v1262
        %v1264 = vpop.f32.mrb[0].mxu0
        %1265 = vdwg.mxu0
        %v1266 = vld [vmem:[#allocation2] sm:$0xff]
        %v1267 = vld [vmem:[#allocation2 + $0x8] sm:$0xff]
        %v1268 = vld [vmem:[#allocation2 + $0x10] sm:$0xff]
        %v1269 = vld [vmem:[#allocation2 + $0x18] sm:$0xff]
        %v1270 = vld [vmem:[#allocation2 + $0x20] sm:$0xff]
        %v1271 = vld [vmem:[#allocation2 + $0x28] sm:$0xff]
        %v1272 = vld [vmem:[#allocation2 + $0x30] sm:$0xff]
        %v1273 = vld [vmem:[#allocation2 + $0x38] sm:$0xff]
        %v1274 = vld [vmem:[#allocation2 + $0x40] sm:$0xff]
        %v1275 = vld [vmem:[#allocation2 + $0x48] sm:$0xff]
        %v1276 = vld [vmem:[#allocation2 + $0x50] sm:$0xff]
        %v1277 = vld [vmem:[#allocation2 + $0x58] sm:$0xff]
        %v1278 = vld [vmem:[#allocation2 + $0x60] sm:$0xff]
        %v1279 = vld [vmem:[#allocation2 + $0x68] sm:$0xff]
        %v1280 = vld [vmem:[#allocation2 + $0x70] sm:$0xff]
        %v1281 = vld [vmem:[#allocation2 + $0x78] sm:$0xff]
        %v1282 = vadd.f32 %v1266, %v1204
        %v1283 = vadd.f32 %v1267, %v1207
        %v1284 = vadd.f32 %v1268, %v1212
        %v1285 = vadd.f32 %v1269, %v1215
        %v1286 = vadd.f32 %v1270, %v1220
        %v1287 = vadd.f32 %v1271, %v1223
        %v1288 = vadd.f32 %v1272, %v1228
        %v1289 = vadd.f32 %v1273, %v1231
        %v1290 = vadd.f32 %v1274, %v1236
        %v1291 = vadd.f32 %v1275, %v1239
        %v1292 = vadd.f32 %v1276, %v1244
        %v1293 = vadd.f32 %v1277, %v1247
        %v1294 = vadd.f32 %v1278, %v1252
        %v1295 = vadd.f32 %v1279, %v1255
        %v1296 = vadd.f32 %v1280, %v1260
        %v1297 = vadd.f32 %v1281, %v1263
        %1298 = vst.msk [vmem:[#allocation2] sm:$0xff] %vm567, %v1282
        %1299 = vst.msk [vmem:[#allocation2 + $0x8] sm:$0xff] %vm567, %v1283
        %1300 = vst.msk [vmem:[#allocation2 + $0x10] sm:$0xff] %vm567, %v1284
        %1301 = vst.msk [vmem:[#allocation2 + $0x18] sm:$0xff] %vm567, %v1285
        %1302 = vst.msk [vmem:[#allocation2 + $0x20] sm:$0xff] %vm567, %v1286
        %1303 = vst.msk [vmem:[#allocation2 + $0x28] sm:$0xff] %vm567, %v1287
        %1304 = vst.msk [vmem:[#allocation2 + $0x30] sm:$0xff] %vm567, %v1288
        %1305 = vst.msk [vmem:[#allocation2 + $0x38] sm:$0xff] %vm567, %v1289
        %1306 = vst.msk [vmem:[#allocation2 + $0x40] sm:$0xff] %vm567, %v1290
        %1307 = vst.msk [vmem:[#allocation2 + $0x48] sm:$0xff] %vm567, %v1291
        %1308 = vst.msk [vmem:[#allocation2 + $0x50] sm:$0xff] %vm567, %v1292
        %1309 = vst.msk [vmem:[#allocation2 + $0x58] sm:$0xff] %vm567, %v1293
        %1310 = vst.msk [vmem:[#allocation2 + $0x60] sm:$0xff] %vm567, %v1294
        %1311 = vst.msk [vmem:[#allocation2 + $0x68] sm:$0xff] %vm567, %v1295
        %1312 = vst.msk [vmem:[#allocation2 + $0x70] sm:$0xff] %vm567, %v1296
        %1313 = vst.msk [vmem:[#allocation2 + $0x78] sm:$0xff] %vm567, %v1297
        %s1314 = scalar_lea.vmem %s370, 12
        %v1315 = vld [vmem:[%s1314] sm:$0xf]
        %v1316 = vld [vmem:[%s1314 + $0x4] sm:$0xf]
        %v1317 = vld [vmem:[%s1314 + $0xc] sm:$0xf]
        %v1318 = vld [vmem:[%s1314 + $0x10] sm:$0xf]
        %v1319 = vld [vmem:[%s1314 + $0x18] sm:$0xf]
        %v1320 = vld [vmem:[%s1314 + $0x1c] sm:$0xf]
        %v1321 = vld [vmem:[%s1314 + $0x24] sm:$0xf]
        %v1322 = vld [vmem:[%s1314 + $0x28] sm:$0xf]
        %v1323 = vld [vmem:[%s1314 + $0x30] sm:$0xf]
        %v1324 = vld [vmem:[%s1314 + $0x34] sm:$0xf]
        %v1325 = vld [vmem:[%s1314 + $0x3c] sm:$0xf]
        %v1326 = vld [vmem:[%s1314 + $0x40] sm:$0xf]
        %v1327 = vld [vmem:[%s1314 + $0x48] sm:$0xf]
        %v1328 = vld [vmem:[%s1314 + $0x4c] sm:$0xf]
        %v1329 = vld [vmem:[%s1314 + $0x54] sm:$0xf]
        %v1330 = vld [vmem:[%s1314 + $0x58] sm:$0xf]
        %s1331 = scalar_lea.vmem %s1, 24
        %v1332 = vld [vmem:[%s1331] sm:$0xf]
        %v1333 = vld [vmem:[%s1331 + $0x4] sm:$0xf]
        %v1350 = vunpack.c.l.b16 %v1315
        %v1351 = vunpack.c.l.b16 %v1316
        %v1352 = vunpack.c.l.b16 %v1317
        %v1353 = vunpack.c.l.b16 %v1318
        %v1354 = vunpack.c.l.b16 %v1319
        %v1355 = vunpack.c.l.b16 %v1320
        %v1356 = vunpack.c.l.b16 %v1321
        %v1357 = vunpack.c.l.b16 %v1322
        %v1358 = vunpack.c.l.b16 %v1323
        %v1359 = vunpack.c.l.b16 %v1324
        %v1360 = vunpack.c.l.b16 %v1325
        %v1361 = vunpack.c.l.b16 %v1326
        %v1362 = vunpack.c.l.b16 %v1327
        %v1363 = vunpack.c.l.b16 %v1328
        %v1364 = vunpack.c.l.b16 %v1329
        %v1365 = vunpack.c.l.b16 %v1330
        %v1366 = vpack.c.b16 %v1351, %v1350
        %v1367 = vpack.c.b16 %v1353, %v1352
        %v1368 = vpack.c.b16 %v1355, %v1354
        %v1369 = vpack.c.b16 %v1357, %v1356
        %v1370 = vpack.c.b16 %v1359, %v1358
        %v1371 = vpack.c.b16 %v1361, %v1360
        %v1372 = vpack.c.b16 %v1363, %v1362
        %v1373 = vpack.c.b16 %v1365, %v1364
        %v1376 = vunpack.c.l.b16 %v1332
        %v1377 = vunpack.c.l.b16 %v1333
        %v1378 = vpack.c.b16 %v1377, %v1376
        %v1381 = vsel %vm445, %v1366, 0
        %v1384 = vsel %vm445, %v1367, 0
        %v1387 = vsel %vm445, %v1368, 0
        %v1390 = vsel %vm445, %v1369, 0
        %v1393 = vsel %vm445, %v1370, 0
        %v1396 = vsel %vm445, %v1371, 0
        %v1399 = vsel %vm445, %v1372, 0
        %v1402 = vsel %vm445, %v1373, 0
        %1404 = vmatprep.subr.bf16.mxu0 0
        %1405 = vmatpush1.bf16.msra.mxu0 %v1378
        %1406 = vmatprep.subr.bf16.mxu0 0
        %1407 = vmatpush1.bf16.msra.mxu0 0
        %1408 = vmatprep.subr.bf16.mxu0 0
        %1409 = vmatpush1.bf16.msra.mxu0 0
        %1410 = vmatprep.subr.bf16.mxu0 0
        %1411 = vmatpush1.bf16.msra.mxu0 0
        %1412 = vmatprep.subr.bf16.mxu0 0
        %1413 = vmatpush1.bf16.msra.mxu0 0
        %1414 = vmatprep.subr.bf16.mxu0 0
        %1415 = vmatpush1.bf16.msra.mxu0 0
        %1416 = vmatprep.subr.bf16.mxu0 0
        %1417 = vmatpush1.bf16.msra.mxu0 0
        %1418 = vmatprep.subr.bf16.mxu0 0
        %1419 = vmatpush1.bf16.msra.mxu0 0
        %1420 = vmatprep.subr.bf16.mxu0 0
        %1421 = vmatpush1.bf16.msra.mxu0 0
        %1422 = vmatprep.subr.bf16.mxu0 0
        %1423 = vmatpush1.bf16.msra.mxu0 0
        %1424 = vmatprep.subr.bf16.mxu0 0
        %1425 = vmatpush1.bf16.msra.mxu0 0
        %1426 = vmatprep.subr.bf16.mxu0 0
        %1427 = vmatpush1.bf16.msra.mxu0 0
        %1428 = vmatprep.subr.bf16.mxu0 0
        %1429 = vmatpush1.bf16.msra.mxu0 0
        %1430 = vmatprep.subr.bf16.mxu0 0
        %1431 = vmatpush1.bf16.msra.mxu0 0
        %1432 = vmatprep.subr.bf16.mxu0 0
        %1433 = vmatpush1.bf16.msra.mxu0 0
        %1434 = vmatprep.subr.bf16.mxu0 0
        %1435 = vmatpush1.bf16.msra.mxu0 0
        %1436 = vmatprep.mubr.bf16.mxu0 0
        %1437 = vmatmul.mubr.bf16.gmra.mrb[0].mxu0 %v1381
        %v1438 = vpop.f32.mrb[0].mxu0
        %v1439 = vadd.f32 0.0, %v1438
        %v1440 = vpop.f32.mrb[0].mxu0
        %v1441 = vpop.f32.mrb[0].mxu0
        %v1442 = vadd.f32 0.0, %v1441
        %v1443 = vpop.f32.mrb[0].mxu0
        %1444 = vmatprep.mubr.bf16.mxu0 0
        %1445 = vmatmul.mubr.bf16.gmra.mrb[0].mxu0 %v1384
        %v1446 = vpop.f32.mrb[0].mxu0
        %v1447 = vadd.f32 0.0, %v1446
        %v1448 = vpop.f32.mrb[0].mxu0
        %v1449 = vpop.f32.mrb[0].mxu0
        %v1450 = vadd.f32 0.0, %v1449
        %v1451 = vpop.f32.mrb[0].mxu0
        %1452 = vmatprep.mubr.bf16.mxu0 0
        %1453 = vmatmul.mubr.bf16.gmra.mrb[0].mxu0 %v1387
        %v1454 = vpop.f32.mrb[0].mxu0
        %v1455 = vadd.f32 0.0, %v1454
        %v1456 = vpop.f32.mrb[0].mxu0
        %v1457 = vpop.f32.mrb[0].mxu0
        %v1458 = vadd.f32 0.0, %v1457
        %v1459 = vpop.f32.mrb[0].mxu0
        %1460 = vmatprep.mubr.bf16.mxu0 0
        %1461 = vmatmul.mubr.bf16.gmra.mrb[0].mxu0 %v1390
        %v1462 = vpop.f32.mrb[0].mxu0
        %v1463 = vadd.f32 0.0, %v1462
        %v1464 = vpop.f32.mrb[0].mxu0
        %v1465 = vpop.f32.mrb[0].mxu0
        %v1466 = vadd.f32 0.0, %v1465
        %v1467 = vpop.f32.mrb[0].mxu0
        %1468 = vmatprep.mubr.bf16.mxu0 0
        %1469 = vmatmul.mubr.bf16.gmra.mrb[0].mxu0 %v1393
        %v1470 = vpop.f32.mrb[0].mxu0
        %v1471 = vadd.f32 0.0, %v1470
        %v1472 = vpop.f32.mrb[0].mxu0
        %v1473 = vpop.f32.mrb[0].mxu0
        %v1474 = vadd.f32 0.0, %v1473
        %v1475 = vpop.f32.mrb[0].mxu0
        %1476 = vmatprep.mubr.bf16.mxu0 0
        %1477 = vmatmul.mubr.bf16.gmra.mrb[0].mxu0 %v1396
        %v1478 = vpop.f32.mrb[0].mxu0
        %v1479 = vadd.f32 0.0, %v1478
        %v1480 = vpop.f32.mrb[0].mxu0
        %v1481 = vpop.f32.mrb[0].mxu0
        %v1482 = vadd.f32 0.0, %v1481
        %v1483 = vpop.f32.mrb[0].mxu0
        %1484 = vmatprep.mubr.bf16.mxu0 0
        %1485 = vmatmul.mubr.bf16.gmra.mrb[0].mxu0 %v1399
        %v1486 = vpop.f32.mrb[0].mxu0
        %v1487 = vadd.f32 0.0, %v1486
        %v1488 = vpop.f32.mrb[0].mxu0
        %v1489 = vpop.f32.mrb[0].mxu0
        %v1490 = vadd.f32 0.0, %v1489
        %v1491 = vpop.f32.mrb[0].mxu0
        %1492 = vmatprep.mubr.bf16.mxu0 0
        %1493 = vmatmul.mubr.bf16.gmra.mrb[0].mxu0 %v1402
        %v1494 = vpop.f32.mrb[0].mxu0
        %v1495 = vadd.f32 0.0, %v1494
        %v1496 = vpop.f32.mrb[0].mxu0
        %v1497 = vpop.f32.mrb[0].mxu0
        %v1498 = vadd.f32 0.0, %v1497
        %v1499 = vpop.f32.mrb[0].mxu0
        %1500 = vdwg.mxu0
        %v1501 = vld [vmem:[#allocation2] sm:$0xff]
        %v1502 = vld [vmem:[#allocation2 + $0x8] sm:$0xff]
        %v1503 = vld [vmem:[#allocation2 + $0x10] sm:$0xff]
        %v1504 = vld [vmem:[#allocation2 + $0x18] sm:$0xff]
        %v1505 = vld [vmem:[#allocation2 + $0x20] sm:$0xff]
        %v1506 = vld [vmem:[#allocation2 + $0x28] sm:$0xff]
        %v1507 = vld [vmem:[#allocation2 + $0x30] sm:$0xff]
        %v1508 = vld [vmem:[#allocation2 + $0x38] sm:$0xff]
        %v1509 = vld [vmem:[#allocation2 + $0x40] sm:$0xff]
        %v1510 = vld [vmem:[#allocation2 + $0x48] sm:$0xff]
        %v1511 = vld [vmem:[#allocation2 + $0x50] sm:$0xff]
        %v1512 = vld [vmem:[#allocation2 + $0x58] sm:$0xff]
        %v1513 = vld [vmem:[#allocation2 + $0x60] sm:$0xff]
        %v1514 = vld [vmem:[#allocation2 + $0x68] sm:$0xff]
        %v1515 = vld [vmem:[#allocation2 + $0x70] sm:$0xff]
        %v1516 = vld [vmem:[#allocation2 + $0x78] sm:$0xff]
        %v1517 = vadd.f32 %v1501, %v1439
        %v1518 = vadd.f32 %v1502, %v1442
        %v1519 = vadd.f32 %v1503, %v1447
        %v1520 = vadd.f32 %v1504, %v1450
        %v1521 = vadd.f32 %v1505, %v1455
        %v1522 = vadd.f32 %v1506, %v1458
        %v1523 = vadd.f32 %v1507, %v1463
        %v1524 = vadd.f32 %v1508, %v1466
        %v1525 = vadd.f32 %v1509, %v1471
        %v1526 = vadd.f32 %v1510, %v1474
        %v1527 = vadd.f32 %v1511, %v1479
        %v1528 = vadd.f32 %v1512, %v1482
        %v1529 = vadd.f32 %v1513, %v1487
        %v1530 = vadd.f32 %v1514, %v1490
        %v1531 = vadd.f32 %v1515, %v1495
        %v1532 = vadd.f32 %v1516, %v1498
        %1533 = vst.msk [vmem:[#allocation2] sm:$0xff] %vm567, %v1517
        %1534 = vst.msk [vmem:[#allocation2 + $0x8] sm:$0xff] %vm567, %v1518
        %1535 = vst.msk [vmem:[#allocation2 + $0x10] sm:$0xff] %vm567, %v1519
        %1536 = vst.msk [vmem:[#allocation2 + $0x18] sm:$0xff] %vm567, %v1520
        %1537 = vst.msk [vmem:[#allocation2 + $0x20] sm:$0xff] %vm567, %v1521
        %1538 = vst.msk [vmem:[#allocation2 + $0x28] sm:$0xff] %vm567, %v1522
        %1539 = vst.msk [vmem:[#allocation2 + $0x30] sm:$0xff] %vm567, %v1523
        %1540 = vst.msk [vmem:[#allocation2 + $0x38] sm:$0xff] %vm567, %v1524
        %1541 = vst.msk [vmem:[#allocation2 + $0x40] sm:$0xff] %vm567, %v1525
        %1542 = vst.msk [vmem:[#allocation2 + $0x48] sm:$0xff] %vm567, %v1526
        %1543 = vst.msk [vmem:[#allocation2 + $0x50] sm:$0xff] %vm567, %v1527
        %1544 = vst.msk [vmem:[#allocation2 + $0x58] sm:$0xff] %vm567, %v1528
        %1545 = vst.msk [vmem:[#allocation2 + $0x60] sm:$0xff] %vm567, %v1529
        %1546 = vst.msk [vmem:[#allocation2 + $0x68] sm:$0xff] %vm567, %v1530
        %1547 = vst.msk [vmem:[#allocation2 + $0x70] sm:$0xff] %vm567, %v1531
        %1548 = vst.msk [vmem:[#allocation2 + $0x78] sm:$0xff] %vm567, %v1532
        %v1549 = vld [vmem:[%s1314] sm:$0xf]
        %v1550 = vld [vmem:[%s1314 + $0x4] sm:$0xf]
        %v1551 = vld [vmem:[%s1314 + $0x8] sm:$0x1]
        %v1552 = vld [vmem:[%s1314 + $0xc] sm:$0xf]
        %v1553 = vld [vmem:[%s1314 + $0x10] sm:$0xf]
        %v1554 = vld [vmem:[%s1314 + $0x14] sm:$0x1]
        %v1555 = vld [vmem:[%s1314 + $0x18] sm:$0xf]
        %v1556 = vld [vmem:[%s1314 + $0x1c] sm:$0xf]
        %v1557 = vld [vmem:[%s1314 + $0x20] sm:$0x1]
        %v1558 = vld [vmem:[%s1314 + $0x24] sm:$0xf]
        %v1559 = vld [vmem:[%s1314 + $0x28] sm:$0xf]
        %v1560 = vld [vmem:[%s1314 + $0x2c] sm:$0x1]
        %v1561 = vld [vmem:[%s1314 + $0x30] sm:$0xf]
        %v1562 = vld [vmem:[%s1314 + $0x34] sm:$0xf]
        %v1563 = vld [vmem:[%s1314 + $0x38] sm:$0x1]
        %v1564 = vld [vmem:[%s1314 + $0x3c] sm:$0xf]
        %v1565 = vld [vmem:[%s1314 + $0x40] sm:$0xf]
        %v1566 = vld [vmem:[%s1314 + $0x44] sm:$0x1]
        %v1567 = vld [vmem:[%s1314 + $0x48] sm:$0xf]
        %v1568 = vld [vmem:[%s1314 + $0x4c] sm:$0xf]
        %v1569 = vld [vmem:[%s1314 + $0x50] sm:$0x1]
        %v1570 = vld [vmem:[%s1314 + $0x54] sm:$0xf]
        %v1571 = vld [vmem:[%s1314 + $0x58] sm:$0xf]
        %v1572 = vld [vmem:[%s1314 + $0x5c] sm:$0x1]
        %v1574 = vshrl.u32 %v1549, 16
        %v1576 = vrot.slane %v1574, 4
        %v1577 = vshll.u32 %v1549, 16
        %v1579 = vrot.slane %v1577, 5
        %v1580 = vor.u32 %v1576, %v1579
        %v1581 = vrot.slane %v1580, 4
        %v1583 = vshll.u32 %v1550, 16
        %v1585 = vrot.slane %v1583, 5
        %v1586 = vsel %vm610, %v1581, %v1585
        %v1587 = vshrl.u32 %v1550, 16
        %v1589 = vrot.slane %v1587, 4
        %v1590 = vor.u32 %v1589, %v1585
        %v1591 = vrot.slane %v1590, 4
        %v1593 = vshll.u32 %v1551, 16
        %v1595 = vrot.slane %v1593, 5
        %v1596 = vsel %vm610, %v1591, %v1595
        %v1598 = vshrl.u32 %v1552, 16
        %v1600 = vrot.slane %v1598, 4
        %v1601 = vshll.u32 %v1552, 16
        %v1603 = vrot.slane %v1601, 5
        %v1604 = vor.u32 %v1600, %v1603
        %v1605 = vrot.slane %v1604, 4
        %v1607 = vshll.u32 %v1553, 16
        %v1609 = vrot.slane %v1607, 5
        %v1610 = vsel %vm610, %v1605, %v1609
        %v1611 = vshrl.u32 %v1553, 16
        %v1613 = vrot.slane %v1611, 4
        %v1614 = vor.u32 %v1613, %v1609
        %v1615 = vrot.slane %v1614, 4
        %v1617 = vshll.u32 %v1554, 16
        %v1619 = vrot.slane %v1617, 5
        %v1620 = vsel %vm610, %v1615, %v1619
        %v1622 = vshrl.u32 %v1555, 16
        %v1624 = vrot.slane %v1622, 4
        %v1625 = vshll.u32 %v1555, 16
        %v1627 = vrot.slane %v1625, 5
        %v1628 = vor.u32 %v1624, %v1627
        %v1629 = vrot.slane %v1628, 4
        %v1631 = vshll.u32 %v1556, 16
        %v1633 = vrot.slane %v1631, 5
        %v1634 = vsel %vm610, %v1629, %v1633
        %v1635 = vshrl.u32 %v1556, 16
        %v1637 = vrot.slane %v1635, 4
        %v1638 = vor.u32 %v1637, %v1633
        %v1639 = vrot.slane %v1638, 4
        %v1641 = vshll.u32 %v1557, 16
        %v1643 = vrot.slane %v1641, 5
        %v1644 = vsel %vm610, %v1639, %v1643
        %v1646 = vshrl.u32 %v1558, 16
        %v1648 = vrot.slane %v1646, 4
        %v1649 = vshll.u32 %v1558, 16
        %v1651 = vrot.slane %v1649, 5
        %v1652 = vor.u32 %v1648, %v1651
        %v1653 = vrot.slane %v1652, 4
        %v1655 = vshll.u32 %v1559, 16
        %v1657 = vrot.slane %v1655, 5
        %v1658 = vsel %vm610, %v1653, %v1657
        %v1659 = vshrl.u32 %v1559, 16
        %v1661 = vrot.slane %v1659, 4
        %v1662 = vor.u32 %v1661, %v1657
        %v1663 = vrot.slane %v1662, 4
        %v1665 = vshll.u32 %v1560, 16
        %v1667 = vrot.slane %v1665, 5
        %v1668 = vsel %vm610, %v1663, %v1667
        %v1670 = vshrl.u32 %v1561, 16
        %v1672 = vrot.slane %v1670, 4
        %v1673 = vshll.u32 %v1561, 16
        %v1675 = vrot.slane %v1673, 5
        %v1676 = vor.u32 %v1672, %v1675
        %v1677 = vrot.slane %v1676, 4
        %v1679 = vshll.u32 %v1562, 16
        %v1681 = vrot.slane %v1679, 5
        %v1682 = vsel %vm610, %v1677, %v1681
        %v1683 = vshrl.u32 %v1562, 16
        %v1685 = vrot.slane %v1683, 4
        %v1686 = vor.u32 %v1685, %v1681
        %v1687 = vrot.slane %v1686, 4
        %v1689 = vshll.u32 %v1563, 16
        %v1691 = vrot.slane %v1689, 5
        %v1692 = vsel %vm610, %v1687, %v1691
        %v1694 = vshrl.u32 %v1564, 16
        %v1696 = vrot.slane %v1694, 4
        %v1697 = vshll.u32 %v1564, 16
        %v1699 = vrot.slane %v1697, 5
        %v1700 = vor.u32 %v1696, %v1699
        %v1701 = vrot.slane %v1700, 4
        %v1703 = vshll.u32 %v1565, 16
        %v1705 = vrot.slane %v1703, 5
        %v1706 = vsel %vm610, %v1701, %v1705
        %v1707 = vshrl.u32 %v1565, 16
        %v1709 = vrot.slane %v1707, 4
        %v1710 = vor.u32 %v1709, %v1705
        %v1711 = vrot.slane %v1710, 4
        %v1713 = vshll.u32 %v1566, 16
        %v1715 = vrot.slane %v1713, 5
        %v1716 = vsel %vm610, %v1711, %v1715
        %v1718 = vshrl.u32 %v1567, 16
        %v1720 = vrot.slane %v1718, 4
        %v1721 = vshll.u32 %v1567, 16
        %v1723 = vrot.slane %v1721, 5
        %v1724 = vor.u32 %v1720, %v1723
        %v1725 = vrot.slane %v1724, 4
        %v1727 = vshll.u32 %v1568, 16
        %v1729 = vrot.slane %v1727, 5
        %v1730 = vsel %vm610, %v1725, %v1729
        %v1731 = vshrl.u32 %v1568, 16
        %v1733 = vrot.slane %v1731, 4
        %v1734 = vor.u32 %v1733, %v1729
        %v1735 = vrot.slane %v1734, 4
        %v1737 = vshll.u32 %v1569, 16
        %v1739 = vrot.slane %v1737, 5
        %v1740 = vsel %vm610, %v1735, %v1739
        %v1742 = vshrl.u32 %v1570, 16
        %v1744 = vrot.slane %v1742, 4
        %v1745 = vshll.u32 %v1570, 16
        %v1747 = vrot.slane %v1745, 5
        %v1748 = vor.u32 %v1744, %v1747
        %v1749 = vrot.slane %v1748, 4
        %v1751 = vshll.u32 %v1571, 16
        %v1753 = vrot.slane %v1751, 5
        %v1754 = vsel %vm610, %v1749, %v1753
        %v1755 = vshrl.u32 %v1571, 16
        %v1757 = vrot.slane %v1755, 4
        %v1758 = vor.u32 %v1757, %v1753
        %v1759 = vrot.slane %v1758, 4
        %v1761 = vshll.u32 %v1572, 16
        %v1763 = vrot.slane %v1761, 5
        %v1764 = vsel %vm610, %v1759, %v1763
        %s1765 = scalar_lea.vmem %s1, 32
        %v1766 = vld [vmem:[%s1765] sm:$0xf]
        %v1767 = vld [vmem:[%s1765 + $0x4] sm:$0xf]
        %v1768 = vunpack.c.l.b16 %v1586
        %v1769 = vunpack.c.l.b16 %v1596
        %v1770 = vunpack.c.l.b16 %v1610
        %v1771 = vunpack.c.l.b16 %v1620
        %v1772 = vunpack.c.l.b16 %v1634
        %v1773 = vunpack.c.l.b16 %v1644
        %v1774 = vunpack.c.l.b16 %v1658
        %v1775 = vunpack.c.l.b16 %v1668
        %v1776 = vunpack.c.l.b16 %v1682
        %v1777 = vunpack.c.l.b16 %v1692
        %v1778 = vunpack.c.l.b16 %v1706
        %v1779 = vunpack.c.l.b16 %v1716
        %v1780 = vunpack.c.l.b16 %v1730
        %v1781 = vunpack.c.l.b16 %v1740
        %v1782 = vunpack.c.l.b16 %v1754
        %v1783 = vunpack.c.l.b16 %v1764
        %v1784 = vpack.c.b16 %v1769, %v1768
        %v1785 = vpack.c.b16 %v1771, %v1770
        %v1786 = vpack.c.b16 %v1773, %v1772
        %v1787 = vpack.c.b16 %v1775, %v1774
        %v1788 = vpack.c.b16 %v1777, %v1776
        %v1789 = vpack.c.b16 %v1779, %v1778
        %v1790 = vpack.c.b16 %v1781, %v1780
        %v1791 = vpack.c.b16 %v1783, %v1782
        %v1794 = vunpack.c.l.b16 %v1766
        %v1795 = vunpack.c.l.b16 %v1767
        %v1796 = vpack.c.b16 %v1795, %v1794
        %v1799 = vsel %vm445, %v1784, 0
        %v1802 = vsel %vm445, %v1785, 0
        %v1805 = vsel %vm445, %v1786, 0
        %v1808 = vsel %vm445, %v1787, 0
        %v1811 = vsel %vm445, %v1788, 0
        %v1814 = vsel %vm445, %v1789, 0
        %v1817 = vsel %vm445, %v1790, 0
        %v1820 = vsel %vm445, %v1791, 0
        %1822 = vmatprep.subr.bf16.mxu0 0
        %1823 = vmatpush1.bf16.msra.mxu0 %v1796
        %1824 = vmatprep.subr.bf16.mxu0 0
        %1825 = vmatpush1.bf16.msra.mxu0 0
        %1826 = vmatprep.subr.bf16.mxu0 0
        %1827 = vmatpush1.bf16.msra.mxu0 0
        %1828 = vmatprep.subr.bf16.mxu0 0
        %1829 = vmatpush1.bf16.msra.mxu0 0
        %1830 = vmatprep.subr.bf16.mxu0 0
        %1831 = vmatpush1.bf16.msra.mxu0 0
        %1832 = vmatprep.subr.bf16.mxu0 0
        %1833 = vmatpush1.bf16.msra.mxu0 0
        %1834 = vmatprep.subr.bf16.mxu0 0
        %1835 = vmatpush1.bf16.msra.mxu0 0
        %1836 = vmatprep.subr.bf16.mxu0 0
        %1837 = vmatpush1.bf16.msra.mxu0 0
        %1838 = vmatprep.subr.bf16.mxu0 0
        %1839 = vmatpush1.bf16.msra.mxu0 0
        %1840 = vmatprep.subr.bf16.mxu0 0
        %1841 = vmatpush1.bf16.msra.mxu0 0
        %1842 = vmatprep.subr.bf16.mxu0 0
        %1843 = vmatpush1.bf16.msra.mxu0 0
        %1844 = vmatprep.subr.bf16.mxu0 0
        %1845 = vmatpush1.bf16.msra.mxu0 0
        %1846 = vmatprep.subr.bf16.mxu0 0
        %1847 = vmatpush1.bf16.msra.mxu0 0
        %1848 = vmatprep.subr.bf16.mxu0 0
        %1849 = vmatpush1.bf16.msra.mxu0 0
        %1850 = vmatprep.subr.bf16.mxu0 0
        %1851 = vmatpush1.bf16.msra.mxu0 0
        %1852 = vmatprep.subr.bf16.mxu0 0
        %1853 = vmatpush1.bf16.msra.mxu0 0
        %1854 = vmatprep.mubr.bf16.mxu0 0
        %1855 = vmatmul.mubr.bf16.gmra.mrb[0].mxu0 %v1799
        %v1856 = vpop.f32.mrb[0].mxu0
        %v1857 = vadd.f32 0.0, %v1856
        %v1858 = vpop.f32.mrb[0].mxu0
        %v1859 = vpop.f32.mrb[0].mxu0
        %v1860 = vadd.f32 0.0, %v1859
        %v1861 = vpop.f32.mrb[0].mxu0
        %1862 = vmatprep.mubr.bf16.mxu0 0
        %1863 = vmatmul.mubr.bf16.gmra.mrb[0].mxu0 %v1802
        %v1864 = vpop.f32.mrb[0].mxu0
        %v1865 = vadd.f32 0.0, %v1864
        %v1866 = vpop.f32.mrb[0].mxu0
        %v1867 = vpop.f32.mrb[0].mxu0
        %v1868 = vadd.f32 0.0, %v1867
        %v1869 = vpop.f32.mrb[0].mxu0
        %1870 = vmatprep.mubr.bf16.mxu0 0
        %1871 = vmatmul.mubr.bf16.gmra.mrb[0].mxu0 %v1805
        %v1872 = vpop.f32.mrb[0].mxu0
        %v1873 = vadd.f32 0.0, %v1872
        %v1874 = vpop.f32.mrb[0].mxu0
        %v1875 = vpop.f32.mrb[0].mxu0
        %v1876 = vadd.f32 0.0, %v1875
        %v1877 = vpop.f32.mrb[0].mxu0
        %1878 = vmatprep.mubr.bf16.mxu0 0
        %1879 = vmatmul.mubr.bf16.gmra.mrb[0].mxu0 %v1808
        %v1880 = vpop.f32.mrb[0].mxu0
        %v1881 = vadd.f32 0.0, %v1880
        %v1882 = vpop.f32.mrb[0].mxu0
        %v1883 = vpop.f32.mrb[0].mxu0
        %v1884 = vadd.f32 0.0, %v1883
        %v1885 = vpop.f32.mrb[0].mxu0
        %1886 = vmatprep.mubr.bf16.mxu0 0
        %1887 = vmatmul.mubr.bf16.gmra.mrb[0].mxu0 %v1811
        %v1888 = vpop.f32.mrb[0].mxu0
        %v1889 = vadd.f32 0.0, %v1888
        %v1890 = vpop.f32.mrb[0].mxu0
        %v1891 = vpop.f32.mrb[0].mxu0
        %v1892 = vadd.f32 0.0, %v1891
        %v1893 = vpop.f32.mrb[0].mxu0
        %1894 = vmatprep.mubr.bf16.mxu0 0
        %1895 = vmatmul.mubr.bf16.gmra.mrb[0].mxu0 %v1814
        %v1896 = vpop.f32.mrb[0].mxu0
        %v1897 = vadd.f32 0.0, %v1896
        %v1898 = vpop.f32.mrb[0].mxu0
        %v1899 = vpop.f32.mrb[0].mxu0
        %v1900 = vadd.f32 0.0, %v1899
        %v1901 = vpop.f32.mrb[0].mxu0
        %1902 = vmatprep.mubr.bf16.mxu0 0
        %1903 = vmatmul.mubr.bf16.gmra.mrb[0].mxu0 %v1817
        %v1904 = vpop.f32.mrb[0].mxu0
        %v1905 = vadd.f32 0.0, %v1904
        %v1906 = vpop.f32.mrb[0].mxu0
        %v1907 = vpop.f32.mrb[0].mxu0
        %v1908 = vadd.f32 0.0, %v1907
        %v1909 = vpop.f32.mrb[0].mxu0
        %1910 = vmatprep.mubr.bf16.mxu0 0
        %1911 = vmatmul.mubr.bf16.gmra.mrb[0].mxu0 %v1820
        %v1912 = vpop.f32.mrb[0].mxu0
        %v1913 = vadd.f32 0.0, %v1912
        %v1914 = vpop.f32.mrb[0].mxu0
        %v1915 = vpop.f32.mrb[0].mxu0
        %v1916 = vadd.f32 0.0, %v1915
        %v1917 = vpop.f32.mrb[0].mxu0
        %1918 = vdwg.mxu0
        %v1919 = vld [vmem:[#allocation2] sm:$0xff]
        %v1920 = vld [vmem:[#allocation2 + $0x8] sm:$0xff]
        %v1921 = vld [vmem:[#allocation2 + $0x10] sm:$0xff]
        %v1922 = vld [vmem:[#allocation2 + $0x18] sm:$0xff]
        %v1923 = vld [vmem:[#allocation2 + $0x20] sm:$0xff]
        %v1924 = vld [vmem:[#allocation2 + $0x28] sm:$0xff]
        %v1925 = vld [vmem:[#allocation2 + $0x30] sm:$0xff]
        %v1926 = vld [vmem:[#allocation2 + $0x38] sm:$0xff]
        %v1927 = vld [vmem:[#allocation2 + $0x40] sm:$0xff]
        %v1928 = vld [vmem:[#allocation2 + $0x48] sm:$0xff]
        %v1929 = vld [vmem:[#allocation2 + $0x50] sm:$0xff]
        %v1930 = vld [vmem:[#allocation2 + $0x58] sm:$0xff]
        %v1931 = vld [vmem:[#allocation2 + $0x60] sm:$0xff]
        %v1932 = vld [vmem:[#allocation2 + $0x68] sm:$0xff]
        %v1933 = vld [vmem:[#allocation2 + $0x70] sm:$0xff]
        %v1934 = vld [vmem:[#allocation2 + $0x78] sm:$0xff]
        %v1935 = vadd.f32 %v1919, %v1857
        %v1936 = vadd.f32 %v1920, %v1860
        %v1937 = vadd.f32 %v1921, %v1865
        %v1938 = vadd.f32 %v1922, %v1868
        %v1939 = vadd.f32 %v1923, %v1873
        %v1940 = vadd.f32 %v1924, %v1876
        %v1941 = vadd.f32 %v1925, %v1881
        %v1942 = vadd.f32 %v1926, %v1884
        %v1943 = vadd.f32 %v1927, %v1889
        %v1944 = vadd.f32 %v1928, %v1892
        %v1945 = vadd.f32 %v1929, %v1897
        %v1946 = vadd.f32 %v1930, %v1900
        %v1947 = vadd.f32 %v1931, %v1905
        %v1948 = vadd.f32 %v1932, %v1908
        %v1949 = vadd.f32 %v1933, %v1913
        %v1950 = vadd.f32 %v1934, %v1916
        %1951 = vst.msk [vmem:[#allocation2] sm:$0xff] %vm567, %v1935
        %1952 = vst.msk [vmem:[#allocation2 + $0x8] sm:$0xff] %vm567, %v1936
        %1953 = vst.msk [vmem:[#allocation2 + $0x10] sm:$0xff] %vm567, %v1937
        %1954 = vst.msk [vmem:[#allocation2 + $0x18] sm:$0xff] %vm567, %v1938
        %1955 = vst.msk [vmem:[#allocation2 + $0x20] sm:$0xff] %vm567, %v1939
        %1956 = vst.msk [vmem:[#allocation2 + $0x28] sm:$0xff] %vm567, %v1940
        %1957 = vst.msk [vmem:[#allocation2 + $0x30] sm:$0xff] %vm567, %v1941
        %1958 = vst.msk [vmem:[#allocation2 + $0x38] sm:$0xff] %vm567, %v1942
        %1959 = vst.msk [vmem:[#allocation2 + $0x40] sm:$0xff] %vm567, %v1943
        %1960 = vst.msk [vmem:[#allocation2 + $0x48] sm:$0xff] %vm567, %v1944
        %1961 = vst.msk [vmem:[#allocation2 + $0x50] sm:$0xff] %vm567, %v1945
        %1962 = vst.msk [vmem:[#allocation2 + $0x58] sm:$0xff] %vm567, %v1946
        %1963 = vst.msk [vmem:[#allocation2 + $0x60] sm:$0xff] %vm567, %v1947
        %1964 = vst.msk [vmem:[#allocation2 + $0x68] sm:$0xff] %vm567, %v1948
        %1965 = vst.msk [vmem:[#allocation2 + $0x70] sm:$0xff] %vm567, %v1949
        %1966 = vst.msk [vmem:[#allocation2 + $0x78] sm:$0xff] %vm567, %v1950
        %v1967 = vld [vmem:[%s1314] sm:$0xe]
        %v1968 = vld [vmem:[%s1314 + $0x4] sm:$0xf]
        %v1969 = vld [vmem:[%s1314 + $0x8] sm:$0x1]
        %v1970 = vld [vmem:[%s1314 + $0xc] sm:$0xe]
        %v1971 = vld [vmem:[%s1314 + $0x10] sm:$0xf]
        %v1972 = vld [vmem:[%s1314 + $0x14] sm:$0x1]
        %v1973 = vld [vmem:[%s1314 + $0x18] sm:$0xe]
        %v1974 = vld [vmem:[%s1314 + $0x1c] sm:$0xf]
        %v1975 = vld [vmem:[%s1314 + $0x20] sm:$0x1]
        %v1976 = vld [vmem:[%s1314 + $0x24] sm:$0xe]
        %v1977 = vld [vmem:[%s1314 + $0x28] sm:$0xf]
        %v1978 = vld [vmem:[%s1314 + $0x2c] sm:$0x1]
        %v1979 = vld [vmem:[%s1314 + $0x30] sm:$0xe]
        %v1980 = vld [vmem:[%s1314 + $0x34] sm:$0xf]
        %v1981 = vld [vmem:[%s1314 + $0x38] sm:$0x1]
        %v1982 = vld [vmem:[%s1314 + $0x3c] sm:$0xe]
        %v1983 = vld [vmem:[%s1314 + $0x40] sm:$0xf]
        %v1984 = vld [vmem:[%s1314 + $0x44] sm:$0x1]
        %v1985 = vld [vmem:[%s1314 + $0x48] sm:$0xe]
        %v1986 = vld [vmem:[%s1314 + $0x4c] sm:$0xf]
        %v1987 = vld [vmem:[%s1314 + $0x50] sm:$0x1]
        %v1988 = vld [vmem:[%s1314 + $0x54] sm:$0xe]
        %v1989 = vld [vmem:[%s1314 + $0x58] sm:$0xf]
        %v1990 = vld [vmem:[%s1314 + $0x5c] sm:$0x1]
        %v2015 = vrot.slane %v1967, 5
        %v2016 = vrot.slane %v2015, 4
        %v2017 = vrot.slane %v1968, 5
        %v2018 = vsel %vm1055, %v2016, %v2017
        %v2019 = vrot.slane %v2017, 4
        %v2020 = vrot.slane %v1969, 5
        %v2021 = vsel %vm1055, %v2019, %v2020
        %v2022 = vrot.slane %v1970, 5
        %v2023 = vrot.slane %v2022, 4
        %v2024 = vrot.slane %v1971, 5
        %v2025 = vsel %vm1055, %v2023, %v2024
        %v2026 = vrot.slane %v2024, 4
        %v2027 = vrot.slane %v1972, 5
        %v2028 = vsel %vm1055, %v2026, %v2027
        %v2029 = vrot.slane %v1973, 5
        %v2030 = vrot.slane %v2029, 4
        %v2031 = vrot.slane %v1974, 5
        %v2032 = vsel %vm1055, %v2030, %v2031
        %v2033 = vrot.slane %v2031, 4
        %v2034 = vrot.slane %v1975, 5
        %v2035 = vsel %vm1055, %v2033, %v2034
        %v2036 = vrot.slane %v1976, 5
        %v2037 = vrot.slane %v2036, 4
        %v2038 = vrot.slane %v1977, 5
        %v2039 = vsel %vm1055, %v2037, %v2038
        %v2040 = vrot.slane %v2038, 4
        %v2041 = vrot.slane %v1978, 5
        %v2042 = vsel %vm1055, %v2040, %v2041
        %v2043 = vrot.slane %v1979, 5
        %v2044 = vrot.slane %v2043, 4
        %v2045 = vrot.slane %v1980, 5
        %v2046 = vsel %vm1055, %v2044, %v2045
        %v2047 = vrot.slane %v2045, 4
        %v2048 = vrot.slane %v1981, 5
        %v2049 = vsel %vm1055, %v2047, %v2048
        %v2050 = vrot.slane %v1982, 5
        %v2051 = vrot.slane %v2050, 4
        %v2052 = vrot.slane %v1983, 5
        %v2053 = vsel %vm1055, %v2051, %v2052
        %v2054 = vrot.slane %v2052, 4
        %v2055 = vrot.slane %v1984, 5
        %v2056 = vsel %vm1055, %v2054, %v2055
        %v2057 = vrot.slane %v1985, 5
        %v2058 = vrot.slane %v2057, 4
        %v2059 = vrot.slane %v1986, 5
        %v2060 = vsel %vm1055, %v2058, %v2059
        %v2061 = vrot.slane %v2059, 4
        %v2062 = vrot.slane %v1987, 5
        %v2063 = vsel %vm1055, %v2061, %v2062
        %v2064 = vrot.slane %v1988, 5
        %v2065 = vrot.slane %v2064, 4
        %v2066 = vrot.slane %v1989, 5
        %v2067 = vsel %vm1055, %v2065, %v2066
        %v2068 = vrot.slane %v2066, 4
        %v2069 = vrot.slane %v1990, 5
        %v2070 = vsel %vm1055, %v2068, %v2069
        %s2071 = scalar_lea.vmem %s1, 40
        %v2072 = vld [vmem:[%s2071] sm:$0xf]
        %v2073 = vld [vmem:[%s2071 + $0x4] sm:$0xf]
        %v2074 = vunpack.c.l.b16 %v2018
        %v2075 = vunpack.c.l.b16 %v2021
        %v2076 = vunpack.c.l.b16 %v2025
        %v2077 = vunpack.c.l.b16 %v2028
        %v2078 = vunpack.c.l.b16 %v2032
        %v2079 = vunpack.c.l.b16 %v2035
        %v2080 = vunpack.c.l.b16 %v2039
        %v2081 = vunpack.c.l.b16 %v2042
        %v2082 = vunpack.c.l.b16 %v2046
        %v2083 = vunpack.c.l.b16 %v2049
        %v2084 = vunpack.c.l.b16 %v2053
        %v2085 = vunpack.c.l.b16 %v2056
        %v2086 = vunpack.c.l.b16 %v2060
        %v2087 = vunpack.c.l.b16 %v2063
        %v2088 = vunpack.c.l.b16 %v2067
        %v2089 = vunpack.c.l.b16 %v2070
        %v2090 = vpack.c.b16 %v2075, %v2074
        %v2091 = vpack.c.b16 %v2077, %v2076
        %v2092 = vpack.c.b16 %v2079, %v2078
        %v2093 = vpack.c.b16 %v2081, %v2080
        %v2094 = vpack.c.b16 %v2083, %v2082
        %v2095 = vpack.c.b16 %v2085, %v2084
        %v2096 = vpack.c.b16 %v2087, %v2086
        %v2097 = vpack.c.b16 %v2089, %v2088
        %v2100 = vunpack.c.l.b16 %v2072
        %v2101 = vunpack.c.l.b16 %v2073
        %v2102 = vpack.c.b16 %v2101, %v2100
        %v2105 = vsel %vm445, %v2090, 0
        %v2108 = vsel %vm445, %v2091, 0
        %v2111 = vsel %vm445, %v2092, 0
        %v2114 = vsel %vm445, %v2093, 0
        %v2117 = vsel %vm445, %v2094, 0
        %v2120 = vsel %vm445, %v2095, 0
        %v2123 = vsel %vm445, %v2096, 0
        %v2126 = vsel %vm445, %v2097, 0
        %2128 = vmatprep.subr.bf16.mxu0 0
        %2129 = vmatpush1.bf16.msra.mxu0 %v2102
        %2130 = vmatprep.subr.bf16.mxu0 0
        %2131 = vmatpush1.bf16.msra.mxu0 0
        %2132 = vmatprep.subr.bf16.mxu0 0
        %2133 = vmatpush1.bf16.msra.mxu0 0
        %2134 = vmatprep.subr.bf16.mxu0 0
        %2135 = vmatpush1.bf16.msra.mxu0 0
        %2136 = vmatprep.subr.bf16.mxu0 0
        %2137 = vmatpush1.bf16.msra.mxu0 0
        %2138 = vmatprep.subr.bf16.mxu0 0
        %2139 = vmatpush1.bf16.msra.mxu0 0
        %2140 = vmatprep.subr.bf16.mxu0 0
        %2141 = vmatpush1.bf16.msra.mxu0 0
        %2142 = vmatprep.subr.bf16.mxu0 0
        %2143 = vmatpush1.bf16.msra.mxu0 0
        %2144 = vmatprep.subr.bf16.mxu0 0
        %2145 = vmatpush1.bf16.msra.mxu0 0
        %2146 = vmatprep.subr.bf16.mxu0 0
        %2147 = vmatpush1.bf16.msra.mxu0 0
        %2148 = vmatprep.subr.bf16.mxu0 0
        %2149 = vmatpush1.bf16.msra.mxu0 0
        %2150 = vmatprep.subr.bf16.mxu0 0
        %2151 = vmatpush1.bf16.msra.mxu0 0
        %2152 = vmatprep.subr.bf16.mxu0 0
        %2153 = vmatpush1.bf16.msra.mxu0 0
        %2154 = vmatprep.subr.bf16.mxu0 0
        %2155 = vmatpush1.bf16.msra.mxu0 0
        %2156 = vmatprep.subr.bf16.mxu0 0
        %2157 = vmatpush1.bf16.msra.mxu0 0
        %2158 = vmatprep.subr.bf16.mxu0 0
        %2159 = vmatpush1.bf16.msra.mxu0 0
        %2160 = vmatprep.mubr.bf16.mxu0 0
        %2161 = vmatmul.mubr.bf16.gmra.mrb[0].mxu0 %v2105
        %v2162 = vpop.f32.mrb[0].mxu0
        %v2163 = vadd.f32 0.0, %v2162
        %v2164 = vpop.f32.mrb[0].mxu0
        %v2165 = vpop.f32.mrb[0].mxu0
        %v2166 = vadd.f32 0.0, %v2165
        %v2167 = vpop.f32.mrb[0].mxu0
        %2168 = vmatprep.mubr.bf16.mxu0 0
        %2169 = vmatmul.mubr.bf16.gmra.mrb[0].mxu0 %v2108
        %v2170 = vpop.f32.mrb[0].mxu0
        %v2171 = vadd.f32 0.0, %v2170
        %v2172 = vpop.f32.mrb[0].mxu0
        %v2173 = vpop.f32.mrb[0].mxu0
        %v2174 = vadd.f32 0.0, %v2173
        %v2175 = vpop.f32.mrb[0].mxu0
        %2176 = vmatprep.mubr.bf16.mxu0 0
        %2177 = vmatmul.mubr.bf16.gmra.mrb[0].mxu0 %v2111
        %v2178 = vpop.f32.mrb[0].mxu0
        %v2179 = vadd.f32 0.0, %v2178
        %v2180 = vpop.f32.mrb[0].mxu0
        %v2181 = vpop.f32.mrb[0].mxu0
        %v2182 = vadd.f32 0.0, %v2181
        %v2183 = vpop.f32.mrb[0].mxu0
        %2184 = vmatprep.mubr.bf16.mxu0 0
        %2185 = vmatmul.mubr.bf16.gmra.mrb[0].mxu0 %v2114
        %v2186 = vpop.f32.mrb[0].mxu0
        %v2187 = vadd.f32 0.0, %v2186
        %v2188 = vpop.f32.mrb[0].mxu0
        %v2189 = vpop.f32.mrb[0].mxu0
        %v2190 = vadd.f32 0.0, %v2189
        %v2191 = vpop.f32.mrb[0].mxu0
        %2192 = vmatprep.mubr.bf16.mxu0 0
        %2193 = vmatmul.mubr.bf16.gmra.mrb[0].mxu0 %v2117
        %v2194 = vpop.f32.mrb[0].mxu0
        %v2195 = vadd.f32 0.0, %v2194
        %v2196 = vpop.f32.mrb[0].mxu0
        %v2197 = vpop.f32.mrb[0].mxu0
        %v2198 = vadd.f32 0.0, %v2197
        %v2199 = vpop.f32.mrb[0].mxu0
        %2200 = vmatprep.mubr.bf16.mxu0 0
        %2201 = vmatmul.mubr.bf16.gmra.mrb[0].mxu0 %v2120
        %v2202 = vpop.f32.mrb[0].mxu0
        %v2203 = vadd.f32 0.0, %v2202
        %v2204 = vpop.f32.mrb[0].mxu0
        %v2205 = vpop.f32.mrb[0].mxu0
        %v2206 = vadd.f32 0.0, %v2205
        %v2207 = vpop.f32.mrb[0].mxu0
        %2208 = vmatprep.mubr.bf16.mxu0 0
        %2209 = vmatmul.mubr.bf16.gmra.mrb[0].mxu0 %v2123
        %v2210 = vpop.f32.mrb[0].mxu0
        %v2211 = vadd.f32 0.0, %v2210
        %v2212 = vpop.f32.mrb[0].mxu0
        %v2213 = vpop.f32.mrb[0].mxu0
        %v2214 = vadd.f32 0.0, %v2213
        %v2215 = vpop.f32.mrb[0].mxu0
        %2216 = vmatprep.mubr.bf16.mxu0 0
        %2217 = vmatmul.mubr.bf16.gmra.mrb[0].mxu0 %v2126
        %v2218 = vpop.f32.mrb[0].mxu0
        %v2219 = vadd.f32 0.0, %v2218
        %v2220 = vpop.f32.mrb[0].mxu0
        %v2221 = vpop.f32.mrb[0].mxu0
        %v2222 = vadd.f32 0.0, %v2221
        %v2223 = vpop.f32.mrb[0].mxu0
        %2224 = vdwg.mxu0
        %v2225 = vld [vmem:[#allocation2] sm:$0xff]
        %v2226 = vld [vmem:[#allocation2 + $0x8] sm:$0xff]
        %v2227 = vld [vmem:[#allocation2 + $0x10] sm:$0xff]
        %v2228 = vld [vmem:[#allocation2 + $0x18] sm:$0xff]
        %v2229 = vld [vmem:[#allocation2 + $0x20] sm:$0xff]
        %v2230 = vld [vmem:[#allocation2 + $0x28] sm:$0xff]
        %v2231 = vld [vmem:[#allocation2 + $0x30] sm:$0xff]
        %v2232 = vld [vmem:[#allocation2 + $0x38] sm:$0xff]
        %v2233 = vld [vmem:[#allocation2 + $0x40] sm:$0xff]
        %v2234 = vld [vmem:[#allocation2 + $0x48] sm:$0xff]
        %v2235 = vld [vmem:[#allocation2 + $0x50] sm:$0xff]
        %v2236 = vld [vmem:[#allocation2 + $0x58] sm:$0xff]
        %v2237 = vld [vmem:[#allocation2 + $0x60] sm:$0xff]
        %v2238 = vld [vmem:[#allocation2 + $0x68] sm:$0xff]
        %v2239 = vld [vmem:[#allocation2 + $0x70] sm:$0xff]
        %v2240 = vld [vmem:[#allocation2 + $0x78] sm:$0xff]
        %v2241 = vadd.f32 %v2225, %v2163
        %v2242 = vadd.f32 %v2226, %v2166
        %v2243 = vadd.f32 %v2227, %v2171
        %v2244 = vadd.f32 %v2228, %v2174
        %v2245 = vadd.f32 %v2229, %v2179
        %v2246 = vadd.f32 %v2230, %v2182
        %v2247 = vadd.f32 %v2231, %v2187
        %v2248 = vadd.f32 %v2232, %v2190
        %v2249 = vadd.f32 %v2233, %v2195
        %v2250 = vadd.f32 %v2234, %v2198
        %v2251 = vadd.f32 %v2235, %v2203
        %v2252 = vadd.f32 %v2236, %v2206
        %v2253 = vadd.f32 %v2237, %v2211
        %v2254 = vadd.f32 %v2238, %v2214
        %v2255 = vadd.f32 %v2239, %v2219
        %v2256 = vadd.f32 %v2240, %v2222
        %2257 = vst.msk [vmem:[#allocation2] sm:$0xff] %vm567, %v2241
        %2258 = vst.msk [vmem:[#allocation2 + $0x8] sm:$0xff] %vm567, %v2242
        %2259 = vst.msk [vmem:[#allocation2 + $0x10] sm:$0xff] %vm567, %v2243
        %2260 = vst.msk [vmem:[#allocation2 + $0x18] sm:$0xff] %vm567, %v2244
        %2261 = vst.msk [vmem:[#allocation2 + $0x20] sm:$0xff] %vm567, %v2245
        %2262 = vst.msk [vmem:[#allocation2 + $0x28] sm:$0xff] %vm567, %v2246
        %2263 = vst.msk [vmem:[#allocation2 + $0x30] sm:$0xff] %vm567, %v2247
        %2264 = vst.msk [vmem:[#allocation2 + $0x38] sm:$0xff] %vm567, %v2248
        %2265 = vst.msk [vmem:[#allocation2 + $0x40] sm:$0xff] %vm567, %v2249
        %2266 = vst.msk [vmem:[#allocation2 + $0x48] sm:$0xff] %vm567, %v2250
        %2267 = vst.msk [vmem:[#allocation2 + $0x50] sm:$0xff] %vm567, %v2251
        %2268 = vst.msk [vmem:[#allocation2 + $0x58] sm:$0xff] %vm567, %v2252
        %2269 = vst.msk [vmem:[#allocation2 + $0x60] sm:$0xff] %vm567, %v2253
        %2270 = vst.msk [vmem:[#allocation2 + $0x68] sm:$0xff] %vm567, %v2254
        %2271 = vst.msk [vmem:[#allocation2 + $0x70] sm:$0xff] %vm567, %v2255
        %2272 = vst.msk [vmem:[#allocation2 + $0x78] sm:$0xff] %vm567, %v2256
        %s2273 = scalar_lea.vmem %s370, 24
        %v2274 = vld [vmem:[%s2273] sm:$0xf]
        %v2275 = vld [vmem:[%s2273 + $0x4] sm:$0xf]
        %v2276 = vld [vmem:[%s2273 + $0xc] sm:$0xf]
        %v2277 = vld [vmem:[%s2273 + $0x10] sm:$0xf]
        %v2278 = vld [vmem:[%s2273 + $0x18] sm:$0xf]
        %v2279 = vld [vmem:[%s2273 + $0x1c] sm:$0xf]
        %v2280 = vld [vmem:[%s2273 + $0x24] sm:$0xf]
        %v2281 = vld [vmem:[%s2273 + $0x28] sm:$0xf]
        %v2282 = vld [vmem:[%s2273 + $0x30] sm:$0xf]
        %v2283 = vld [vmem:[%s2273 + $0x34] sm:$0xf]
        %v2284 = vld [vmem:[%s2273 + $0x3c] sm:$0xf]
        %v2285 = vld [vmem:[%s2273 + $0x40] sm:$0xf]
        %v2286 = vld [vmem:[%s2273 + $0x48] sm:$0xf]
        %v2287 = vld [vmem:[%s2273 + $0x4c] sm:$0xf]
        %v2288 = vld [vmem:[%s2273 + $0x54] sm:$0xf]
        %v2289 = vld [vmem:[%s2273 + $0x58] sm:$0xf]
        %s2290 = scalar_lea.vmem %s1, 48
        %v2291 = vld [vmem:[%s2290] sm:$0xf]
        %v2292 = vld [vmem:[%s2290 + $0x4] sm:$0xf]
        %v2309 = vunpack.c.l.b16 %v2274
        %v2310 = vunpack.c.l.b16 %v2275
        %v2311 = vunpack.c.l.b16 %v2276
        %v2312 = vunpack.c.l.b16 %v2277
        %v2313 = vunpack.c.l.b16 %v2278
        %v2314 = vunpack.c.l.b16 %v2279
        %v2315 = vunpack.c.l.b16 %v2280
        %v2316 = vunpack.c.l.b16 %v2281
        %v2317 = vunpack.c.l.b16 %v2282
        %v2318 = vunpack.c.l.b16 %v2283
        %v2319 = vunpack.c.l.b16 %v2284
        %v2320 = vunpack.c.l.b16 %v2285
        %v2321 = vunpack.c.l.b16 %v2286
        %v2322 = vunpack.c.l.b16 %v2287
        %v2323 = vunpack.c.l.b16 %v2288
        %v2324 = vunpack.c.l.b16 %v2289
        %v2325 = vpack.c.b16 %v2310, %v2309
        %v2326 = vpack.c.b16 %v2312, %v2311
        %v2327 = vpack.c.b16 %v2314, %v2313
        %v2328 = vpack.c.b16 %v2316, %v2315
        %v2329 = vpack.c.b16 %v2318, %v2317
        %v2330 = vpack.c.b16 %v2320, %v2319
        %v2331 = vpack.c.b16 %v2322, %v2321
        %v2332 = vpack.c.b16 %v2324, %v2323
        %v2335 = vunpack.c.l.b16 %v2291
        %v2336 = vunpack.c.l.b16 %v2292
        %v2337 = vpack.c.b16 %v2336, %v2335
        %v2340 = vsel %vm445, %v2325, 0
        %v2343 = vsel %vm445, %v2326, 0
        %v2346 = vsel %vm445, %v2327, 0
        %v2349 = vsel %vm445, %v2328, 0
        %v2352 = vsel %vm445, %v2329, 0
        %v2355 = vsel %vm445, %v2330, 0
        %v2358 = vsel %vm445, %v2331, 0
        %v2361 = vsel %vm445, %v2332, 0
        %2363 = vmatprep.subr.bf16.mxu0 0
        %2364 = vmatpush1.bf16.msra.mxu0 %v2337
        %2365 = vmatprep.subr.bf16.mxu0 0
        %2366 = vmatpush1.bf16.msra.mxu0 0
        %2367 = vmatprep.subr.bf16.mxu0 0
        %2368 = vmatpush1.bf16.msra.mxu0 0
        %2369 = vmatprep.subr.bf16.mxu0 0
        %2370 = vmatpush1.bf16.msra.mxu0 0
        %2371 = vmatprep.subr.bf16.mxu0 0
        %2372 = vmatpush1.bf16.msra.mxu0 0
        %2373 = vmatprep.subr.bf16.mxu0 0
        %2374 = vmatpush1.bf16.msra.mxu0 0
        %2375 = vmatprep.subr.bf16.mxu0 0
        %2376 = vmatpush1.bf16.msra.mxu0 0
        %2377 = vmatprep.subr.bf16.mxu0 0
        %2378 = vmatpush1.bf16.msra.mxu0 0
        %2379 = vmatprep.subr.bf16.mxu0 0
        %2380 = vmatpush1.bf16.msra.mxu0 0
        %2381 = vmatprep.subr.bf16.mxu0 0
        %2382 = vmatpush1.bf16.msra.mxu0 0
        %2383 = vmatprep.subr.bf16.mxu0 0
        %2384 = vmatpush1.bf16.msra.mxu0 0
        %2385 = vmatprep.subr.bf16.mxu0 0
        %2386 = vmatpush1.bf16.msra.mxu0 0
        %2387 = vmatprep.subr.bf16.mxu0 0
        %2388 = vmatpush1.bf16.msra.mxu0 0
        %2389 = vmatprep.subr.bf16.mxu0 0
        %2390 = vmatpush1.bf16.msra.mxu0 0
        %2391 = vmatprep.subr.bf16.mxu0 0
        %2392 = vmatpush1.bf16.msra.mxu0 0
        %2393 = vmatprep.subr.bf16.mxu0 0
        %2394 = vmatpush1.bf16.msra.mxu0 0
        %2395 = vmatprep.mubr.bf16.mxu0 0
        %2396 = vmatmul.mubr.bf16.gmra.mrb[0].mxu0 %v2340
        %v2397 = vpop.f32.mrb[0].mxu0
        %v2398 = vadd.f32 0.0, %v2397
        %v2399 = vpop.f32.mrb[0].mxu0
        %v2400 = vpop.f32.mrb[0].mxu0
        %v2401 = vadd.f32 0.0, %v2400
        %v2402 = vpop.f32.mrb[0].mxu0
        %2403 = vmatprep.mubr.bf16.mxu0 0
        %2404 = vmatmul.mubr.bf16.gmra.mrb[0].mxu0 %v2343
        %v2405 = vpop.f32.mrb[0].mxu0
        %v2406 = vadd.f32 0.0, %v2405
        %v2407 = vpop.f32.mrb[0].mxu0
        %v2408 = vpop.f32.mrb[0].mxu0
        %v2409 = vadd.f32 0.0, %v2408
        %v2410 = vpop.f32.mrb[0].mxu0
        %2411 = vmatprep.mubr.bf16.mxu0 0
        %2412 = vmatmul.mubr.bf16.gmra.mrb[0].mxu0 %v2346
        %v2413 = vpop.f32.mrb[0].mxu0
        %v2414 = vadd.f32 0.0, %v2413
        %v2415 = vpop.f32.mrb[0].mxu0
        %v2416 = vpop.f32.mrb[0].mxu0
        %v2417 = vadd.f32 0.0, %v2416
        %v2418 = vpop.f32.mrb[0].mxu0
        %2419 = vmatprep.mubr.bf16.mxu0 0
        %2420 = vmatmul.mubr.bf16.gmra.mrb[0].mxu0 %v2349
        %v2421 = vpop.f32.mrb[0].mxu0
        %v2422 = vadd.f32 0.0, %v2421
        %v2423 = vpop.f32.mrb[0].mxu0
        %v2424 = vpop.f32.mrb[0].mxu0
        %v2425 = vadd.f32 0.0, %v2424
        %v2426 = vpop.f32.mrb[0].mxu0
        %2427 = vmatprep.mubr.bf16.mxu0 0
        %2428 = vmatmul.mubr.bf16.gmra.mrb[0].mxu0 %v2352
        %v2429 = vpop.f32.mrb[0].mxu0
        %v2430 = vadd.f32 0.0, %v2429
        %v2431 = vpop.f32.mrb[0].mxu0
        %v2432 = vpop.f32.mrb[0].mxu0
        %v2433 = vadd.f32 0.0, %v2432
        %v2434 = vpop.f32.mrb[0].mxu0
        %2435 = vmatprep.mubr.bf16.mxu0 0
        %2436 = vmatmul.mubr.bf16.gmra.mrb[0].mxu0 %v2355
        %v2437 = vpop.f32.mrb[0].mxu0
        %v2438 = vadd.f32 0.0, %v2437
        %v2439 = vpop.f32.mrb[0].mxu0
        %v2440 = vpop.f32.mrb[0].mxu0
        %v2441 = vadd.f32 0.0, %v2440
        %v2442 = vpop.f32.mrb[0].mxu0
        %2443 = vmatprep.mubr.bf16.mxu0 0
        %2444 = vmatmul.mubr.bf16.gmra.mrb[0].mxu0 %v2358
        %v2445 = vpop.f32.mrb[0].mxu0
        %v2446 = vadd.f32 0.0, %v2445
        %v2447 = vpop.f32.mrb[0].mxu0
        %v2448 = vpop.f32.mrb[0].mxu0
        %v2449 = vadd.f32 0.0, %v2448
        %v2450 = vpop.f32.mrb[0].mxu0
        %2451 = vmatprep.mubr.bf16.mxu0 0
        %2452 = vmatmul.mubr.bf16.gmra.mrb[0].mxu0 %v2361
        %v2453 = vpop.f32.mrb[0].mxu0
        %v2454 = vadd.f32 0.0, %v2453
        %v2455 = vpop.f32.mrb[0].mxu0
        %v2456 = vpop.f32.mrb[0].mxu0
        %v2457 = vadd.f32 0.0, %v2456
        %v2458 = vpop.f32.mrb[0].mxu0
        %2459 = vdwg.mxu0
        %v2460 = vld [vmem:[#allocation2] sm:$0xff]
        %v2461 = vld [vmem:[#allocation2 + $0x8] sm:$0xff]
        %v2462 = vld [vmem:[#allocation2 + $0x10] sm:$0xff]
        %v2463 = vld [vmem:[#allocation2 + $0x18] sm:$0xff]
        %v2464 = vld [vmem:[#allocation2 + $0x20] sm:$0xff]
        %v2465 = vld [vmem:[#allocation2 + $0x28] sm:$0xff]
        %v2466 = vld [vmem:[#allocation2 + $0x30] sm:$0xff]
        %v2467 = vld [vmem:[#allocation2 + $0x38] sm:$0xff]
        %v2468 = vld [vmem:[#allocation2 + $0x40] sm:$0xff]
        %v2469 = vld [vmem:[#allocation2 + $0x48] sm:$0xff]
        %v2470 = vld [vmem:[#allocation2 + $0x50] sm:$0xff]
        %v2471 = vld [vmem:[#allocation2 + $0x58] sm:$0xff]
        %v2472 = vld [vmem:[#allocation2 + $0x60] sm:$0xff]
        %v2473 = vld [vmem:[#allocation2 + $0x68] sm:$0xff]
        %v2474 = vld [vmem:[#allocation2 + $0x70] sm:$0xff]
        %v2475 = vld [vmem:[#allocation2 + $0x78] sm:$0xff]
        %v2476 = vadd.f32 %v2460, %v2398
        %v2477 = vadd.f32 %v2461, %v2401
        %v2478 = vadd.f32 %v2462, %v2406
        %v2479 = vadd.f32 %v2463, %v2409
        %v2480 = vadd.f32 %v2464, %v2414
        %v2481 = vadd.f32 %v2465, %v2417
        %v2482 = vadd.f32 %v2466, %v2422
        %v2483 = vadd.f32 %v2467, %v2425
        %v2484 = vadd.f32 %v2468, %v2430
        %v2485 = vadd.f32 %v2469, %v2433
        %v2486 = vadd.f32 %v2470, %v2438
        %v2487 = vadd.f32 %v2471, %v2441
        %v2488 = vadd.f32 %v2472, %v2446
        %v2489 = vadd.f32 %v2473, %v2449
        %v2490 = vadd.f32 %v2474, %v2454
        %v2491 = vadd.f32 %v2475, %v2457
        %2492 = vst.msk [vmem:[#allocation2] sm:$0xff] %vm567, %v2476
        %2493 = vst.msk [vmem:[#allocation2 + $0x8] sm:$0xff] %vm567, %v2477
        %2494 = vst.msk [vmem:[#allocation2 + $0x10] sm:$0xff] %vm567, %v2478
        %2495 = vst.msk [vmem:[#allocation2 + $0x18] sm:$0xff] %vm567, %v2479
        %2496 = vst.msk [vmem:[#allocation2 + $0x20] sm:$0xff] %vm567, %v2480
        %2497 = vst.msk [vmem:[#allocation2 + $0x28] sm:$0xff] %vm567, %v2481
        %2498 = vst.msk [vmem:[#allocation2 + $0x30] sm:$0xff] %vm567, %v2482
        %2499 = vst.msk [vmem:[#allocation2 + $0x38] sm:$0xff] %vm567, %v2483
        %2500 = vst.msk [vmem:[#allocation2 + $0x40] sm:$0xff] %vm567, %v2484
        %2501 = vst.msk [vmem:[#allocation2 + $0x48] sm:$0xff] %vm567, %v2485
        %2502 = vst.msk [vmem:[#allocation2 + $0x50] sm:$0xff] %vm567, %v2486
        %2503 = vst.msk [vmem:[#allocation2 + $0x58] sm:$0xff] %vm567, %v2487
        %2504 = vst.msk [vmem:[#allocation2 + $0x60] sm:$0xff] %vm567, %v2488
        %2505 = vst.msk [vmem:[#allocation2 + $0x68] sm:$0xff] %vm567, %v2489
        %2506 = vst.msk [vmem:[#allocation2 + $0x70] sm:$0xff] %vm567, %v2490
        %2507 = vst.msk [vmem:[#allocation2 + $0x78] sm:$0xff] %vm567, %v2491
        %v2508 = vld [vmem:[%s2273] sm:$0xf]
        %v2509 = vld [vmem:[%s2273 + $0x4] sm:$0xf]
        %v2510 = vld [vmem:[%s2273 + $0x8] sm:$0x1]
        %v2511 = vld [vmem:[%s2273 + $0xc] sm:$0xf]
        %v2512 = vld [vmem:[%s2273 + $0x10] sm:$0xf]
        %v2513 = vld [vmem:[%s2273 + $0x14] sm:$0x1]
        %v2514 = vld [vmem:[%s2273 + $0x18] sm:$0xf]
        %v2515 = vld [vmem:[%s2273 + $0x1c] sm:$0xf]
        %v2516 = vld [vmem:[%s2273 + $0x20] sm:$0x1]
        %v2517 = vld [vmem:[%s2273 + $0x24] sm:$0xf]
        %v2518 = vld [vmem:[%s2273 + $0x28] sm:$0xf]
        %v2519 = vld [vmem:[%s2273 + $0x2c] sm:$0x1]
        %v2520 = vld [vmem:[%s2273 + $0x30] sm:$0xf]
        %v2521 = vld [vmem:[%s2273 + $0x34] sm:$0xf]
        %v2522 = vld [vmem:[%s2273 + $0x38] sm:$0x1]
        %v2523 = vld [vmem:[%s2273 + $0x3c] sm:$0xf]
        %v2524 = vld [vmem:[%s2273 + $0x40] sm:$0xf]
        %v2525 = vld [vmem:[%s2273 + $0x44] sm:$0x1]
        %v2526 = vld [vmem:[%s2273 + $0x48] sm:$0xf]
        %v2527 = vld [vmem:[%s2273 + $0x4c] sm:$0xf]
        %v2528 = vld [vmem:[%s2273 + $0x50] sm:$0x1]
        %v2529 = vld [vmem:[%s2273 + $0x54] sm:$0xf]
        %v2530 = vld [vmem:[%s2273 + $0x58] sm:$0xf]
        %v2531 = vld [vmem:[%s2273 + $0x5c] sm:$0x1]
        %v2533 = vshrl.u32 %v2508, 16
        %v2535 = vrot.slane %v2533, 4
        %v2536 = vshll.u32 %v2508, 16
        %v2538 = vrot.slane %v2536, 5
        %v2539 = vor.u32 %v2535, %v2538
        %v2540 = vrot.slane %v2539, 4
        %v2542 = vshll.u32 %v2509, 16
        %v2544 = vrot.slane %v2542, 5
        %v2545 = vsel %vm610, %v2540, %v2544
        %v2546 = vshrl.u32 %v2509, 16
        %v2548 = vrot.slane %v2546, 4
        %v2549 = vor.u32 %v2548, %v2544
        %v2550 = vrot.slane %v2549, 4
        %v2552 = vshll.u32 %v2510, 16
        %v2554 = vrot.slane %v2552, 5
        %v2555 = vsel %vm610, %v2550, %v2554
        %v2557 = vshrl.u32 %v2511, 16
        %v2559 = vrot.slane %v2557, 4
        %v2560 = vshll.u32 %v2511, 16
        %v2562 = vrot.slane %v2560, 5
        %v2563 = vor.u32 %v2559, %v2562
        %v2564 = vrot.slane %v2563, 4
        %v2566 = vshll.u32 %v2512, 16
        %v2568 = vrot.slane %v2566, 5
        %v2569 = vsel %vm610, %v2564, %v2568
        %v2570 = vshrl.u32 %v2512, 16
        %v2572 = vrot.slane %v2570, 4
        %v2573 = vor.u32 %v2572, %v2568
        %v2574 = vrot.slane %v2573, 4
        %v2576 = vshll.u32 %v2513, 16
        %v2578 = vrot.slane %v2576, 5
        %v2579 = vsel %vm610, %v2574, %v2578
        %v2581 = vshrl.u32 %v2514, 16
        %v2583 = vrot.slane %v2581, 4
        %v2584 = vshll.u32 %v2514, 16
        %v2586 = vrot.slane %v2584, 5
        %v2587 = vor.u32 %v2583, %v2586
        %v2588 = vrot.slane %v2587, 4
        %v2590 = vshll.u32 %v2515, 16
        %v2592 = vrot.slane %v2590, 5
        %v2593 = vsel %vm610, %v2588, %v2592
        %v2594 = vshrl.u32 %v2515, 16
        %v2596 = vrot.slane %v2594, 4
        %v2597 = vor.u32 %v2596, %v2592
        %v2598 = vrot.slane %v2597, 4
        %v2600 = vshll.u32 %v2516, 16
        %v2602 = vrot.slane %v2600, 5
        %v2603 = vsel %vm610, %v2598, %v2602
        %v2605 = vshrl.u32 %v2517, 16
        %v2607 = vrot.slane %v2605, 4
        %v2608 = vshll.u32 %v2517, 16
        %v2610 = vrot.slane %v2608, 5
        %v2611 = vor.u32 %v2607, %v2610
        %v2612 = vrot.slane %v2611, 4
        %v2614 = vshll.u32 %v2518, 16
        %v2616 = vrot.slane %v2614, 5
        %v2617 = vsel %vm610, %v2612, %v2616
        %v2618 = vshrl.u32 %v2518, 16
        %v2620 = vrot.slane %v2618, 4
        %v2621 = vor.u32 %v2620, %v2616
        %v2622 = vrot.slane %v2621, 4
        %v2624 = vshll.u32 %v2519, 16
        %v2626 = vrot.slane %v2624, 5
        %v2627 = vsel %vm610, %v2622, %v2626
        %v2629 = vshrl.u32 %v2520, 16
        %v2631 = vrot.slane %v2629, 4
        %v2632 = vshll.u32 %v2520, 16
        %v2634 = vrot.slane %v2632, 5
        %v2635 = vor.u32 %v2631, %v2634
        %v2636 = vrot.slane %v2635, 4
        %v2638 = vshll.u32 %v2521, 16
        %v2640 = vrot.slane %v2638, 5
        %v2641 = vsel %vm610, %v2636, %v2640
        %v2642 = vshrl.u32 %v2521, 16
        %v2644 = vrot.slane %v2642, 4
        %v2645 = vor.u32 %v2644, %v2640
        %v2646 = vrot.slane %v2645, 4
        %v2648 = vshll.u32 %v2522, 16
        %v2650 = vrot.slane %v2648, 5
        %v2651 = vsel %vm610, %v2646, %v2650
        %v2653 = vshrl.u32 %v2523, 16
        %v2655 = vrot.slane %v2653, 4
        %v2656 = vshll.u32 %v2523, 16
        %v2658 = vrot.slane %v2656, 5
        %v2659 = vor.u32 %v2655, %v2658
        %v2660 = vrot.slane %v2659, 4
        %v2662 = vshll.u32 %v2524, 16
        %v2664 = vrot.slane %v2662, 5
        %v2665 = vsel %vm610, %v2660, %v2664
        %v2666 = vshrl.u32 %v2524, 16
        %v2668 = vrot.slane %v2666, 4
        %v2669 = vor.u32 %v2668, %v2664
        %v2670 = vrot.slane %v2669, 4
        %v2672 = vshll.u32 %v2525, 16
        %v2674 = vrot.slane %v2672, 5
        %v2675 = vsel %vm610, %v2670, %v2674
        %v2677 = vshrl.u32 %v2526, 16
        %v2679 = vrot.slane %v2677, 4
        %v2680 = vshll.u32 %v2526, 16
        %v2682 = vrot.slane %v2680, 5
        %v2683 = vor.u32 %v2679, %v2682
        %v2684 = vrot.slane %v2683, 4
        %v2686 = vshll.u32 %v2527, 16
        %v2688 = vrot.slane %v2686, 5
        %v2689 = vsel %vm610, %v2684, %v2688
        %v2690 = vshrl.u32 %v2527, 16
        %v2692 = vrot.slane %v2690, 4
        %v2693 = vor.u32 %v2692, %v2688
        %v2694 = vrot.slane %v2693, 4
        %v2696 = vshll.u32 %v2528, 16
        %v2698 = vrot.slane %v2696, 5
        %v2699 = vsel %vm610, %v2694, %v2698
        %v2701 = vshrl.u32 %v2529, 16
        %v2703 = vrot.slane %v2701, 4
        %v2704 = vshll.u32 %v2529, 16
        %v2706 = vrot.slane %v2704, 5
        %v2707 = vor.u32 %v2703, %v2706
        %v2708 = vrot.slane %v2707, 4
        %v2710 = vshll.u32 %v2530, 16
        %v2712 = vrot.slane %v2710, 5
        %v2713 = vsel %vm610, %v2708, %v2712
        %v2714 = vshrl.u32 %v2530, 16
        %v2716 = vrot.slane %v2714, 4
        %v2717 = vor.u32 %v2716, %v2712
        %v2718 = vrot.slane %v2717, 4
        %v2720 = vshll.u32 %v2531, 16
        %v2722 = vrot.slane %v2720, 5
        %v2723 = vsel %vm610, %v2718, %v2722
        %s2724 = scalar_lea.vmem %s1, 56
        %v2725 = vld [vmem:[%s2724] sm:$0xf]
        %v2726 = vld [vmem:[%s2724 + $0x4] sm:$0xf]
        %v2727 = vunpack.c.l.b16 %v2545
        %v2728 = vunpack.c.l.b16 %v2555
        %v2729 = vunpack.c.l.b16 %v2569
        %v2730 = vunpack.c.l.b16 %v2579
        %v2731 = vunpack.c.l.b16 %v2593
        %v2732 = vunpack.c.l.b16 %v2603
        %v2733 = vunpack.c.l.b16 %v2617
        %v2734 = vunpack.c.l.b16 %v2627
        %v2735 = vunpack.c.l.b16 %v2641
        %v2736 = vunpack.c.l.b16 %v2651
        %v2737 = vunpack.c.l.b16 %v2665
        %v2738 = vunpack.c.l.b16 %v2675
        %v2739 = vunpack.c.l.b16 %v2689
        %v2740 = vunpack.c.l.b16 %v2699
        %v2741 = vunpack.c.l.b16 %v2713
        %v2742 = vunpack.c.l.b16 %v2723
        %v2743 = vpack.c.b16 %v2728, %v2727
        %v2744 = vpack.c.b16 %v2730, %v2729
        %v2745 = vpack.c.b16 %v2732, %v2731
        %v2746 = vpack.c.b16 %v2734, %v2733
        %v2747 = vpack.c.b16 %v2736, %v2735
        %v2748 = vpack.c.b16 %v2738, %v2737
        %v2749 = vpack.c.b16 %v2740, %v2739
        %v2750 = vpack.c.b16 %v2742, %v2741
        %v2753 = vunpack.c.l.b16 %v2725
        %v2754 = vunpack.c.l.b16 %v2726
        %v2755 = vpack.c.b16 %v2754, %v2753
        %v2758 = vsel %vm445, %v2743, 0
        %v2761 = vsel %vm445, %v2744, 0
        %v2764 = vsel %vm445, %v2745, 0
        %v2767 = vsel %vm445, %v2746, 0
        %v2770 = vsel %vm445, %v2747, 0
        %v2773 = vsel %vm445, %v2748, 0
        %v2776 = vsel %vm445, %v2749, 0
        %v2779 = vsel %vm445, %v2750, 0
        %2781 = vmatprep.subr.bf16.mxu0 0
        %2782 = vmatpush1.bf16.msra.mxu0 %v2755
        %2783 = vmatprep.subr.bf16.mxu0 0
        %2784 = vmatpush1.bf16.msra.mxu0 0
        %2785 = vmatprep.subr.bf16.mxu0 0
        %2786 = vmatpush1.bf16.msra.mxu0 0
        %2787 = vmatprep.subr.bf16.mxu0 0
        %2788 = vmatpush1.bf16.msra.mxu0 0
        %2789 = vmatprep.subr.bf16.mxu0 0
        %2790 = vmatpush1.bf16.msra.mxu0 0
        %2791 = vmatprep.subr.bf16.mxu0 0
        %2792 = vmatpush1.bf16.msra.mxu0 0
        %2793 = vmatprep.subr.bf16.mxu0 0
        %2794 = vmatpush1.bf16.msra.mxu0 0
        %2795 = vmatprep.subr.bf16.mxu0 0
        %2796 = vmatpush1.bf16.msra.mxu0 0
        %2797 = vmatprep.subr.bf16.mxu0 0
        %2798 = vmatpush1.bf16.msra.mxu0 0
        %2799 = vmatprep.subr.bf16.mxu0 0
        %2800 = vmatpush1.bf16.msra.mxu0 0
        %2801 = vmatprep.subr.bf16.mxu0 0
        %2802 = vmatpush1.bf16.msra.mxu0 0
        %2803 = vmatprep.subr.bf16.mxu0 0
        %2804 = vmatpush1.bf16.msra.mxu0 0
        %2805 = vmatprep.subr.bf16.mxu0 0
        %2806 = vmatpush1.bf16.msra.mxu0 0
        %2807 = vmatprep.subr.bf16.mxu0 0
        %2808 = vmatpush1.bf16.msra.mxu0 0
        %2809 = vmatprep.subr.bf16.mxu0 0
        %2810 = vmatpush1.bf16.msra.mxu0 0
        %2811 = vmatprep.subr.bf16.mxu0 0
        %2812 = vmatpush1.bf16.msra.mxu0 0
        %2813 = vmatprep.mubr.bf16.mxu0 0
        %2814 = vmatmul.mubr.bf16.gmra.mrb[0].mxu0 %v2758
        %v2815 = vpop.f32.mrb[0].mxu0
        %v2816 = vadd.f32 0.0, %v2815
        %v2817 = vpop.f32.mrb[0].mxu0
        %v2818 = vpop.f32.mrb[0].mxu0
        %v2819 = vadd.f32 0.0, %v2818
        %v2820 = vpop.f32.mrb[0].mxu0
        %2821 = vmatprep.mubr.bf16.mxu0 0
        %2822 = vmatmul.mubr.bf16.gmra.mrb[0].mxu0 %v2761
        %v2823 = vpop.f32.mrb[0].mxu0
        %v2824 = vadd.f32 0.0, %v2823
        %v2825 = vpop.f32.mrb[0].mxu0
        %v2826 = vpop.f32.mrb[0].mxu0
        %v2827 = vadd.f32 0.0, %v2826
        %v2828 = vpop.f32.mrb[0].mxu0
        %2829 = vmatprep.mubr.bf16.mxu0 0
        %2830 = vmatmul.mubr.bf16.gmra.mrb[0].mxu0 %v2764
        %v2831 = vpop.f32.mrb[0].mxu0
        %v2832 = vadd.f32 0.0, %v2831
        %v2833 = vpop.f32.mrb[0].mxu0
        %v2834 = vpop.f32.mrb[0].mxu0
        %v2835 = vadd.f32 0.0, %v2834
        %v2836 = vpop.f32.mrb[0].mxu0
        %2837 = vmatprep.mubr.bf16.mxu0 0
        %2838 = vmatmul.mubr.bf16.gmra.mrb[0].mxu0 %v2767
        %v2839 = vpop.f32.mrb[0].mxu0
        %v2840 = vadd.f32 0.0, %v2839
        %v2841 = vpop.f32.mrb[0].mxu0
        %v2842 = vpop.f32.mrb[0].mxu0
        %v2843 = vadd.f32 0.0, %v2842
        %v2844 = vpop.f32.mrb[0].mxu0
        %2845 = vmatprep.mubr.bf16.mxu0 0
        %2846 = vmatmul.mubr.bf16.gmra.mrb[0].mxu0 %v2770
        %v2847 = vpop.f32.mrb[0].mxu0
        %v2848 = vadd.f32 0.0, %v2847
        %v2849 = vpop.f32.mrb[0].mxu0
        %v2850 = vpop.f32.mrb[0].mxu0
        %v2851 = vadd.f32 0.0, %v2850
        %v2852 = vpop.f32.mrb[0].mxu0
        %2853 = vmatprep.mubr.bf16.mxu0 0
        %2854 = vmatmul.mubr.bf16.gmra.mrb[0].mxu0 %v2773
        %v2855 = vpop.f32.mrb[0].mxu0
        %v2856 = vadd.f32 0.0, %v2855
        %v2857 = vpop.f32.mrb[0].mxu0
        %v2858 = vpop.f32.mrb[0].mxu0
        %v2859 = vadd.f32 0.0, %v2858
        %v2860 = vpop.f32.mrb[0].mxu0
        %2861 = vmatprep.mubr.bf16.mxu0 0
        %2862 = vmatmul.mubr.bf16.gmra.mrb[0].mxu0 %v2776
        %v2863 = vpop.f32.mrb[0].mxu0
        %v2864 = vadd.f32 0.0, %v2863
        %v2865 = vpop.f32.mrb[0].mxu0
        %v2866 = vpop.f32.mrb[0].mxu0
        %v2867 = vadd.f32 0.0, %v2866
        %v2868 = vpop.f32.mrb[0].mxu0
        %2869 = vmatprep.mubr.bf16.mxu0 0
        %2870 = vmatmul.mubr.bf16.gmra.mrb[0].mxu0 %v2779
        %v2871 = vpop.f32.mrb[0].mxu0
        %v2872 = vadd.f32 0.0, %v2871
        %v2873 = vpop.f32.mrb[0].mxu0
        %v2874 = vpop.f32.mrb[0].mxu0
        %v2875 = vadd.f32 0.0, %v2874
        %v2876 = vpop.f32.mrb[0].mxu0
        %2877 = vdwg.mxu0
        %v2878 = vld [vmem:[#allocation2] sm:$0xff]
        %v2879 = vld [vmem:[#allocation2 + $0x8] sm:$0xff]
        %v2880 = vld [vmem:[#allocation2 + $0x10] sm:$0xff]
        %v2881 = vld [vmem:[#allocation2 + $0x18] sm:$0xff]
        %v2882 = vld [vmem:[#allocation2 + $0x20] sm:$0xff]
        %v2883 = vld [vmem:[#allocation2 + $0x28] sm:$0xff]
        %v2884 = vld [vmem:[#allocation2 + $0x30] sm:$0xff]
        %v2885 = vld [vmem:[#allocation2 + $0x38] sm:$0xff]
        %v2886 = vld [vmem:[#allocation2 + $0x40] sm:$0xff]
        %v2887 = vld [vmem:[#allocation2 + $0x48] sm:$0xff]
        %v2888 = vld [vmem:[#allocation2 + $0x50] sm:$0xff]
        %v2889 = vld [vmem:[#allocation2 + $0x58] sm:$0xff]
        %v2890 = vld [vmem:[#allocation2 + $0x60] sm:$0xff]
        %v2891 = vld [vmem:[#allocation2 + $0x68] sm:$0xff]
        %v2892 = vld [vmem:[#allocation2 + $0x70] sm:$0xff]
        %v2893 = vld [vmem:[#allocation2 + $0x78] sm:$0xff]
        %v2894 = vadd.f32 %v2878, %v2816
        %v2895 = vadd.f32 %v2879, %v2819
        %v2896 = vadd.f32 %v2880, %v2824
        %v2897 = vadd.f32 %v2881, %v2827
        %v2898 = vadd.f32 %v2882, %v2832
        %v2899 = vadd.f32 %v2883, %v2835
        %v2900 = vadd.f32 %v2884, %v2840
        %v2901 = vadd.f32 %v2885, %v2843
        %v2902 = vadd.f32 %v2886, %v2848
        %v2903 = vadd.f32 %v2887, %v2851
        %v2904 = vadd.f32 %v2888, %v2856
        %v2905 = vadd.f32 %v2889, %v2859
        %v2906 = vadd.f32 %v2890, %v2864
        %v2907 = vadd.f32 %v2891, %v2867
        %v2908 = vadd.f32 %v2892, %v2872
        %v2909 = vadd.f32 %v2893, %v2875
        %2910 = vst.msk [vmem:[#allocation2] sm:$0xff] %vm567, %v2894
        %2911 = vst.msk [vmem:[#allocation2 + $0x8] sm:$0xff] %vm567, %v2895
        %2912 = vst.msk [vmem:[#allocation2 + $0x10] sm:$0xff] %vm567, %v2896
        %2913 = vst.msk [vmem:[#allocation2 + $0x18] sm:$0xff] %vm567, %v2897
        %2914 = vst.msk [vmem:[#allocation2 + $0x20] sm:$0xff] %vm567, %v2898
        %2915 = vst.msk [vmem:[#allocation2 + $0x28] sm:$0xff] %vm567, %v2899
        %2916 = vst.msk [vmem:[#allocation2 + $0x30] sm:$0xff] %vm567, %v2900
        %2917 = vst.msk [vmem:[#allocation2 + $0x38] sm:$0xff] %vm567, %v2901
        %2918 = vst.msk [vmem:[#allocation2 + $0x40] sm:$0xff] %vm567, %v2902
        %2919 = vst.msk [vmem:[#allocation2 + $0x48] sm:$0xff] %vm567, %v2903
        %2920 = vst.msk [vmem:[#allocation2 + $0x50] sm:$0xff] %vm567, %v2904
        %2921 = vst.msk [vmem:[#allocation2 + $0x58] sm:$0xff] %vm567, %v2905
        %2922 = vst.msk [vmem:[#allocation2 + $0x60] sm:$0xff] %vm567, %v2906
        %2923 = vst.msk [vmem:[#allocation2 + $0x68] sm:$0xff] %vm567, %v2907
        %2924 = vst.msk [vmem:[#allocation2 + $0x70] sm:$0xff] %vm567, %v2908
        %2925 = vst.msk [vmem:[#allocation2 + $0x78] sm:$0xff] %vm567, %v2909
        %v2926 = vld [vmem:[%s2273] sm:$0xe]
        %v2927 = vld [vmem:[%s2273 + $0x4] sm:$0xf]
        %v2928 = vld [vmem:[%s2273 + $0x8] sm:$0x1]
        %v2929 = vld [vmem:[%s2273 + $0xc] sm:$0xe]
        %v2930 = vld [vmem:[%s2273 + $0x10] sm:$0xf]
        %v2931 = vld [vmem:[%s2273 + $0x14] sm:$0x1]
        %v2932 = vld [vmem:[%s2273 + $0x18] sm:$0xe]
        %v2933 = vld [vmem:[%s2273 + $0x1c] sm:$0xf]
        %v2934 = vld [vmem:[%s2273 + $0x20] sm:$0x1]
        %v2935 = vld [vmem:[%s2273 + $0x24] sm:$0xe]
        %v2936 = vld [vmem:[%s2273 + $0x28] sm:$0xf]
        %v2937 = vld [vmem:[%s2273 + $0x2c] sm:$0x1]
        %v2938 = vld [vmem:[%s2273 + $0x30] sm:$0xe]
        %v2939 = vld [vmem:[%s2273 + $0x34] sm:$0xf]
        %v2940 = vld [vmem:[%s2273 + $0x38] sm:$0x1]
        %v2941 = vld [vmem:[%s2273 + $0x3c] sm:$0xe]
        %v2942 = vld [vmem:[%s2273 + $0x40] sm:$0xf]
        %v2943 = vld [vmem:[%s2273 + $0x44] sm:$0x1]
        %v2944 = vld [vmem:[%s2273 + $0x48] sm:$0xe]
        %v2945 = vld [vmem:[%s2273 + $0x4c] sm:$0xf]
        %v2946 = vld [vmem:[%s2273 + $0x50] sm:$0x1]
        %v2947 = vld [vmem:[%s2273 + $0x54] sm:$0xe]
        %v2948 = vld [vmem:[%s2273 + $0x58] sm:$0xf]
        %v2949 = vld [vmem:[%s2273 + $0x5c] sm:$0x1]
        %v2974 = vrot.slane %v2926, 5
        %v2975 = vrot.slane %v2974, 4
        %v2976 = vrot.slane %v2927, 5
        %v2977 = vsel %vm1055, %v2975, %v2976
        %v2978 = vrot.slane %v2976, 4
        %v2979 = vrot.slane %v2928, 5
        %v2980 = vsel %vm1055, %v2978, %v2979
        %v2981 = vrot.slane %v2929, 5
        %v2982 = vrot.slane %v2981, 4
        %v2983 = vrot.slane %v2930, 5
        %v2984 = vsel %vm1055, %v2982, %v2983
        %v2985 = vrot.slane %v2983, 4
        %v2986 = vrot.slane %v2931, 5
        %v2987 = vsel %vm1055, %v2985, %v2986
        %v2988 = vrot.slane %v2932, 5
        %v2989 = vrot.slane %v2988, 4
        %v2990 = vrot.slane %v2933, 5
        %v2991 = vsel %vm1055, %v2989, %v2990
        %v2992 = vrot.slane %v2990, 4
        %v2993 = vrot.slane %v2934, 5
        %v2994 = vsel %vm1055, %v2992, %v2993
        %v2995 = vrot.slane %v2935, 5
        %v2996 = vrot.slane %v2995, 4
        %v2997 = vrot.slane %v2936, 5
        %v2998 = vsel %vm1055, %v2996, %v2997
        %v2999 = vrot.slane %v2997, 4
        %v3000 = vrot.slane %v2937, 5
        %v3001 = vsel %vm1055, %v2999, %v3000
        %v3002 = vrot.slane %v2938, 5
        %v3003 = vrot.slane %v3002, 4
        %v3004 = vrot.slane %v2939, 5
        %v3005 = vsel %vm1055, %v3003, %v3004
        %v3006 = vrot.slane %v3004, 4
        %v3007 = vrot.slane %v2940, 5
        %v3008 = vsel %vm1055, %v3006, %v3007
        %v3009 = vrot.slane %v2941, 5
        %v3010 = vrot.slane %v3009, 4
        %v3011 = vrot.slane %v2942, 5
        %v3012 = vsel %vm1055, %v3010, %v3011
        %v3013 = vrot.slane %v3011, 4
        %v3014 = vrot.slane %v2943, 5
        %v3015 = vsel %vm1055, %v3013, %v3014
        %v3016 = vrot.slane %v2944, 5
        %v3017 = vrot.slane %v3016, 4
        %v3018 = vrot.slane %v2945, 5
        %v3019 = vsel %vm1055, %v3017, %v3018
        %v3020 = vrot.slane %v3018, 4
        %v3021 = vrot.slane %v2946, 5
        %v3022 = vsel %vm1055, %v3020, %v3021
        %v3023 = vrot.slane %v2947, 5
        %v3024 = vrot.slane %v3023, 4
        %v3025 = vrot.slane %v2948, 5
        %v3026 = vsel %vm1055, %v3024, %v3025
        %v3027 = vrot.slane %v3025, 4
        %v3028 = vrot.slane %v2949, 5
        %v3029 = vsel %vm1055, %v3027, %v3028
        %s3030 = scalar_lea.vmem %s1, 64
        %v3031 = vld [vmem:[%s3030] sm:$0xf]
        %v3032 = vld [vmem:[%s3030 + $0x4] sm:$0xf]
        %v3033 = vunpack.c.l.b16 %v2977
        %v3034 = vunpack.c.l.b16 %v2980
        %v3035 = vunpack.c.l.b16 %v2984
        %v3036 = vunpack.c.l.b16 %v2987
        %v3037 = vunpack.c.l.b16 %v2991
        %v3038 = vunpack.c.l.b16 %v2994
        %v3039 = vunpack.c.l.b16 %v2998
        %v3040 = vunpack.c.l.b16 %v3001
        %v3041 = vunpack.c.l.b16 %v3005
        %v3042 = vunpack.c.l.b16 %v3008
        %v3043 = vunpack.c.l.b16 %v3012
        %v3044 = vunpack.c.l.b16 %v3015
        %v3045 = vunpack.c.l.b16 %v3019
        %v3046 = vunpack.c.l.b16 %v3022
        %v3047 = vunpack.c.l.b16 %v3026
        %v3048 = vunpack.c.l.b16 %v3029
        %v3049 = vpack.c.b16 %v3034, %v3033
        %v3050 = vpack.c.b16 %v3036, %v3035
        %v3051 = vpack.c.b16 %v3038, %v3037
        %v3052 = vpack.c.b16 %v3040, %v3039
        %v3053 = vpack.c.b16 %v3042, %v3041
        %v3054 = vpack.c.b16 %v3044, %v3043
        %v3055 = vpack.c.b16 %v3046, %v3045
        %v3056 = vpack.c.b16 %v3048, %v3047
        %v3059 = vunpack.c.l.b16 %v3031
        %v3060 = vunpack.c.l.b16 %v3032
        %v3061 = vpack.c.b16 %v3060, %v3059
        %v3064 = vsel %vm445, %v3049, 0
        %v3067 = vsel %vm445, %v3050, 0
        %v3070 = vsel %vm445, %v3051, 0
        %v3073 = vsel %vm445, %v3052, 0
        %v3076 = vsel %vm445, %v3053, 0
        %v3079 = vsel %vm445, %v3054, 0
        %v3082 = vsel %vm445, %v3055, 0
        %v3085 = vsel %vm445, %v3056, 0
        %3087 = vmatprep.subr.bf16.mxu0 0
        %3088 = vmatpush1.bf16.msra.mxu0 %v3061
        %3089 = vmatprep.subr.bf16.mxu0 0
        %3090 = vmatpush1.bf16.msra.mxu0 0
        %3091 = vmatprep.subr.bf16.mxu0 0
        %3092 = vmatpush1.bf16.msra.mxu0 0
        %3093 = vmatprep.subr.bf16.mxu0 0
        %3094 = vmatpush1.bf16.msra.mxu0 0
        %3095 = vmatprep.subr.bf16.mxu0 0
        %3096 = vmatpush1.bf16.msra.mxu0 0
        %3097 = vmatprep.subr.bf16.mxu0 0
        %3098 = vmatpush1.bf16.msra.mxu0 0
        %3099 = vmatprep.subr.bf16.mxu0 0
        %3100 = vmatpush1.bf16.msra.mxu0 0
        %3101 = vmatprep.subr.bf16.mxu0 0
        %3102 = vmatpush1.bf16.msra.mxu0 0
        %3103 = vmatprep.subr.bf16.mxu0 0
        %3104 = vmatpush1.bf16.msra.mxu0 0
        %3105 = vmatprep.subr.bf16.mxu0 0
        %3106 = vmatpush1.bf16.msra.mxu0 0
        %3107 = vmatprep.subr.bf16.mxu0 0
        %3108 = vmatpush1.bf16.msra.mxu0 0
        %3109 = vmatprep.subr.bf16.mxu0 0
        %3110 = vmatpush1.bf16.msra.mxu0 0
        %3111 = vmatprep.subr.bf16.mxu0 0
        %3112 = vmatpush1.bf16.msra.mxu0 0
        %3113 = vmatprep.subr.bf16.mxu0 0
        %3114 = vmatpush1.bf16.msra.mxu0 0
        %3115 = vmatprep.subr.bf16.mxu0 0
        %3116 = vmatpush1.bf16.msra.mxu0 0
        %3117 = vmatprep.subr.bf16.mxu0 0
        %3118 = vmatpush1.bf16.msra.mxu0 0
        %3119 = vmatprep.mubr.bf16.mxu0 0
        %3120 = vmatmul.mubr.bf16.gmra.mrb[0].mxu0 %v3064
        %v3121 = vpop.f32.mrb[0].mxu0
        %v3122 = vadd.f32 0.0, %v3121
        %v3123 = vpop.f32.mrb[0].mxu0
        %v3124 = vpop.f32.mrb[0].mxu0
        %v3125 = vadd.f32 0.0, %v3124
        %v3126 = vpop.f32.mrb[0].mxu0
        %3127 = vmatprep.mubr.bf16.mxu0 0
        %3128 = vmatmul.mubr.bf16.gmra.mrb[0].mxu0 %v3067
        %v3129 = vpop.f32.mrb[0].mxu0
        %v3130 = vadd.f32 0.0, %v3129
        %v3131 = vpop.f32.mrb[0].mxu0
        %v3132 = vpop.f32.mrb[0].mxu0
        %v3133 = vadd.f32 0.0, %v3132
        %v3134 = vpop.f32.mrb[0].mxu0
        %3135 = vmatprep.mubr.bf16.mxu0 0
        %3136 = vmatmul.mubr.bf16.gmra.mrb[0].mxu0 %v3070
        %v3137 = vpop.f32.mrb[0].mxu0
        %v3138 = vadd.f32 0.0, %v3137
        %v3139 = vpop.f32.mrb[0].mxu0
        %v3140 = vpop.f32.mrb[0].mxu0
        %v3141 = vadd.f32 0.0, %v3140
        %v3142 = vpop.f32.mrb[0].mxu0
        %3143 = vmatprep.mubr.bf16.mxu0 0
        %3144 = vmatmul.mubr.bf16.gmra.mrb[0].mxu0 %v3073
        %v3145 = vpop.f32.mrb[0].mxu0
        %v3146 = vadd.f32 0.0, %v3145
        %v3147 = vpop.f32.mrb[0].mxu0
        %v3148 = vpop.f32.mrb[0].mxu0
        %v3149 = vadd.f32 0.0, %v3148
        %v3150 = vpop.f32.mrb[0].mxu0
        %3151 = vmatprep.mubr.bf16.mxu0 0
        %3152 = vmatmul.mubr.bf16.gmra.mrb[0].mxu0 %v3076
        %v3153 = vpop.f32.mrb[0].mxu0
        %v3154 = vadd.f32 0.0, %v3153
        %v3155 = vpop.f32.mrb[0].mxu0
        %v3156 = vpop.f32.mrb[0].mxu0
        %v3157 = vadd.f32 0.0, %v3156
        %v3158 = vpop.f32.mrb[0].mxu0
        %3159 = vmatprep.mubr.bf16.mxu0 0
        %3160 = vmatmul.mubr.bf16.gmra.mrb[0].mxu0 %v3079
        %v3161 = vpop.f32.mrb[0].mxu0
        %v3162 = vadd.f32 0.0, %v3161
        %v3163 = vpop.f32.mrb[0].mxu0
        %v3164 = vpop.f32.mrb[0].mxu0
        %v3165 = vadd.f32 0.0, %v3164
        %v3166 = vpop.f32.mrb[0].mxu0
        %3167 = vmatprep.mubr.bf16.mxu0 0
        %3168 = vmatmul.mubr.bf16.gmra.mrb[0].mxu0 %v3082
        %v3169 = vpop.f32.mrb[0].mxu0
        %v3170 = vadd.f32 0.0, %v3169
        %v3171 = vpop.f32.mrb[0].mxu0
        %v3172 = vpop.f32.mrb[0].mxu0
        %v3173 = vadd.f32 0.0, %v3172
        %v3174 = vpop.f32.mrb[0].mxu0
        %3175 = vmatprep.mubr.bf16.mxu0 0
        %3176 = vmatmul.mubr.bf16.gmra.mrb[0].mxu0 %v3085
        %v3177 = vpop.f32.mrb[0].mxu0
        %v3178 = vadd.f32 0.0, %v3177
        %v3179 = vpop.f32.mrb[0].mxu0
        %v3180 = vpop.f32.mrb[0].mxu0
        %v3181 = vadd.f32 0.0, %v3180
        %v3182 = vpop.f32.mrb[0].mxu0
        %3183 = vdwg.mxu0
        %v3184 = vld [vmem:[#allocation2] sm:$0xff]
        %v3185 = vld [vmem:[#allocation2 + $0x8] sm:$0xff]
        %v3186 = vld [vmem:[#allocation2 + $0x10] sm:$0xff]
        %v3187 = vld [vmem:[#allocation2 + $0x18] sm:$0xff]
        %v3188 = vld [vmem:[#allocation2 + $0x20] sm:$0xff]
        %v3189 = vld [vmem:[#allocation2 + $0x28] sm:$0xff]
        %v3190 = vld [vmem:[#allocation2 + $0x30] sm:$0xff]
        %v3191 = vld [vmem:[#allocation2 + $0x38] sm:$0xff]
        %v3192 = vld [vmem:[#allocation2 + $0x40] sm:$0xff]
        %v3193 = vld [vmem:[#allocation2 + $0x48] sm:$0xff]
        %v3194 = vld [vmem:[#allocation2 + $0x50] sm:$0xff]
        %v3195 = vld [vmem:[#allocation2 + $0x58] sm:$0xff]
        %v3196 = vld [vmem:[#allocation2 + $0x60] sm:$0xff]
        %v3197 = vld [vmem:[#allocation2 + $0x68] sm:$0xff]
        %v3198 = vld [vmem:[#allocation2 + $0x70] sm:$0xff]
        %v3199 = vld [vmem:[#allocation2 + $0x78] sm:$0xff]
        %v3200 = vadd.f32 %v3184, %v3122
        %v3201 = vadd.f32 %v3185, %v3125
        %v3202 = vadd.f32 %v3186, %v3130
        %v3203 = vadd.f32 %v3187, %v3133
        %v3204 = vadd.f32 %v3188, %v3138
        %v3205 = vadd.f32 %v3189, %v3141
        %v3206 = vadd.f32 %v3190, %v3146
        %v3207 = vadd.f32 %v3191, %v3149
        %v3208 = vadd.f32 %v3192, %v3154
        %v3209 = vadd.f32 %v3193, %v3157
        %v3210 = vadd.f32 %v3194, %v3162
        %v3211 = vadd.f32 %v3195, %v3165
        %v3212 = vadd.f32 %v3196, %v3170
        %v3213 = vadd.f32 %v3197, %v3173
        %v3214 = vadd.f32 %v3198, %v3178
        %v3215 = vadd.f32 %v3199, %v3181
        %3216 = vst.msk [vmem:[#allocation2] sm:$0xff] %vm567, %v3200
        %3217 = vst.msk [vmem:[#allocation2 + $0x8] sm:$0xff] %vm567, %v3201
        %3218 = vst.msk [vmem:[#allocation2 + $0x10] sm:$0xff] %vm567, %v3202
        %3219 = vst.msk [vmem:[#allocation2 + $0x18] sm:$0xff] %vm567, %v3203
        %3220 = vst.msk [vmem:[#allocation2 + $0x20] sm:$0xff] %vm567, %v3204
        %3221 = vst.msk [vmem:[#allocation2 + $0x28] sm:$0xff] %vm567, %v3205
        %3222 = vst.msk [vmem:[#allocation2 + $0x30] sm:$0xff] %vm567, %v3206
        %3223 = vst.msk [vmem:[#allocation2 + $0x38] sm:$0xff] %vm567, %v3207
        %3224 = vst.msk [vmem:[#allocation2 + $0x40] sm:$0xff] %vm567, %v3208
        %3225 = vst.msk [vmem:[#allocation2 + $0x48] sm:$0xff] %vm567, %v3209
        %3226 = vst.msk [vmem:[#allocation2 + $0x50] sm:$0xff] %vm567, %v3210
        %3227 = vst.msk [vmem:[#allocation2 + $0x58] sm:$0xff] %vm567, %v3211
        %3228 = vst.msk [vmem:[#allocation2 + $0x60] sm:$0xff] %vm567, %v3212
        %3229 = vst.msk [vmem:[#allocation2 + $0x68] sm:$0xff] %vm567, %v3213
        %3230 = vst.msk [vmem:[#allocation2 + $0x70] sm:$0xff] %vm567, %v3214
        %3231 = vst.msk [vmem:[#allocation2 + $0x78] sm:$0xff] %vm567, %v3215
        %v3232 = vld [vmem:[#allocation2] sm:$0xff]
        %v3233 = vld [vmem:[#allocation2 + $0x8] sm:$0xff]
        %v3234 = vld [vmem:[#allocation2 + $0x10] sm:$0xff]
        %v3235 = vld [vmem:[#allocation2 + $0x18] sm:$0xff]
        %v3236 = vld [vmem:[#allocation2 + $0x20] sm:$0xff]
        %v3237 = vld [vmem:[#allocation2 + $0x28] sm:$0xff]
        %v3238 = vld [vmem:[#allocation2 + $0x30] sm:$0xff]
        %v3239 = vld [vmem:[#allocation2 + $0x38] sm:$0xff]
        %v3240 = vld [vmem:[#allocation2 + $0x40] sm:$0xff]
        %v3241 = vld [vmem:[#allocation2 + $0x48] sm:$0xff]
        %v3242 = vld [vmem:[#allocation2 + $0x50] sm:$0xff]
        %v3243 = vld [vmem:[#allocation2 + $0x58] sm:$0xff]
        %v3244 = vld [vmem:[#allocation2 + $0x60] sm:$0xff]
        %v3245 = vld [vmem:[#allocation2 + $0x68] sm:$0xff]
        %v3246 = vld [vmem:[#allocation2 + $0x70] sm:$0xff]
        %v3247 = vld [vmem:[#allocation2 + $0x78] sm:$0xff]
        %v3248 = vld [vmem:[#allocation3] sm:$0x1]
        %v3250 = vlaneseq
        %v3251 = vshrl.u32 %v3250, 7
        %v3252 = vsub.s32 0, %v3251
        %v3253 = vrot.slane %v3248, %v3252
        %v3255 = vadd.f32 %v3232, %v3253
        %v3256 = vadd.f32 %v3233, %v3253
        %v3257 = vadd.f32 %v3234, %v3253
        %v3258 = vadd.f32 %v3235, %v3253
        %v3259 = vadd.f32 %v3236, %v3253
        %v3260 = vadd.f32 %v3237, %v3253
        %v3261 = vadd.f32 %v3238, %v3253
        %v3262 = vadd.f32 %v3239, %v3253
        %v3263 = vadd.f32 %v3240, %v3253
        %v3264 = vadd.f32 %v3241, %v3253
        %v3265 = vadd.f32 %v3242, %v3253
        %v3266 = vadd.f32 %v3243, %v3253
        %v3267 = vadd.f32 %v3244, %v3253
        %v3268 = vadd.f32 %v3245, %v3253
        %v3269 = vadd.f32 %v3246, %v3253
        %v3270 = vadd.f32 %v3247, %v3253
        %v3271 = vmax.f32 %v3255, 0.0
        %v3272 = vmax.f32 %v3256, 0.0
        %v3273 = vmax.f32 %v3257, 0.0
        %v3274 = vmax.f32 %v3258, 0.0
        %v3275 = vmax.f32 %v3259, 0.0
        %v3276 = vmax.f32 %v3260, 0.0
        %v3277 = vmax.f32 %v3261, 0.0
        %v3278 = vmax.f32 %v3262, 0.0
        %v3279 = vmax.f32 %v3263, 0.0
        %v3280 = vmax.f32 %v3264, 0.0
        %v3281 = vmax.f32 %v3265, 0.0
        %v3282 = vmax.f32 %v3266, 0.0
        %v3283 = vmax.f32 %v3267, 0.0
        %v3284 = vmax.f32 %v3268, 0.0
        %v3285 = vmax.f32 %v3269, 0.0
        %v3286 = vmax.f32 %v3270, 0.0
        %v3287 = vpack.c.bf16 %v3272, %v3271
        %v3288 = vpack.c.bf16 %v3274, %v3273
        %v3289 = vpack.c.bf16 %v3276, %v3275
        %v3290 = vpack.c.bf16 %v3278, %v3277
        %v3291 = vpack.c.bf16 %v3280, %v3279
        %v3292 = vpack.c.bf16 %v3282, %v3281
        %v3293 = vpack.c.bf16 %v3284, %v3283
        %v3294 = vpack.c.bf16 %v3286, %v3285
        %v3295 = vld [vmem:[#allocation5] sm:$0xf]
        %v3296 = vld [vmem:[#allocation7] sm:$0x1]
        %v3298 = vlaneseq
        %v3299 = vshrl.u32 %v3298, 7
        %v3300 = vsub.s32 0, %v3299
        %v3301 = vrot.slane %v3296, %v3300
        %v3304 = vsel %vm567, %v3287, 0
        %v3307 = vsel %vm567, %v3288, 0
        %v3310 = vsel %vm567, %v3289, 0
        %v3313 = vsel %vm567, %v3290, 0
        %v3316 = vsel %vm567, %v3291, 0
        %v3319 = vsel %vm567, %v3292, 0
        %v3322 = vsel %vm567, %v3293, 0
        %v3325 = vsel %vm567, %v3294, 0
        %vm3327 = vcmask 1043456
        %v3329 = vsel %vm3327, %v3295, 0
        %3331 = vmatprep.subr.bf16.mxu0 0
        %3332 = vmatpush1.bf16.msra.mxu0 %v3329
        %3333 = vmatprep.subr.bf16.mxu0 0
        %3334 = vmatpush1.bf16.msra.mxu0 0
        %3335 = vmatprep.subr.bf16.mxu0 0
        %3336 = vmatpush1.bf16.msra.mxu0 0
        %3337 = vmatprep.subr.bf16.mxu0 0
        %3338 = vmatpush1.bf16.msra.mxu0 0
        %3339 = vmatprep.subr.bf16.mxu0 0
        %3340 = vmatpush1.bf16.msra.mxu0 0
        %3341 = vmatprep.subr.bf16.mxu0 0
        %3342 = vmatpush1.bf16.msra.mxu0 0
        %3343 = vmatprep.subr.bf16.mxu0 0
        %3344 = vmatpush1.bf16.msra.mxu0 0
        %3345 = vmatprep.subr.bf16.mxu0 0
        %3346 = vmatpush1.bf16.msra.mxu0 0
        %3347 = vmatprep.subr.bf16.mxu0 0
        %3348 = vmatpush1.bf16.msra.mxu0 0
        %3349 = vmatprep.subr.bf16.mxu0 0
        %3350 = vmatpush1.bf16.msra.mxu0 0
        %3351 = vmatprep.subr.bf16.mxu0 0
        %3352 = vmatpush1.bf16.msra.mxu0 0
        %3353 = vmatprep.subr.bf16.mxu0 0
        %3354 = vmatpush1.bf16.msra.mxu0 0
        %3355 = vmatprep.subr.bf16.mxu0 0
        %3356 = vmatpush1.bf16.msra.mxu0 0
        %3357 = vmatprep.subr.bf16.mxu0 0
        %3358 = vmatpush1.bf16.msra.mxu0 0
        %3359 = vmatprep.subr.bf16.mxu0 0
        %3360 = vmatpush1.bf16.msra.mxu0 0
        %3361 = vmatprep.subr.bf16.mxu0 0
        %3362 = vmatpush1.bf16.msra.mxu0 0
        %3363 = vmatprep.mubr.bf16.mxu0 0
        %3364 = vmatmul.mubr.bf16.gmra.mrb[0].mxu0 %v3304
        %v3365 = vpop.f32.mrb[0].mxu0
        %v3366 = vadd.f32 %v3301, %v3365
        %v3367 = vpop.f32.mrb[0].mxu0
        %v3368 = vpop.f32.mrb[0].mxu0
        %v3369 = vadd.f32 %v3301, %v3368
        %v3370 = vpop.f32.mrb[0].mxu0
        %3371 = vmatprep.mubr.bf16.mxu0 0
        %3372 = vmatmul.mubr.bf16.gmra.mrb[0].mxu0 %v3307
        %v3373 = vpop.f32.mrb[0].mxu0
        %v3374 = vadd.f32 %v3301, %v3373
        %v3375 = vpop.f32.mrb[0].mxu0
        %v3376 = vpop.f32.mrb[0].mxu0
        %v3377 = vadd.f32 %v3301, %v3376
        %v3378 = vpop.f32.mrb[0].mxu0
        %3379 = vmatprep.mubr.bf16.mxu0 0
        %3380 = vmatmul.mubr.bf16.gmra.mrb[0].mxu0 %v3310
        %v3381 = vpop.f32.mrb[0].mxu0
        %v3382 = vadd.f32 %v3301, %v3381
        %v3383 = vpop.f32.mrb[0].mxu0
        %v3384 = vpop.f32.mrb[0].mxu0
        %v3385 = vadd.f32 %v3301, %v3384
        %v3386 = vpop.f32.mrb[0].mxu0
        %3387 = vmatprep.mubr.bf16.mxu0 0
        %3388 = vmatmul.mubr.bf16.gmra.mrb[0].mxu0 %v3313
        %v3389 = vpop.f32.mrb[0].mxu0
        %v3390 = vadd.f32 %v3301, %v3389
        %v3391 = vpop.f32.mrb[0].mxu0
        %v3392 = vpop.f32.mrb[0].mxu0
        %v3393 = vadd.f32 %v3301, %v3392
        %v3394 = vpop.f32.mrb[0].mxu0
        %3395 = vmatprep.mubr.bf16.mxu0 0
        %3396 = vmatmul.mubr.bf16.gmra.mrb[0].mxu0 %v3316
        %v3397 = vpop.f32.mrb[0].mxu0
        %v3398 = vadd.f32 %v3301, %v3397
        %v3399 = vpop.f32.mrb[0].mxu0
        %v3400 = vpop.f32.mrb[0].mxu0
        %v3401 = vadd.f32 %v3301, %v3400
        %v3402 = vpop.f32.mrb[0].mxu0
        %3403 = vmatprep.mubr.bf16.mxu0 0
        %3404 = vmatmul.mubr.bf16.gmra.mrb[0].mxu0 %v3319
        %v3405 = vpop.f32.mrb[0].mxu0
        %v3406 = vadd.f32 %v3301, %v3405
        %v3407 = vpop.f32.mrb[0].mxu0
        %v3408 = vpop.f32.mrb[0].mxu0
        %v3409 = vadd.f32 %v3301, %v3408
        %v3410 = vpop.f32.mrb[0].mxu0
        %3411 = vmatprep.mubr.bf16.mxu0 0
        %3412 = vmatmul.mubr.bf16.gmra.mrb[0].mxu0 %v3322
        %v3413 = vpop.f32.mrb[0].mxu0
        %v3414 = vadd.f32 %v3301, %v3413
        %v3415 = vpop.f32.mrb[0].mxu0
        %v3416 = vpop.f32.mrb[0].mxu0
        %v3417 = vadd.f32 %v3301, %v3416
        %v3418 = vpop.f32.mrb[0].mxu0
        %3419 = vmatprep.mubr.bf16.mxu0 0
        %3420 = vmatmul.mubr.bf16.gmra.mrb[0].mxu0 %v3325
        %v3421 = vpop.f32.mrb[0].mxu0
        %v3422 = vadd.f32 %v3301, %v3421
        %v3423 = vpop.f32.mrb[0].mxu0
        %v3424 = vpop.f32.mrb[0].mxu0
        %v3425 = vadd.f32 %v3301, %v3424
        %v3426 = vpop.f32.mrb[0].mxu0
        %3427 = vdwg.mxu0
        %v3428 = vmax.f32 %v3366, 0.0
        %v3429 = vmax.f32 %v3369, 0.0
        %v3430 = vmax.f32 %v3374, 0.0
        %v3431 = vmax.f32 %v3377, 0.0
        %v3432 = vmax.f32 %v3382, 0.0
        %v3433 = vmax.f32 %v3385, 0.0
        %v3434 = vmax.f32 %v3390, 0.0
        %v3435 = vmax.f32 %v3393, 0.0
        %v3436 = vmax.f32 %v3398, 0.0
        %v3437 = vmax.f32 %v3401, 0.0
        %v3438 = vmax.f32 %v3406, 0.0
        %v3439 = vmax.f32 %v3409, 0.0
        %v3440 = vmax.f32 %v3414, 0.0
        %v3441 = vmax.f32 %v3417, 0.0
        %v3442 = vmax.f32 %v3422, 0.0
        %v3443 = vmax.f32 %v3425, 0.0
        %v3444 = vpack.c.bf16 %v3429, %v3428
        %v3445 = vpack.c.bf16 %v3431, %v3430
        %v3446 = vpack.c.bf16 %v3433, %v3432
        %v3447 = vpack.c.bf16 %v3435, %v3434
        %v3448 = vpack.c.bf16 %v3437, %v3436
        %v3449 = vpack.c.bf16 %v3439, %v3438
        %v3450 = vpack.c.bf16 %v3441, %v3440
        %v3451 = vpack.c.bf16 %v3443, %v3442
        %v3452 = vld [vmem:[#allocation8] sm:$0xf]
        %v3453 = vld [vmem:[#allocation8 + $0x4] sm:$0xf]
        %v3454 = vld [vmem:[#allocation8 + $0x8] sm:$0xf]
        %v3455 = vld [vmem:[#allocation8 + $0xc] sm:$0xf]
        %v3456 = vld [vmem:[#allocation10] sm:$0x1]
        %v3458 = vlaneseq
        %v3459 = vshrl.u32 %v3458, 7
        %v3460 = vsub.s32 0, %v3459
        %v3461 = vrot.slane %v3456, %v3460
        %v3467 = vunpack.c.l.b16 %v3452
        %v3468 = vunpack.c.l.b16 %v3453
        %v3469 = vunpack.c.l.b16 %v3454
        %v3470 = vunpack.c.l.b16 %v3455
        %v3471 = vpack.c.b16 %v3468, %v3467
        %v3472 = vpack.c.b16 %v3470, %v3469
        %vm3475 = vcmask 261120
        %v3477 = vsel %vm3475, %v3444, 0
        %v3480 = vsel %vm3475, %v3445, 0
        %v3483 = vsel %vm3475, %v3446, 0
        %v3486 = vsel %vm3475, %v3447, 0
        %v3489 = vsel %vm3475, %v3448, 0
        %v3492 = vsel %vm3475, %v3449, 0
        %v3495 = vsel %vm3475, %v3450, 0
        %v3498 = vsel %vm3475, %v3451, 0
        %3500 = vmatprep.subr.bf16.mxu0 0
        %3501 = vmatpush1.bf16.msra.mxu0 %v3471
        %3502 = vmatprep.subr.bf16.mxu0 0
        %3503 = vmatpush1.bf16.msra.mxu0 %v3472
        %3504 = vmatprep.subr.bf16.mxu0 0
        %3505 = vmatpush1.bf16.msra.mxu0 0
        %3506 = vmatprep.subr.bf16.mxu0 0
        %3507 = vmatpush1.bf16.msra.mxu0 0
        %3508 = vmatprep.subr.bf16.mxu0 0
        %3509 = vmatpush1.bf16.msra.mxu0 0
        %3510 = vmatprep.subr.bf16.mxu0 0
        %3511 = vmatpush1.bf16.msra.mxu0 0
        %3512 = vmatprep.subr.bf16.mxu0 0
        %3513 = vmatpush1.bf16.msra.mxu0 0
        %3514 = vmatprep.subr.bf16.mxu0 0
        %3515 = vmatpush1.bf16.msra.mxu0 0
        %3516 = vmatprep.subr.bf16.mxu0 0
        %3517 = vmatpush1.bf16.msra.mxu0 0
        %3518 = vmatprep.subr.bf16.mxu0 0
        %3519 = vmatpush1.bf16.msra.mxu0 0
        %3520 = vmatprep.subr.bf16.mxu0 0
        %3521 = vmatpush1.bf16.msra.mxu0 0
        %3522 = vmatprep.subr.bf16.mxu0 0
        %3523 = vmatpush1.bf16.msra.mxu0 0
        %3524 = vmatprep.subr.bf16.mxu0 0
        %3525 = vmatpush1.bf16.msra.mxu0 0
        %3526 = vmatprep.subr.bf16.mxu0 0
        %3527 = vmatpush1.bf16.msra.mxu0 0
        %3528 = vmatprep.subr.bf16.mxu0 0
        %3529 = vmatpush1.bf16.msra.mxu0 0
        %3530 = vmatprep.subr.bf16.mxu0 0
        %3531 = vmatpush1.bf16.msra.mxu0 0
        %3532 = vmatprep.mubr.bf16.mxu0 0
        %3533 = vmatmul.mubr.bf16.gmra.mrb[0].mxu0 %v3477
        %v3534 = vpop.f32.mrb[0].mxu0
        %v3535 = vadd.f32 %v3461, %v3534
        %v3536 = vpop.f32.mrb[0].mxu0
        %v3537 = vpop.f32.mrb[0].mxu0
        %v3538 = vadd.f32 %v3461, %v3537
        %v3539 = vpop.f32.mrb[0].mxu0
        %3540 = vmatprep.mubr.bf16.mxu0 0
        %3541 = vmatmul.mubr.bf16.gmra.mrb[0].mxu0 %v3480
        %v3542 = vpop.f32.mrb[0].mxu0
        %v3543 = vadd.f32 %v3461, %v3542
        %v3544 = vpop.f32.mrb[0].mxu0
        %v3545 = vpop.f32.mrb[0].mxu0
        %v3546 = vadd.f32 %v3461, %v3545
        %v3547 = vpop.f32.mrb[0].mxu0
        %3548 = vmatprep.mubr.bf16.mxu0 0
        %3549 = vmatmul.mubr.bf16.gmra.mrb[0].mxu0 %v3483
        %v3550 = vpop.f32.mrb[0].mxu0
        %v3551 = vadd.f32 %v3461, %v3550
        %v3552 = vpop.f32.mrb[0].mxu0
        %v3553 = vpop.f32.mrb[0].mxu0
        %v3554 = vadd.f32 %v3461, %v3553
        %v3555 = vpop.f32.mrb[0].mxu0
        %3556 = vmatprep.mubr.bf16.mxu0 0
        %3557 = vmatmul.mubr.bf16.gmra.mrb[0].mxu0 %v3486
        %v3558 = vpop.f32.mrb[0].mxu0
        %v3559 = vadd.f32 %v3461, %v3558
        %v3560 = vpop.f32.mrb[0].mxu0
        %v3561 = vpop.f32.mrb[0].mxu0
        %v3562 = vadd.f32 %v3461, %v3561
        %v3563 = vpop.f32.mrb[0].mxu0
        %3564 = vmatprep.mubr.bf16.mxu0 0
        %3565 = vmatmul.mubr.bf16.gmra.mrb[0].mxu0 %v3489
        %v3566 = vpop.f32.mrb[0].mxu0
        %v3567 = vadd.f32 %v3461, %v3566
        %v3568 = vpop.f32.mrb[0].mxu0
        %v3569 = vpop.f32.mrb[0].mxu0
        %v3570 = vadd.f32 %v3461, %v3569
        %v3571 = vpop.f32.mrb[0].mxu0
        %3572 = vmatprep.mubr.bf16.mxu0 0
        %3573 = vmatmul.mubr.bf16.gmra.mrb[0].mxu0 %v3492
        %v3574 = vpop.f32.mrb[0].mxu0
        %v3575 = vadd.f32 %v3461, %v3574
        %v3576 = vpop.f32.mrb[0].mxu0
        %v3577 = vpop.f32.mrb[0].mxu0
        %v3578 = vadd.f32 %v3461, %v3577
        %v3579 = vpop.f32.mrb[0].mxu0
        %3580 = vmatprep.mubr.bf16.mxu0 0
        %3581 = vmatmul.mubr.bf16.gmra.mrb[0].mxu0 %v3495
        %v3582 = vpop.f32.mrb[0].mxu0
        %v3583 = vadd.f32 %v3461, %v3582
        %v3584 = vpop.f32.mrb[0].mxu0
        %v3585 = vpop.f32.mrb[0].mxu0
        %v3586 = vadd.f32 %v3461, %v3585
        %v3587 = vpop.f32.mrb[0].mxu0
        %3588 = vmatprep.mubr.bf16.mxu0 0
        %3589 = vmatmul.mubr.bf16.gmra.mrb[0].mxu0 %v3498
        %v3590 = vpop.f32.mrb[0].mxu0
        %v3591 = vadd.f32 %v3461, %v3590
        %v3592 = vpop.f32.mrb[0].mxu0
        %v3593 = vpop.f32.mrb[0].mxu0
        %v3594 = vadd.f32 %v3461, %v3593
        %v3595 = vpop.f32.mrb[0].mxu0
        %3596 = vdwg.mxu0
        %3597 = vxpose.xlu0.b32.start [1/16] %v3535, 128
        %3598 = vxpose.xlu0.b32.cont [2/16] %v3538, 128
        %3599 = vxpose.xlu0.b32.cont [3/16] %v3543, 128
        %3600 = vxpose.xlu0.b32.cont [4/16] %v3546, 128
        %3601 = vxpose.xlu0.b32.cont [5/16] %v3551, 128
        %3602 = vxpose.xlu0.b32.cont [6/16] %v3554, 128
        %3603 = vxpose.xlu0.b32.cont [7/16] %v3559, 128
        %3604 = vxpose.xlu0.b32.cont [8/16] %v3562, 128
        %3605 = vxpose.xlu0.b32.cont [9/16] %v3567, 128
        %3606 = vxpose.xlu0.b32.cont [10/16] %v3570, 128
        %3607 = vxpose.xlu0.b32.cont [11/16] %v3575, 128
        %3608 = vxpose.xlu0.b32.cont [12/16] %v3578, 128
        %3609 = vxpose.xlu0.b32.cont [13/16] %v3583, 128
        %3610 = vxpose.xlu0.b32.cont [14/16] %v3586, 128
        %3611 = vxpose.xlu0.b32.cont [15/16] %v3591, 128
        %3612 = vxpose.xlu0.b32.end [16/16] %v3594, 128
        %v3613 = vpop.trf.xlu0
        %v3614 = vpop.trf.xlu0
        %v3615 = vpop.trf.xlu0
        %v3616 = vpop.trf.xlu0
        %v3617 = vpop.trf.xlu0
        %v3618 = vpop.trf.xlu0
        %v3619 = vpop.trf.xlu0
        %v3620 = vpop.trf.xlu0
        %v3621 = vpop.trf.xlu0
        %v3622 = vpop.trf.xlu0
        %v3623 = vpop.trf.xlu0
        %v3624 = vpop.trf.xlu0
        %v3625 = vpop.trf.xlu0
        %v3626 = vpop.trf.xlu0
        %v3627 = vpop.trf.xlu0
        %v3628 = vpop.trf.xlu0
        %v3629 = vxor.u32 %v3613, 2147483648
        %v3630 = vxor.u32 %v3614, 2147483648
        %v3631 = vmul.f32 %v3629, 1.442695
        %v3632 = vpow.pop %v3631
        %v3633 = vmul.f32 %v3630, 1.442695
        %v3634 = vpow.pop %v3633
        %v3635 = vadd.f32 %v3632, 1.0
        %v3636 = vadd.f32 %v3634, 1.0
        %v3637 = vrcp.pop %v3635
        %v3638 = vmul.f32 1.0, %v3637
        %v3639 = vrcp.pop %v3636
        %v3640 = vmul.f32 1.0, %v3639
        %v3641 = vxor.u32 %v3615, 2147483648
        %v3642 = vxor.u32 %v3616, 2147483648
        %v3643 = vmul.f32 %v3641, 1.442695
        %v3644 = vpow.pop %v3643
        %v3645 = vmul.f32 %v3642, 1.442695
        %v3646 = vpow.pop %v3645
        %v3647 = vadd.f32 %v3644, 1.0
        %v3648 = vadd.f32 %v3646, 1.0
        %v3649 = vrcp.pop %v3647
        %v3650 = vmul.f32 1.0, %v3649
        %v3651 = vrcp.pop %v3648
        %v3652 = vmul.f32 1.0, %v3651
        %v3653 = vsub.f32 %v3638, %v3650
        %v3654 = vsub.f32 %v3640, %v3652
        %v3655 = vmul.f32 %v3653, 50.0
        %v3656 = vmul.f32 %v3654, 50.0
        %v3657 = vxor.u32 %v3655, 2147483648
        %v3658 = vxor.u32 %v3656, 2147483648
        %v3659 = vmul.f32 %v3657, 1.442695
        %v3660 = vpow.pop %v3659
        %v3661 = vmul.f32 %v3658, 1.442695
        %v3662 = vpow.pop %v3661
        %v3663 = vadd.f32 %v3660, 1.0
        %v3664 = vadd.f32 %v3662, 1.0
        %v3665 = vrcp.pop %v3663
        %v3666 = vmul.f32 1.0, %v3665
        %v3667 = vrcp.pop %v3664
        %v3668 = vmul.f32 1.0, %v3667
        %3669 = vst [vmem:[%s379] sm:$0xff] %v3638
        %3670 = vst [vmem:[%s379 + $0x8] sm:$0xff] %v3640
        %3671 = vst [vmem:[%s379 + $0x10] sm:$0xff] %v3650
        %3672 = vst [vmem:[%s379 + $0x18] sm:$0xff] %v3652
        %3673 = vst [vmem:[%s379 + $0x20] sm:$0xff] %v3666
        %3674 = vst [vmem:[%s379 + $0x28] sm:$0xff] %v3668
        %p3675 = scmp.lt.s32.totalorder %s25, 1
        %s3676 = scalar_select %p3675, %s25, 1
        %p3677 = scmp.lt.s32.totalorder %s26, 1
        %s3678 = scalar_select %p3677, %s26, 1
        %s3679 = smul.addr %s3678, 6
        %s3680 = smul.addr %s3676, 12
        %s3681 = sadd.s32 %s3679, %s3680
        %s3682 = smul.addr %s3681, 8
        %s3683 = scalar_lea.vmem %s7, %s3682
        // Predicated region
        $region69: #{dbhead_forward.1} parent=47 // pred_check
          %p3684 = pneg %p207
        $region70: #{dbhead_forward.1} parent=47 // pred_check_branch
          %3686 = sbr.rel (%p3684) target = $region72
        $region71: #{dbhead_forward.1} parent=47 // pred_region
          _
        $region72: #{dbhead_forward.1} parent=47 // pred_fallthru
          _
      $region48: #{dbhead_forward.1} parent=5 // pred_fallthru
        _
      %p3687 = scmp.le.s32.totalorder 2, %s16
      // Predicated region
      $region73: #{dbhead_forward.1} parent=5 // pred_check
        %p3688 = pneg %p3687
      $region74: #{dbhead_forward.1} parent=5 // pred_check_branch
        %3690 = sbr.rel (%p3688) target = $region76
      $region75: #{dbhead_forward.1} parent=5 // pred_region
        %s3691 = ssub.s32 %s16, 2
        // Predicated region
        $region77: #{dbhead_forward.1} parent=75 // pred_check
          %p3692 = pneg %p213
        $region78: #{dbhead_forward.1} parent=75 // pred_check_branch
          %3694 = sbr.rel (%p3692) target = $region80
        $region79: #{dbhead_forward.1} parent=75 // pred_region
          %p3695 = scmp.lt.s32.totalorder %s27, 1
          %s3696 = scalar_select %p3695, %s27, 1
          %p3697 = scmp.lt.s32.totalorder %s28, 1
          %s3698 = scalar_select %p3697, %s28, 1
          %s3699 = smul.addr %s3698, 6
          %s3700 = smul.addr %s3696, 12
          %s3701 = sadd.s32 %s3699, %s3700
          %s3702 = smul.addr %s3701, 8
          %s3703 = scalar_lea.vmem %s7, %s3702
        $region80: #{dbhead_forward.1} parent=75 // pred_fallthru
          _
      $region76: #{dbhead_forward.1} parent=5 // pred_fallthru
        _
    $region6: #{dbhead_forward.1} parent=1 // loop_footer
      %s20 = sadd.s32 1, %s16
    $region7: #{dbhead_forward.1} parent=1 // loop_footer_branch
      %15 = sbr.rel target = $region3
    $region8: #{dbhead_forward.1} parent=1 // loop_exit
      _
    %3704 = vsyncpa [#allocation4], 1
    %s3705 = scalar_lea.sflag [#allocation4], 1
    %3706 = vsyncpa %s3705, 1
    %3707 = vsyncpa [#allocation6], 1
    %3708 = vsyncpa [#allocation9], 1

</llo_original>
